<compile_context>
chip_gen: v6e
topology: v6e:2x2x1
jax: 0.10.0
libtpu: 0.0.40
codegen_flags: <defaults>
</compile_context>

<pallas_src>
import functools

import jax
import jax.numpy as jnp
from jax.experimental import pallas as pl
from jax.experimental.pallas import tpu as pltpu


# ----------------------------------------------------------------------------
# Pallas kernel: one output row tile per grid step
# ----------------------------------------------------------------------------
def _tds_block_kernel(xa_ref, xh_ref, w_ref, b_ref, g_ref, bt_ref, o_ref, win_ref,
                      *, rows, row_shift, kernel_width, inv_c):
    """Fused TDS conv block over one row tile.

    xa_ref : (rows, Cp)            main input tile  (rows = t_tile * N_pad)
    xh_ref : (halo_rows, Cp)       the next (K-1) time steps (temporal halo)
    w_ref  : (K, Cp, Cp)           block-diagonal conv weights per temporal tap
    b_ref  : (1, Cp)  f32          conv bias (broadcast over rows)
    g_ref  : (1, Cp)  f32          LayerNorm gamma (zero in padded cols)
    bt_ref : (1, Cp)  f32          LayerNorm beta  (zero in padded cols)
    o_ref  : (rows, Cp)            output tile
    win_ref: (rows + halo_rows, Cp) VMEM scratch: contiguous halo'd window
    """
    halo = xh_ref.shape[0]

    # Assemble the halo'd window in VMEM scratch (one cheap extra VMEM pass);
    # every temporal tap then becomes a uniform, sublane-aligned (rows, Cp) slice.
    win_ref[pl.ds(0, rows), :] = xa_ref[...]
    win_ref[pl.ds(rows, halo), :] = xh_ref[...]

    # Tap 0: fold the conv bias into the first accumulate (saves a full VPU pass).
    x0 = xa_ref[...]
    acc = jnp.dot(x0, w_ref[0], preferred_element_type=jnp.float32) + b_ref[...]
    resid = x0.astype(jnp.float32)          # MaxPool2d residual accumulator
    x_last = x0                             # tap K-1 slice == inputs[-T_out:]

    for k in range(1, kernel_width):
        xk = win_ref[pl.ds(k * row_shift, rows), :]      # static, 8/16-aligned start
        acc = acc + jnp.dot(xk, w_ref[k], preferred_element_type=jnp.float32)
        resid = jnp.maximum(resid, xk.astype(jnp.float32))
        x_last = xk

    # relu(conv) + maxpool(x) + skip connection
    z = jnp.maximum(acc, 0.0) + resid + x_last.astype(jnp.float32)

    # LayerNorm over the *real* feature width C. Padded columns of z are exactly
    # zero (zero-padded inputs, weights, bias), so plain sums are correct as long
    # as we divide by C (not the padded lane width).
    mean = jnp.sum(z, axis=-1, keepdims=True) * inv_c
    ex2 = jnp.sum(z * z, axis=-1, keepdims=True) * inv_c
    zn = (z - mean) * jax.lax.rsqrt(ex2 - mean * mean + 1e-5)
    o_ref[...] = (zn * g_ref[...] + bt_ref[...]).astype(o_ref.dtype)


# ----------------------------------------------------------------------------
# Wrapper: padding / parameter repacking (plain JAX glue) + pallas_call
# ----------------------------------------------------------------------------
def _round_up(x, m):
    return ((x + m - 1) // m) * m


def residual_tds_conv2d_block(inputs, conv_w, conv_b, ln_w, ln_b, *,
                              channels, width, kernel_width,
                              target_rows_per_tile=1024, out_dtype=None):
    """inputs: (T_in, N, C) with C == channels * width. Returns (T_out, N, C)."""
    T_in, N, C = inputs.shape
    assert C == channels * width
    K = kernel_width
    assert T_in >= K
    T_out = T_in - K + 1

    x_dtype = inputs.dtype
    out_dtype = out_dtype or x_dtype
    x_isz = jnp.dtype(x_dtype).itemsize
    o_isz = jnp.dtype(out_dtype).itemsize

    # ---- lane / sublane padding -------------------------------------------
    LANE = 128
    Cp = _round_up(C, LANE)
    sub = {4: 8, 2: 16, 1: 32}.get(min(x_isz, o_isz), 8)
    N_pad = _round_up(N, sub)

    # ---- row tiling (halo_t divides t_tile so the halo is block-addressable)
    halo_t = max(K - 1, 1)
    t_tile_max = max(1, target_rows_per_tile // N_pad)
    num_tiles = -(-T_out // t_tile_max)
    t_tile = -(-T_out // num_tiles)
    t_tile = _round_up(t_tile, halo_t)
    T_out_pad = num_tiles * t_tile
    T_in_pad = T_out_pad + halo_t
    rows = t_tile * N_pad                 # output rows per grid step (mult. of sub)
    halo_rows = halo_t * N_pad
    halo_blocks = t_tile // halo_t        # halo block index stride

    # ---- glue: pad + flatten the input (time-major rows, lane-dense cols) --
    x = jnp.pad(inputs, ((0, T_in_pad - T_in), (0, N_pad - N), (0, Cp - C)))
    x2d = x.reshape(T_in_pad * N_pad, Cp)

    # ---- glue: (1, K) Conv2d as K block-diagonal (Cp, Cp) matrices ----------
    # wbig[k, ci*width + w, co*width + v] = conv_w[co, ci, 0, k] * (w == v)
    w_kio = jnp.transpose(conv_w[:, :, 0, :], (2, 1, 0)).astype(jnp.float32)   # (K, Ci, Co)
    eye_w = jnp.eye(width, dtype=jnp.float32)
    wbig = jnp.einsum("kio,wv->kiwov", w_kio, eye_w).reshape(K, C, C)
    wbig = jnp.pad(wbig, ((0, 0), (0, Cp - C), (0, Cp - C))).astype(x_dtype)
    bbig = jnp.pad(jnp.repeat(conv_b.astype(jnp.float32), width), (0, Cp - C)).reshape(1, Cp)
    gamma = jnp.pad(ln_w.astype(jnp.float32), (0, Cp - C)).reshape(1, Cp)
    beta = jnp.pad(ln_b.astype(jnp.float32), (0, Cp - C)).reshape(1, Cp)

    kernel = functools.partial(
        _tds_block_kernel,
        rows=rows, row_shift=N_pad, kernel_width=K, inv_c=1.0 / C)

    # ---- VMEM budget estimate (double-buffered blocks + scratch + f32 temps)
    est = (2 * (rows + halo_rows) * Cp * x_isz      # input tile + halo (x2 buffers)
           + 2 * rows * Cp * o_isz                  # output tile (x2 buffers)
           + 2 * K * Cp * Cp * x_isz                # conv weights
           + (rows + halo_rows) * Cp * x_isz        # window scratch
           + 4 * rows * Cp * 4                      # f32 acc / resid / z / zn
           + (2 << 20))                             # headroom
    cp_kwargs = dict(dimension_semantics=("parallel",))
    if est > 16 * 1024 * 1024:                      # beyond v5e's default scoped VMEM
        cp_kwargs["vmem_limit_bytes"] = min(int(est), 64 * 1024 * 1024)

    out2d = pl.pallas_call(
        kernel,
        out_shape=jax.ShapeDtypeStruct((T_out_pad * N_pad, Cp), out_dtype),
        grid=(num_tiles,),
        in_specs=[
            pl.BlockSpec((rows, Cp), lambda i: (i, 0)),                       # main tile
            pl.BlockSpec((halo_rows, Cp), lambda i: ((i + 1) * halo_blocks, 0)),  # halo
            pl.BlockSpec((K, Cp, Cp), lambda i: (0, 0, 0)),                   # weights
            pl.BlockSpec((1, Cp), lambda i: (0, 0)),                          # bias
            pl.BlockSpec((1, Cp), lambda i: (0, 0)),                          # gamma
            pl.BlockSpec((1, Cp), lambda i: (0, 0)),                          # beta
        ],
        out_specs=pl.BlockSpec((rows, Cp), lambda i: (i, 0)),
        scratch_shapes=[pltpu.VMEM((rows + halo_rows, Cp), x_dtype)],
        compiler_params=pltpu.CompilerParams(**cp_kwargs),
    )(x2d, x2d, wbig, bbig, gamma, beta)

    return out2d.reshape(T_out_pad, N_pad, Cp)[:T_out, :N, :C]


# ----------------------------------------------------------------------------
# Pure-JAX reference following the PyTorch semantics (NCHW path) for validation
# ----------------------------------------------------------------------------
def reference(inputs, conv_w, conv_b, ln_w, ln_b, *, channels, width, kernel_width):
    T_in, N, C = inputs.shape
    K = kernel_width
    T_out = T_in - K + 1
    x = jnp.transpose(inputs, (1, 2, 0)).reshape(N, channels, width, T_in)
    resid = jnp.max(jnp.stack([x[..., k:k + T_out] for k in range(K)], 0), 0)
    conv = conv_b[None, :, None, None]
    for k in range(K):
        conv = conv + jnp.einsum("niwt,oi->nowt", x[..., k:k + T_out], conv_w[:, :, 0, k])
    conv = jnp.maximum(conv, 0.0)
    y = jnp.transpose(conv.reshape(N, C, T_out), (2, 0, 1))
    r = jnp.transpose(resid.reshape(N, C, T_out), (2, 0, 1))
    z = y + r + inputs[-T_out:]
    mean = z.mean(-1, keepdims=True)
    var = ((z - mean) ** 2).mean(-1, keepdims=True)
    return (z - mean) / jnp.sqrt(var + 1e-5) * ln_w + ln_b


# ----------------------------------------------------------------------------
if __name__ == "__main__":
    # Small, module-consistent shapes: C = channels * width; T_in large enough to
    # exercise multiple grid tiles, the temporal halo and the T/N/C padding paths.
    channels, width, kernel_width = 4, 8, 3
    C = channels * width          # 32
    T_in, N = 300, 2
    T_out = T_in - kernel_width + 1

    key = jax.random.PRNGKey(0)
    k_x, k_w, k_b, k_g, k_bt = jax.random.split(key, 5)

    inputs = jax.random.normal(k_x, (T_in, N, C), jnp.float32)
    conv_w = 0.1 * jax.random.normal(k_w, (channels, channels, 1, kernel_width), jnp.float32)
    conv_b = 0.1 * jax.random.normal(k_b, (channels,), jnp.float32)
    ln_w = 1.0 + 0.05 * jax.random.normal(k_g, (C,), jnp.float32)
    ln_b = 0.05 * jax.random.normal(k_bt, (C,), jnp.float32)

    # --- f32 I/O run: tight check against the pure-JAX reference -------------
    out = residual_tds_conv2d_block(
        inputs, conv_w, conv_b, ln_w, ln_b,
        channels=channels, width=width, kernel_width=kernel_width)
    out = jax.block_until_ready(out)
    ref = reference(inputs, conv_w, conv_b, ln_w, ln_b,
                    channels=channels, width=width, kernel_width=kernel_width)
    assert out.shape == (T_out, N, C), out.shape
    err = float(jnp.max(jnp.abs(out - ref)))
    assert err < 2e-3, f"f32 max abs err {err}"

    # --- bf16 I/O run (memory-bound production path): loose check against a
    #     reference evaluated on the same bf16-rounded inputs/weights ---------
    xb = inputs.astype(jnp.bfloat16)
    out_bf = residual_tds_conv2d_block(
        xb, conv_w, conv_b, ln_w, ln_b,
        channels=channels, width=width, kernel_width=kernel_width)
    out_bf = jax.block_until_ready(out_bf)
    ref_bf = reference(xb.astype(jnp.float32),
                       conv_w.astype(jnp.bfloat16).astype(jnp.float32),
                       conv_b, ln_w, ln_b,
                       channels=channels, width=width, kernel_width=kernel_width)
    assert out_bf.shape == (T_out, N, C), out_bf.shape
    err_bf = float(jnp.max(jnp.abs(out_bf.astype(jnp.float32) - ref_bf)))
    assert err_bf < 7.5e-2, f"bf16 max abs err {err_bf}"

    print("KERNEL_OK")
</pallas_src>

<mosaic_0001>
module attributes {stable_mosaic.version = 11 : i64} {
  func.func @_tds_block_kernel(%arg0: i32, %arg1: memref<800x128xf32, #tpu.memory_space<vmem>>, %arg2: memref<16x128xf32, #tpu.memory_space<vmem>>, %arg3: memref<3x128x128xf32, #tpu.memory_space<vmem>>, %arg4: memref<1x128xf32, #tpu.memory_space<vmem>>, %arg5: memref<1x128xf32, #tpu.memory_space<vmem>>, %arg6: memref<1x128xf32, #tpu.memory_space<vmem>>, %arg7: memref<800x128xf32, #tpu.memory_space<vmem>>, %arg8: memref<816x128xf32, #tpu.memory_space<vmem>>) attributes {dimension_semantics = [#tpu.dimension_semantics<parallel>], iteration_bounds = array<i64: 3>, scalar_prefetch = 0 : i64, scratch_operands = 1 : i64, tpu.core_type = #tpu.core_type<tc>, window_params = [{transform_indices = @transform_0, window_bounds = array<i64: 800, 128>}, {transform_indices = @transform_1, window_bounds = array<i64: 16, 128>}, {pipeline_mode = #tpu.pipeline_mode<synchronous>, transform_indices = @transform_2, window_bounds = array<i64: 3, 128, 128>}, {pipeline_mode = #tpu.pipeline_mode<synchronous>, transform_indices = @transform_3, window_bounds = array<i64: 1, 128>}, {pipeline_mode = #tpu.pipeline_mode<synchronous>, transform_indices = @transform_4, window_bounds = array<i64: 1, 128>}, {pipeline_mode = #tpu.pipeline_mode<synchronous>, transform_indices = @transform_5, window_bounds = array<i64: 1, 128>}, {transform_indices = @transform_6, window_bounds = array<i64: 800, 128>}]} {
    %c0 = arith.constant 0 : index
    %c0_0 = arith.constant 0 : index
    %0 = vector.load %arg1[%c0, %c0_0] : memref<800x128xf32, #tpu.memory_space<vmem>>, vector<800x128xf32>
    %c0_1 = arith.constant 0 : index
    %c0_2 = arith.constant 0 : index
    %1 = vector.load %arg8[%c0_1, %c0_2] : memref<816x128xf32, #tpu.memory_space<vmem>>, vector<800x128xf32>
    tpu.vector_store %arg8[%c0_1, %c0_2], %0 {strides = array<i32>} : memref<816x128xf32, #tpu.memory_space<vmem>>, vector<800x128xf32>,
    %c0_3 = arith.constant 0 : index
    %c0_4 = arith.constant 0 : index
    %2 = vector.load %arg2[%c0_3, %c0_4] : memref<16x128xf32, #tpu.memory_space<vmem>>, vector<16x128xf32>
    %c800 = arith.constant 800 : index
    %c0_5 = arith.constant 0 : index
    %3 = vector.load %arg8[%c800, %c0_5] : memref<816x128xf32, #tpu.memory_space<vmem>>, vector<16x128xf32>
    tpu.vector_store %arg8[%c800, %c0_5], %2 {strides = array<i32>} : memref<816x128xf32, #tpu.memory_space<vmem>>, vector<16x128xf32>,
    %c0_6 = arith.constant 0 : index
    %c0_7 = arith.constant 0 : index
    %4 = vector.load %arg1[%c0_6, %c0_7] : memref<800x128xf32, #tpu.memory_space<vmem>>, vector<800x128xf32>
    %c0_8 = arith.constant 0 : index
    %c0_9 = arith.constant 0 : index
    %c0_10 = arith.constant 0 : index
    %5 = vector.load %arg3[%c0_8, %c0_9, %c0_10] : memref<3x128x128xf32, #tpu.memory_space<vmem>>, vector<1x128x128xf32>
    %6 = vector.shape_cast %5 : vector<1x128x128xf32> to vector<128x128xf32>
    %cst = arith.constant dense<0.000000e+00> : vector<800x128xf32>
    %7 = tpu.matmul %4, %6, %cst {dimension_numbers = #tpu.dot_dimension_numbers<[1], [0], [0], [1], [0, 0, 1, 1], [], []>} : vector<800x128xf32>, vector<128x128xf32>, vector<800x128xf32> -> vector<800x128xf32>
    %c0_11 = arith.constant 0 : index
    %c0_12 = arith.constant 0 : index
    %8 = vector.load %arg4[%c0_11, %c0_12] : memref<1x128xf32, #tpu.memory_space<vmem>>, vector<1x128xf32>
    %9 = vector.broadcast %8 : vector<1x128xf32> to vector<800x128xf32>
    %10 = arith.addf %7, %9 : vector<800x128xf32>
    %c8 = arith.constant 8 : index
    %c0_13 = arith.constant 0 : index
    %11 = vector.load %arg8[%c8, %c0_13] : memref<816x128xf32, #tpu.memory_space<vmem>>, vector<800x128xf32>
    %c1 = arith.constant 1 : index
    %c0_14 = arith.constant 0 : index
    %c0_15 = arith.constant 0 : index
    %12 = vector.load %arg3[%c1, %c0_14, %c0_15] : memref<3x128x128xf32, #tpu.memory_space<vmem>>, vector<1x128x128xf32>
    %13 = vector.shape_cast %12 : vector<1x128x128xf32> to vector<128x128xf32>
    %cst_16 = arith.constant dense<0.000000e+00> : vector<800x128xf32>
    %14 = tpu.matmul %11, %13, %cst_16 {dimension_numbers = #tpu.dot_dimension_numbers<[1], [0], [0], [1], [0, 0, 1, 1], [], []>} : vector<800x128xf32>, vector<128x128xf32>, vector<800x128xf32> -> vector<800x128xf32>
    %15 = arith.addf %10, %14 : vector<800x128xf32>
    %16 = arith.maximumf %4, %11 : vector<800x128xf32>
    %c16 = arith.constant 16 : index
    %c0_17 = arith.constant 0 : index
    %17 = vector.load %arg8[%c16, %c0_17] : memref<816x128xf32, #tpu.memory_space<vmem>>, vector<800x128xf32>
    %c2 = arith.constant 2 : index
    %c0_18 = arith.constant 0 : index
    %c0_19 = arith.constant 0 : index
    %18 = vector.load %arg3[%c2, %c0_18, %c0_19] : memref<3x128x128xf32, #tpu.memory_space<vmem>>, vector<1x128x128xf32>
    %19 = vector.shape_cast %18 : vector<1x128x128xf32> to vector<128x128xf32>
    %cst_20 = arith.constant dense<0.000000e+00> : vector<800x128xf32>
    %20 = tpu.matmul %17, %19, %cst_20 {dimension_numbers = #tpu.dot_dimension_numbers<[1], [0], [0], [1], [0, 0, 1, 1], [], []>} : vector<800x128xf32>, vector<128x128xf32>, vector<800x128xf32> -> vector<800x128xf32>
    %21 = arith.addf %15, %20 : vector<800x128xf32>
    %22 = arith.maximumf %16, %17 : vector<800x128xf32>
    %cst_21 = arith.constant 0.000000e+00 : f32
    %23 = vector.broadcast %cst_21 : f32 to vector<800x128xf32>
    %24 = arith.maximumf %21, %23 : vector<800x128xf32>
    %25 = arith.addf %24, %22 : vector<800x128xf32>
    %26 = arith.addf %25, %17 : vector<800x128xf32>
    %cst_22 = arith.constant dense<0.000000e+00> : vector<800xf32>
    %27 = vector.multi_reduction <add>, %26, %cst_22 [1] : vector<800x128xf32> to vector<800xf32>
    %28 = vector.shape_cast %27 : vector<800xf32> to vector<800x1xf32>
    %cst_23 = arith.constant 3.125000e-02 : f32
    %29 = vector.broadcast %cst_23 : f32 to vector<800x1xf32>
    %30 = arith.mulf %28, %29 : vector<800x1xf32>
    %31 = arith.mulf %26, %26 : vector<800x128xf32>
    %cst_24 = arith.constant dense<0.000000e+00> : vector<800xf32>
    %32 = vector.multi_reduction <add>, %31, %cst_24 [1] : vector<800x128xf32> to vector<800xf32>
    %33 = vector.shape_cast %32 : vector<800xf32> to vector<800x1xf32>
    %cst_25 = arith.constant 3.125000e-02 : f32
    %34 = vector.broadcast %cst_25 : f32 to vector<800x1xf32>
    %35 = arith.mulf %33, %34 : vector<800x1xf32>
    %36 = vector.broadcast %30 : vector<800x1xf32> to vector<800x128xf32>
    %37 = arith.subf %26, %36 : vector<800x128xf32>
    %38 = arith.mulf %30, %30 : vector<800x1xf32>
    %39 = arith.subf %35, %38 : vector<800x1xf32>
    %cst_26 = arith.constant 9.99999974E-6 : f32
    %40 = vector.broadcast %cst_26 : f32 to vector<800x1xf32>
    %41 = arith.addf %39, %40 : vector<800x1xf32>
    %42 = math.rsqrt %41 : vector<800x1xf32>
    %43 = vector.broadcast %42 : vector<800x1xf32> to vector<800x128xf32>
    %44 = arith.mulf %37, %43 : vector<800x128xf32>
    %c0_27 = arith.constant 0 : index
    %c0_28 = arith.constant 0 : index
    %45 = vector.load %arg5[%c0_27, %c0_28] : memref<1x128xf32, #tpu.memory_space<vmem>>, vector<1x128xf32>
    %46 = vector.broadcast %45 : vector<1x128xf32> to vector<800x128xf32>
    %47 = arith.mulf %44, %46 : vector<800x128xf32>
    %c0_29 = arith.constant 0 : index
    %c0_30 = arith.constant 0 : index
    %48 = vector.load %arg6[%c0_29, %c0_30] : memref<1x128xf32, #tpu.memory_space<vmem>>, vector<1x128xf32>
    %49 = vector.broadcast %48 : vector<1x128xf32> to vector<800x128xf32>
    %50 = arith.addf %47, %49 : vector<800x128xf32>
    %c0_31 = arith.constant 0 : index
    %c0_32 = arith.constant 0 : index
    %51 = vector.load %arg7[%c0_31, %c0_32] : memref<800x128xf32, #tpu.memory_space<vmem>>, vector<800x128xf32>
    tpu.vector_store %arg7[%c0_31, %c0_32], %50 {strides = array<i32>} : memref<800x128xf32, #tpu.memory_space<vmem>>, vector<800x128xf32>,
    return
  }
  func.func @transform_0(%arg0: i32) -> (i32, i32) {
    %c0_i32 = arith.constant 0 : i32
    %c0_i32_0 = arith.constant 0 : i32
    return %arg0, %c0_i32 : i32, i32
  }
  func.func @transform_1(%arg0: i32) -> (i32, i32) {
    %c1_i32 = arith.constant 1 : i32
    %0 = arith.addi %arg0, %c1_i32 : i32
    %c50_i32 = arith.constant 50 : i32
    %1 = arith.muli %0, %c50_i32 : i32
    %c0_i32 = arith.constant 0 : i32
    %c0_i32_0 = arith.constant 0 : i32
    return %1, %c0_i32 : i32, i32
  }
  func.func @transform_2(%arg0: i32) -> (i32, i32, i32) {
    %c0_i32 = arith.constant 0 : i32
    %c0_i32_0 = arith.constant 0 : i32
    %c0_i32_1 = arith.constant 0 : i32
    %c0_i32_2 = arith.constant 0 : i32
    return %c0_i32, %c0_i32_0, %c0_i32_1 : i32, i32, i32
  }
  func.func @transform_3(%arg0: i32) -> (i32, i32) {
    %c0_i32 = arith.constant 0 : i32
    %c0_i32_0 = arith.constant 0 : i32
    %c0_i32_1 = arith.constant 0 : i32
    return %c0_i32, %c0_i32_0 : i32, i32
  }
  func.func @transform_4(%arg0: i32) -> (i32, i32) {
    %c0_i32 = arith.constant 0 : i32
    %c0_i32_0 = arith.constant 0 : i32
    %c0_i32_1 = arith.constant 0 : i32
    return %c0_i32, %c0_i32_0 : i32, i32
  }
  func.func @transform_5(%arg0: i32) -> (i32, i32) {
    %c0_i32 = arith.constant 0 : i32
    %c0_i32_0 = arith.constant 0 : i32
    %c0_i32_1 = arith.constant 0 : i32
    return %c0_i32, %c0_i32_0 : i32, i32
  }
  func.func @transform_6(%arg0: i32) -> (i32, i32) {
    %c0_i32 = arith.constant 0 : i32
    %c0_i32_0 = arith.constant 0 : i32
    return %arg0, %c0_i32 : i32, i32
  }
}

</mosaic_0001>

<llo_original>
// kernel: tpu_custom_call.1
$region0: #{tpu_custom_call.1}
  #allocation0 [shape = 'u32[]', space=smem, size = 0x4, offset = 0x4, fixed_abs, tag = 'smem constant byte address 0x4 - core index']
  #allocation1 [shape = 'u32[144,128]{1,0:T(1,128)}', space=vmem, size = 0x12000, scoped, tag = 'internal scratch']
  #allocation2 [shape = 'f32[816,128]{1,0:T(8,128)}', space=vmem, size = 0x66000, scoped, tag = 'scratch operand']
  %s0 = inlined_call_operand.hbm [shape: f32[2416,128], index: 0, kind: input, shape index: {}]
  %s1 = inlined_call_operand.hbm [shape: f32[2416,128], index: 1, kind: input, shape index: {}]
  %s2 = inlined_call_operand.hbm [shape: f32[3,128,128], index: 2, kind: input, shape index: {}]
  %s3 = inlined_call_operand.hbm [shape: f32[1,128], index: 3, kind: input, shape index: {}]
  %s4 = inlined_call_operand.hbm [shape: f32[1,128], index: 4, kind: input, shape index: {}]
  %s5 = inlined_call_operand.hbm [shape: f32[1,128], index: 5, kind: input, shape index: {}]
  %s6 = inlined_call_operand.hbm [shape: f32[2400,128], index: 6, kind: output, shape index: {}]
  %s7 = sld [smem:[#allocation0]]
  $region81: #{tpu_custom_call.1} parent=0
    _
  %s9 = ssub.s32 1, %s7
  %s10 = scalar_select 0, %s9, %s7
  $region1: #{tpu_custom_call.1} parent=0
    #allocation3 [shape = 'u8[819200]{0}', space=vmem, size = 0xc8000, scoped, tag = 'input window, operand 0']
    #allocation4 [shape = 's32[2]{0}', space=sflag, size = 0x8, scoped, tag = 'scoped memory for tpu_custom_call.1']
    #allocation5 [shape = 's32[2]{0}', space=sflag, size = 0x8, scoped, tag = 'scoped memory for tpu_custom_call.1']
    #allocation6 [shape = 'u8[16384]{0}', space=vmem, size = 0x4000, scoped, tag = 'input window, operand 1']
    #allocation7 [shape = 's32[2]{0}', space=sflag, size = 0x8, scoped, tag = 'scoped memory for tpu_custom_call.1']
    #allocation8 [shape = 'u8[196608]{0}', space=vmem, size = 0x30000, scoped, tag = 'input window, operand 2, single buffered']
    #allocation9 [shape = 'u8[512]{0}', space=vmem, size = 0x400, scoped, tag = 'input window, operand 3, single buffered']
    #allocation10 [shape = 's32[1]{0}', space=sflag, size = 0x4, scoped, tag = 'scoped memory for tpu_custom_call.1']
    #allocation11 [shape = 'u8[512]{0}', space=vmem, size = 0x400, scoped, tag = 'input window, operand 4, single buffered']
    #allocation12 [shape = 'u8[512]{0}', space=vmem, size = 0x400, scoped, tag = 'input window, operand 5, single buffered']
    #allocation13 [shape = 's32[1]{0}', space=sflag, size = 0x4, scoped, tag = 'scoped memory for tpu_custom_call.1']
    #allocation14 [shape = 'u8[819200]{0}', space=vmem, size = 0xc8000, scoped, tag = 'output window, operand 0']
    %11 = vsyncpa [#allocation4], 0
    %s12 = scalar_lea.sflag [#allocation4], 1
    %13 = vsyncpa %s12, 0
    %14 = vsyncpa [#allocation7], 0
    %s15 = scalar_lea.sflag [#allocation7], 1
    %16 = vsyncpa %s15, 0
    %17 = vsyncpa [#allocation10], 0
    %18 = vsyncpa [#allocation13], 0
    %19 = vsyncpa [#allocation5], 0
    %s20 = scalar_lea.sflag [#allocation5], 1
    %21 = vsyncpa %s20, 0
    loop: start=0, step=1, limit=5
    $region2: #{tpu_custom_call.1} parent=1 // loop_pre_header
      _
    $region3: #{tpu_custom_call.1} parent=1 // loop_header
      %s23 = sphi 0, %s27
      %p24 = scmp.ge.s32.totalorder %s23, 5
      %s33 = sphi 0, %s35
      %s36 = sphi 0, %s33
      %s37 = sphi 0, %s36
      %s53 = sphi 0, %s37
      %s63 = sphi 0, %s65
      %s66 = sphi 0, %s63
      %s67 = sphi 0, %s66
      %s83 = sphi 0, %s67
      %s87 = sphi 0, %s87
      %s89 = sphi 0, %s87
      %s90 = sphi 0, %s89
      %s104 = sphi 0, %s90
      %s108 = sphi 0, %s108
      %s110 = sphi 0, %s108
      %s111 = sphi 0, %s110
      %s125 = sphi 0, %s111
      %s129 = sphi 0, %s129
      %s131 = sphi 0, %s129
      %s132 = sphi 0, %s131
      %s146 = sphi 0, %s132
      %s150 = sphi 0, %s150
      %s152 = sphi 0, %s150
      %s153 = sphi 0, %s152
      %s167 = sphi 0, %s153
      %s173 = sphi 0, %s175
      %s176 = sphi 0, %s173
      %s177 = sphi 0, %s176
      %s193 = sphi 0, %s177
    $region4: #{tpu_custom_call.1} parent=1 // loop_header_branch
      %26 = sbr.rel (%p24) target = $region8
    $region5: #{tpu_custom_call.1} parent=1 // loop_body
      %s28 = ssub.s32 %s23, 1
      %s29 = ssub.s32 %s23, 2
      %s30 = sadd.s32 %s23, 1
      %s31 = ssub.s32 %s23, %s30
      %p32 = scmp.eq.s32.totalorder %s31, 0
      %s34 = sadd.s32 %s33, 1
      %s35 = scalar_select %p32, %s33, %s34
      %p38 = pneg %p32
      %p39 = scmp.eq.s32.totalorder %s23, 2
      %p40 = por %p38, %p39
      %p41 = scmp.ne.s32.totalorder %s33, %s36
      %p42 = scmp.eq.s32.totalorder %s23, 0
      %p43 = por %p41, %p42
      %p44 = scmp.ne.s32.totalorder %s33, %s36
      %p45 = scmp.eq.s32.totalorder %s28, 2
      %p46 = por %p44, %p45
      %p47 = scmp.ne.s32.totalorder %s36, %s37
      %p48 = scmp.eq.s32.totalorder %s28, 0
      %p49 = por %p47, %p48
      %p50 = scmp.ne.s32.totalorder %s36, %s37
      %p51 = scmp.eq.s32.totalorder %s29, 2
      %p52 = por %p50, %p51
      %p54 = scmp.ne.s32.totalorder %s37, %s53
      %p55 = scmp.eq.s32.totalorder %s29, 0
      %p56 = por %p54, %p55
      %s57 = sadd.s32 %s23, 1
      %s58 = smul.u32 %s57, 50
      %s59 = sadd.s32 %s30, 1
      %s60 = smul.u32 %s59, 50
      %s61 = ssub.s32 %s58, %s60
      %p62 = scmp.eq.s32.totalorder %s61, 0
      %s64 = sadd.s32 %s63, 1
      %s65 = scalar_select %p62, %s63, %s64
      %p68 = pneg %p62
      %p69 = scmp.eq.s32.totalorder %s23, 2
      %p70 = por %p68, %p69
      %p71 = scmp.ne.s32.totalorder %s63, %s66
      %p72 = scmp.eq.s32.totalorder %s23, 0
      %p73 = por %p71, %p72
      %p74 = scmp.ne.s32.totalorder %s63, %s66
      %p75 = scmp.eq.s32.totalorder %s28, 2
      %p76 = por %p74, %p75
      %p77 = scmp.ne.s32.totalorder %s66, %s67
      %p78 = scmp.eq.s32.totalorder %s28, 0
      %p79 = por %p77, %p78
      %p80 = scmp.ne.s32.totalorder %s66, %s67
      %p81 = scmp.eq.s32.totalorder %s29, 2
      %p82 = por %p80, %p81
      %p84 = scmp.ne.s32.totalorder %s67, %s83
      %p85 = scmp.eq.s32.totalorder %s29, 0
      %p86 = por %p84, %p85
      %s88 = sadd.s32 %s87, 1
      %p91 = scmp.eq.s32.totalorder %s23, 2
      %p92 = scmp.ne.s32.totalorder %s87, %s89
      %p93 = scmp.eq.s32.totalorder %s23, 0
      %p94 = por %p92, %p93
      %p95 = scmp.ne.s32.totalorder %s87, %s89
      %p96 = scmp.eq.s32.totalorder %s28, 2
      %p97 = por %p95, %p96
      %p98 = scmp.ne.s32.totalorder %s89, %s90
      %p99 = scmp.eq.s32.totalorder %s28, 0
      %p100 = por %p98, %p99
      %p101 = scmp.ne.s32.totalorder %s89, %s90
      %p102 = scmp.eq.s32.totalorder %s29, 2
      %p103 = por %p101, %p102
      %p105 = scmp.ne.s32.totalorder %s90, %s104
      %p106 = scmp.eq.s32.totalorder %s29, 0
      %p107 = por %p105, %p106
      %s109 = sadd.s32 %s108, 1
      %p112 = scmp.eq.s32.totalorder %s23, 2
      %p113 = scmp.ne.s32.totalorder %s108, %s110
      %p114 = scmp.eq.s32.totalorder %s23, 0
      %p115 = por %p113, %p114
      %p116 = scmp.ne.s32.totalorder %s108, %s110
      %p117 = scmp.eq.s32.totalorder %s28, 2
      %p118 = por %p116, %p117
      %p119 = scmp.ne.s32.totalorder %s110, %s111
      %p120 = scmp.eq.s32.totalorder %s28, 0
      %p121 = por %p119, %p120
      %p122 = scmp.ne.s32.totalorder %s110, %s111
      %p123 = scmp.eq.s32.totalorder %s29, 2
      %p124 = por %p122, %p123
      %p126 = scmp.ne.s32.totalorder %s111, %s125
      %p127 = scmp.eq.s32.totalorder %s29, 0
      %p128 = por %p126, %p127
      %s130 = sadd.s32 %s129, 1
      %p133 = scmp.eq.s32.totalorder %s23, 2
      %p134 = scmp.ne.s32.totalorder %s129, %s131
      %p135 = scmp.eq.s32.totalorder %s23, 0
      %p136 = por %p134, %p135
      %p137 = scmp.ne.s32.totalorder %s129, %s131
      %p138 = scmp.eq.s32.totalorder %s28, 2
      %p139 = por %p137, %p138
      %p140 = scmp.ne.s32.totalorder %s131, %s132
      %p141 = scmp.eq.s32.totalorder %s28, 0
      %p142 = por %p140, %p141
      %p143 = scmp.ne.s32.totalorder %s131, %s132
      %p144 = scmp.eq.s32.totalorder %s29, 2
      %p145 = por %p143, %p144
      %p147 = scmp.ne.s32.totalorder %s132, %s146
      %p148 = scmp.eq.s32.totalorder %s29, 0
      %p149 = por %p147, %p148
      %s151 = sadd.s32 %s150, 1
      %p154 = scmp.eq.s32.totalorder %s23, 2
      %p155 = scmp.ne.s32.totalorder %s150, %s152
      %p156 = scmp.eq.s32.totalorder %s23, 0
      %p157 = por %p155, %p156
      %p158 = scmp.ne.s32.totalorder %s150, %s152
      %p159 = scmp.eq.s32.totalorder %s28, 2
      %p160 = por %p158, %p159
      %p161 = scmp.ne.s32.totalorder %s152, %s153
      %p162 = scmp.eq.s32.totalorder %s28, 0
      %p163 = por %p161, %p162
      %p164 = scmp.ne.s32.totalorder %s152, %s153
      %p165 = scmp.eq.s32.totalorder %s29, 2
      %p166 = por %p164, %p165
      %p168 = scmp.ne.s32.totalorder %s153, %s167
      %p169 = scmp.eq.s32.totalorder %s29, 0
      %p170 = por %p168, %p169
      %s171 = ssub.s32 %s23, %s30
      %p172 = scmp.eq.s32.totalorder %s171, 0
      %s174 = sadd.s32 %s173, 1
      %s175 = scalar_select %p172, %s173, %s174
      %p178 = pneg %p172
      %p179 = scmp.eq.s32.totalorder %s23, 2
      %p180 = por %p178, %p179
      %p181 = scmp.ne.s32.totalorder %s173, %s176
      %p182 = scmp.eq.s32.totalorder %s23, 0
      %p183 = por %p181, %p182
      %p184 = scmp.ne.s32.totalorder %s173, %s176
      %p185 = scmp.eq.s32.totalorder %s28, 2
      %p186 = por %p184, %p185
      %p187 = scmp.ne.s32.totalorder %s176, %s177
      %p188 = scmp.eq.s32.totalorder %s28, 0
      %p189 = por %p187, %p188
      %p190 = scmp.ne.s32.totalorder %s176, %s177
      %p191 = scmp.eq.s32.totalorder %s29, 2
      %p192 = por %p190, %p191
      %p194 = scmp.ne.s32.totalorder %s177, %s193
      %p195 = scmp.eq.s32.totalorder %s29, 0
      %p196 = por %p194, %p195
      %p197 = scmp.le.s32.totalorder 1, %s23
      %p198 = scmp.lt.s32.totalorder %s23, 4
      %p199 = pnand %p197, %p198
      %p200 = pneg %p199
      // Predicated region
      $region9: #{tpu_custom_call.1} parent=5 // pred_check
        _
      $region10: #{tpu_custom_call.1} parent=5 // pred_check_branch
        %202 = sbr.rel (%p199) target = $region12
      $region11: #{tpu_custom_call.1} parent=5 // pred_region
        %s203 = ssub.s32 %s23, 1
        // Predicated region
        $region13: #{tpu_custom_call.1} parent=11 // pred_check
          %p204 = pneg %p100
        $region14: #{tpu_custom_call.1} parent=11 // pred_check_branch
          %206 = sbr.rel (%p204) target = $region16
        $region15: #{tpu_custom_call.1} parent=11 // pred_region
          %s208 = ssub.s32 6144, 6144
          %209 = vsyncadd [#allocation7], %s208
          %s210 = sshll.u32 [#allocation8], 4
          %s211 = int_to_ptr.vmem [resolvable:$true] %s210
          %216 = dma.hbm_to_vmem [thread:$0]  %s2, 6144, %s211, [#allocation7], 128, 128, 8
        $region16: #{tpu_custom_call.1} parent=11 // pred_fallthru
          _
        // Predicated region
        $region17: #{tpu_custom_call.1} parent=11 // pred_check
          %p217 = pneg %p121
        $region18: #{tpu_custom_call.1} parent=11 // pred_check_branch
          %219 = sbr.rel (%p217) target = $region20
        $region19: #{tpu_custom_call.1} parent=11 // pred_region
          %s221 = ssub.s32 16, 16
          %222 = vsyncadd [#allocation10], %s221
          %s224 = sshll.u32 [#allocation9], 4
          %s225 = int_to_ptr.vmem [resolvable:$true] %s224
          %227 = dma.hbm_to_vmem [thread:$0]  %s3, 16, %s225, [#allocation10]
        $region20: #{tpu_custom_call.1} parent=11 // pred_fallthru
          _
        // Predicated region
        $region21: #{tpu_custom_call.1} parent=11 // pred_check
          %p228 = pneg %p142
        $region22: #{tpu_custom_call.1} parent=11 // pred_check_branch
          %230 = sbr.rel (%p228) target = $region24
        $region23: #{tpu_custom_call.1} parent=11 // pred_region
          %s232 = ssub.s32 16, 16
          %233 = vsyncadd [#allocation10], %s232
          %s235 = sshll.u32 [#allocation11], 4
          %s236 = int_to_ptr.vmem [resolvable:$true] %s235
          %238 = dma.hbm_to_vmem [thread:$0]  %s4, 16, %s236, [#allocation10]
        $region24: #{tpu_custom_call.1} parent=11 // pred_fallthru
          _
        // Predicated region
        $region25: #{tpu_custom_call.1} parent=11 // pred_check
          %p239 = pneg %p163
        $region26: #{tpu_custom_call.1} parent=11 // pred_check_branch
          %241 = sbr.rel (%p239) target = $region28
        $region27: #{tpu_custom_call.1} parent=11 // pred_region
          %s243 = ssub.s32 16, 16
          %244 = vsyncadd [#allocation13], %s243
          %s246 = sshll.u32 [#allocation12], 4
          %s247 = int_to_ptr.vmem [resolvable:$true] %s246
          %249 = dma.hbm_to_vmem [thread:$0]  %s5, 16, %s247, [#allocation13]
        $region28: #{tpu_custom_call.1} parent=11 // pred_fallthru
          _
      $region12: #{tpu_custom_call.1} parent=5 // pred_fallthru
        _
      %p250 = scmp.lt.s32.totalorder %s23, 3
      // Predicated region
      $region29: #{tpu_custom_call.1} parent=5 // pred_check
        %p251 = pneg %p250
      $region30: #{tpu_custom_call.1} parent=5 // pred_check_branch
        %253 = sbr.rel (%p251) target = $region32
      $region31: #{tpu_custom_call.1} parent=5 // pred_region
        // Predicated region
        $region33: #{tpu_custom_call.1} parent=31 // pred_check
          %p254 = pneg %p43
        $region34: #{tpu_custom_call.1} parent=31 // pred_check_branch
          %256 = sbr.rel (%p254) target = $region36
        $region35: #{tpu_custom_call.1} parent=31 // pred_region
          %s257 = sand.u32 %s33, 1
          %s258 = scalar_lea.sflag [#allocation4], %s257
          %s259 = sand.u32 %s33, 1
          %s260 = smul.addr %s259, 800
          %s261 = scalar_lea.vmem [#allocation3], %s260
          %s262 = smul.u32 100, %s23
          %s263 = ssub.s32 302, %s262
          %p264 = scmp.lt.s32.totalorder %s263, 100
          %s265 = scalar_select %p264, %s263, 100
          %s266 = smul.u32 128, %s265
          %s268 = ssub.s32 12800, %s266
          %269 = vsyncadd %s258, %s268
          %p270 = scmp.ne.s32.totalorder 0, %s266
          %s271 = smul.addr %s262, 128
          %s272 = scalar_lea.hbm %s0, %s271
          %s273 = smul.u32 8, %s265
          %s274 = sshll.u32 %s261, 4
          %s275 = int_to_ptr.vmem [resolvable:$true] %s274
          %s276 = sshll.u32 %s273, 4
          %280 = dma.hbm_to_vmem [thread:$0]  (%p270), %s272, %s276, %s275, %s258, 128, 128, 8
        $region36: #{tpu_custom_call.1} parent=31 // pred_fallthru
          _
        // Predicated region
        $region37: #{tpu_custom_call.1} parent=31 // pred_check
          %p281 = pneg %p73
        $region38: #{tpu_custom_call.1} parent=31 // pred_check_branch
          %283 = sbr.rel (%p281) target = $region40
        $region39: #{tpu_custom_call.1} parent=31 // pred_region
          %s284 = sand.u32 %s23, 1
          %s285 = scalar_lea.sflag [#allocation7], %s284
          %s286 = sand.u32 %s63, 1
          %s287 = smul.addr %s286, 16
          %s288 = scalar_lea.vmem [#allocation6], %s287
          %s289 = sadd.s32 %s23, 1
          %s290 = smul.u32 %s289, 50
          %s291 = smul.u32 2, %s290
          %s293 = ssub.s32 256, 256
          %294 = vsyncadd %s285, %s293
          %s295 = smul.addr %s291, 128
          %s296 = scalar_lea.hbm %s1, %s295
          %s297 = sshll.u32 %s288, 4
          %s298 = int_to_ptr.vmem [resolvable:$true] %s297
          %303 = dma.hbm_to_vmem [thread:$0]  %s296, 256, %s298, %s285, 128, 128, 8
        $region40: #{tpu_custom_call.1} parent=31 // pred_fallthru
          _
      $region32: #{tpu_custom_call.1} parent=5 // pred_fallthru
        _
      %p304 = scmp.le.s32.totalorder 1, %s23
      %p305 = scmp.lt.s32.totalorder %s23, 4
      %p306 = pnand %p304, %p305
      %p307 = pneg %p306
      // Predicated region
      $region41: #{tpu_custom_call.1} parent=5 // pred_check
        _
      $region42: #{tpu_custom_call.1} parent=5 // pred_check_branch
        %309 = sbr.rel (%p306) target = $region44
      $region43: #{tpu_custom_call.1} parent=5 // pred_region
        %s310 = ssub.s32 %s23, 1
        %s311 = sand.u32 %s36, 1
        %s312 = scalar_lea.sflag [#allocation4], %s311
        %s313 = sand.u32 %s36, 1
        %s314 = smul.addr %s313, 800
        %s315 = scalar_lea.vmem [#allocation3], %s314
        // Predicated region
        $region45: #{tpu_custom_call.1} parent=43 // pred_check
          %p316 = pneg %p49
        $region46: #{tpu_custom_call.1} parent=43 // pred_check_branch
          %318 = sbr.rel (%p316) target = $region48
        $region47: #{tpu_custom_call.1} parent=43 // pred_region
          %319 = dma.done %s312, 12800
        $region48: #{tpu_custom_call.1} parent=43 // pred_fallthru
          _
        %s320 = sand.u32 %s28, 1
        %s321 = scalar_lea.sflag [#allocation7], %s320
        %s322 = sand.u32 %s66, 1
        %s323 = smul.addr %s322, 16
        %s324 = scalar_lea.vmem [#allocation6], %s323
        // Predicated region
        $region49: #{tpu_custom_call.1} parent=43 // pred_check
          %p325 = pneg %p79
        $region50: #{tpu_custom_call.1} parent=43 // pred_check_branch
          %327 = sbr.rel (%p325) target = $region52
        $region51: #{tpu_custom_call.1} parent=43 // pred_region
          %328 = dma.done %s321, 256
        $region52: #{tpu_custom_call.1} parent=43 // pred_fallthru
          _
        // Predicated region
        $region53: #{tpu_custom_call.1} parent=43 // pred_check
          %p329 = pneg %p100
        $region54: #{tpu_custom_call.1} parent=43 // pred_check_branch
          %331 = sbr.rel (%p329) target = $region56
        $region55: #{tpu_custom_call.1} parent=43 // pred_region
          %332 = dma.done [#allocation7], 6144
        $region56: #{tpu_custom_call.1} parent=43 // pred_fallthru
          _
        // Predicated region
        $region57: #{tpu_custom_call.1} parent=43 // pred_check
          %p333 = pneg %p121
        $region58: #{tpu_custom_call.1} parent=43 // pred_check_branch
          %335 = sbr.rel (%p333) target = $region60
        $region59: #{tpu_custom_call.1} parent=43 // pred_region
          %336 = dma.done [#allocation10], 16
        $region60: #{tpu_custom_call.1} parent=43 // pred_fallthru
          _
        // Predicated region
        $region61: #{tpu_custom_call.1} parent=43 // pred_check
          %p337 = pneg %p142
        $region62: #{tpu_custom_call.1} parent=43 // pred_check_branch
          %339 = sbr.rel (%p337) target = $region64
        $region63: #{tpu_custom_call.1} parent=43 // pred_region
          %340 = dma.done [#allocation10], 16
        $region64: #{tpu_custom_call.1} parent=43 // pred_fallthru
          _
        // Predicated region
        $region65: #{tpu_custom_call.1} parent=43 // pred_check
          %p341 = pneg %p163
        $region66: #{tpu_custom_call.1} parent=43 // pred_check_branch
          %343 = sbr.rel (%p341) target = $region68
        $region67: #{tpu_custom_call.1} parent=43 // pred_region
          %344 = dma.done [#allocation13], 16
        $region68: #{tpu_custom_call.1} parent=43 // pred_fallthru
          _
        %s345 = sand.u32 %s36, 1
        %s346 = scalar_lea.sflag [#allocation4], %s345
        %s347 = sand.u32 %s36, 1
        %s348 = smul.addr %s347, 800
        %s349 = scalar_lea.vmem [#allocation3], %s348
        %p350 = pneg %p49
        %p351 = pneg %p46
        %s352 = sand.u32 %s28, 1
        %s353 = scalar_lea.sflag [#allocation7], %s352
        %s354 = sand.u32 %s66, 1
        %s355 = smul.addr %s354, 16
        %s356 = scalar_lea.vmem [#allocation6], %s355
        %p357 = pneg %p79
        %p358 = pneg %p76
        %p359 = pneg %p100
        %p360 = pneg %p97
        %p361 = pneg %p121
        %p362 = pneg %p118
        %p363 = pneg %p142
        %p364 = pneg %p139
        %p365 = pneg %p163
        %p366 = pneg %p160
        %p367 = pneg %p189
        %p368 = pneg %p186
        %s369 = sand.u32 %s176, 1
        %s370 = scalar_lea.sflag [#allocation5], %s369
        %s371 = sand.u32 %s176, 1
        %s372 = smul.addr %s371, 800
        %s373 = scalar_lea.vmem [#allocation14], %s372
        %s374 = smul.u32 100, %s28
        %s375 = ssub.s32 302, %s374
        %p376 = scmp.lt.s32.totalorder %s375, 100
        %s377 = scalar_select %p376, %s375, 100
        %s378 = smul.u32 128, %s377
        %s379 = sadd.s32 %s28, 1
        %s380 = smul.u32 %s379, 50
        %s381 = smul.u32 2, %s380
        %s382 = smul.u32 100, %s28
        %v383 = vld [vmem:[%s315] sm:$0xff]
        %v384 = vld [vmem:[%s315 + $0x8] sm:$0xff]
        %v385 = vld [vmem:[%s315 + $0x10] sm:$0xff]
        %v386 = vld [vmem:[%s315 + $0x18] sm:$0xff]
        %v387 = vld [vmem:[%s315 + $0x20] sm:$0xff]
        %v388 = vld [vmem:[%s315 + $0x28] sm:$0xff]
        %v389 = vld [vmem:[%s315 + $0x30] sm:$0xff]
        %v390 = vld [vmem:[%s315 + $0x38] sm:$0xff]
        %v391 = vld [vmem:[%s315 + $0x40] sm:$0xff]
        %v392 = vld [vmem:[%s315 + $0x48] sm:$0xff]
        %v393 = vld [vmem:[%s315 + $0x50] sm:$0xff]
        %v394 = vld [vmem:[%s315 + $0x58] sm:$0xff]
        %v395 = vld [vmem:[%s315 + $0x60] sm:$0xff]
        %v396 = vld [vmem:[%s315 + $0x68] sm:$0xff]
        %v397 = vld [vmem:[%s315 + $0x70] sm:$0xff]
        %v398 = vld [vmem:[%s315 + $0x78] sm:$0xff]
        %v399 = vld [vmem:[%s315 + $0x80] sm:$0xff]
        %v400 = vld [vmem:[%s315 + $0x88] sm:$0xff]
        %v401 = vld [vmem:[%s315 + $0x90] sm:$0xff]
        %v402 = vld [vmem:[%s315 + $0x98] sm:$0xff]
        %v403 = vld [vmem:[%s315 + $0xa0] sm:$0xff]
        %v404 = vld [vmem:[%s315 + $0xa8] sm:$0xff]
        %v405 = vld [vmem:[%s315 + $0xb0] sm:$0xff]
        %v406 = vld [vmem:[%s315 + $0xb8] sm:$0xff]
        %v407 = vld [vmem:[%s315 + $0xc0] sm:$0xff]
        %v408 = vld [vmem:[%s315 + $0xc8] sm:$0xff]
        %v409 = vld [vmem:[%s315 + $0xd0] sm:$0xff]
        %v410 = vld [vmem:[%s315 + $0xd8] sm:$0xff]
        %v411 = vld [vmem:[%s315 + $0xe0] sm:$0xff]
        %v412 = vld [vmem:[%s315 + $0xe8] sm:$0xff]
        %v413 = vld [vmem:[%s315 + $0xf0] sm:$0xff]
        %v414 = vld [vmem:[%s315 + $0xf8] sm:$0xff]
        %v415 = vld [vmem:[%s315 + $0x100] sm:$0xff]
        %v416 = vld [vmem:[%s315 + $0x108] sm:$0xff]
        %v417 = vld [vmem:[%s315 + $0x110] sm:$0xff]
        %v418 = vld [vmem:[%s315 + $0x118] sm:$0xff]
        %v419 = vld [vmem:[%s315 + $0x120] sm:$0xff]
        %v420 = vld [vmem:[%s315 + $0x128] sm:$0xff]
        %v421 = vld [vmem:[%s315 + $0x130] sm:$0xff]
        %v422 = vld [vmem:[%s315 + $0x138] sm:$0xff]
        %v423 = vld [vmem:[%s315 + $0x140] sm:$0xff]
        %v424 = vld [vmem:[%s315 + $0x148] sm:$0xff]
        %v425 = vld [vmem:[%s315 + $0x150] sm:$0xff]
        %v426 = vld [vmem:[%s315 + $0x158] sm:$0xff]
        %v427 = vld [vmem:[%s315 + $0x160] sm:$0xff]
        %v428 = vld [vmem:[%s315 + $0x168] sm:$0xff]
        %v429 = vld [vmem:[%s315 + $0x170] sm:$0xff]
        %v430 = vld [vmem:[%s315 + $0x178] sm:$0xff]
        %v431 = vld [vmem:[%s315 + $0x180] sm:$0xff]
        %v432 = vld [vmem:[%s315 + $0x188] sm:$0xff]
        %v433 = vld [vmem:[%s315 + $0x190] sm:$0xff]
        %v434 = vld [vmem:[%s315 + $0x198] sm:$0xff]
        %v435 = vld [vmem:[%s315 + $0x1a0] sm:$0xff]
        %v436 = vld [vmem:[%s315 + $0x1a8] sm:$0xff]
        %v437 = vld [vmem:[%s315 + $0x1b0] sm:$0xff]
        %v438 = vld [vmem:[%s315 + $0x1b8] sm:$0xff]
        %v439 = vld [vmem:[%s315 + $0x1c0] sm:$0xff]
        %v440 = vld [vmem:[%s315 + $0x1c8] sm:$0xff]
        %v441 = vld [vmem:[%s315 + $0x1d0] sm:$0xff]
        %v442 = vld [vmem:[%s315 + $0x1d8] sm:$0xff]
        %v443 = vld [vmem:[%s315 + $0x1e0] sm:$0xff]
        %v444 = vld [vmem:[%s315 + $0x1e8] sm:$0xff]
        %v445 = vld [vmem:[%s315 + $0x1f0] sm:$0xff]
        %v446 = vld [vmem:[%s315 + $0x1f8] sm:$0xff]
        %v447 = vld [vmem:[%s315 + $0x200] sm:$0xff]
        %v448 = vld [vmem:[%s315 + $0x208] sm:$0xff]
        %v449 = vld [vmem:[%s315 + $0x210] sm:$0xff]
        %v450 = vld [vmem:[%s315 + $0x218] sm:$0xff]
        %v451 = vld [vmem:[%s315 + $0x220] sm:$0xff]
        %v452 = vld [vmem:[%s315 + $0x228] sm:$0xff]
        %v453 = vld [vmem:[%s315 + $0x230] sm:$0xff]
        %v454 = vld [vmem:[%s315 + $0x238] sm:$0xff]
        %v455 = vld [vmem:[%s315 + $0x240] sm:$0xff]
        %v456 = vld [vmem:[%s315 + $0x248] sm:$0xff]
        %v457 = vld [vmem:[%s315 + $0x250] sm:$0xff]
        %v458 = vld [vmem:[%s315 + $0x258] sm:$0xff]
        %v459 = vld [vmem:[%s315 + $0x260] sm:$0xff]
        %v460 = vld [vmem:[%s315 + $0x268] sm:$0xff]
        %v461 = vld [vmem:[%s315 + $0x270] sm:$0xff]
        %v462 = vld [vmem:[%s315 + $0x278] sm:$0xff]
        %v463 = vld [vmem:[%s315 + $0x280] sm:$0xff]
        %v464 = vld [vmem:[%s315 + $0x288] sm:$0xff]
        %v465 = vld [vmem:[%s315 + $0x290] sm:$0xff]
        %v466 = vld [vmem:[%s315 + $0x298] sm:$0xff]
        %v467 = vld [vmem:[%s315 + $0x2a0] sm:$0xff]
        %v468 = vld [vmem:[%s315 + $0x2a8] sm:$0xff]
        %v469 = vld [vmem:[%s315 + $0x2b0] sm:$0xff]
        %v470 = vld [vmem:[%s315 + $0x2b8] sm:$0xff]
        %v471 = vld [vmem:[%s315 + $0x2c0] sm:$0xff]
        %v472 = vld [vmem:[%s315 + $0x2c8] sm:$0xff]
        %v473 = vld [vmem:[%s315 + $0x2d0] sm:$0xff]
        %v474 = vld [vmem:[%s315 + $0x2d8] sm:$0xff]
        %v475 = vld [vmem:[%s315 + $0x2e0] sm:$0xff]
        %v476 = vld [vmem:[%s315 + $0x2e8] sm:$0xff]
        %v477 = vld [vmem:[%s315 + $0x2f0] sm:$0xff]
        %v478 = vld [vmem:[%s315 + $0x2f8] sm:$0xff]
        %v479 = vld [vmem:[%s315 + $0x300] sm:$0xff]
        %v480 = vld [vmem:[%s315 + $0x308] sm:$0xff]
        %v481 = vld [vmem:[%s315 + $0x310] sm:$0xff]
        %v482 = vld [vmem:[%s315 + $0x318] sm:$0xff]
        %483 = vst [vmem:[#allocation2] sm:$0xff] %v383
        %484 = vst [vmem:[#allocation2 + $0x8] sm:$0xff] %v384
        %485 = vst [vmem:[#allocation2 + $0x10] sm:$0xff] %v385
        %486 = vst [vmem:[#allocation2 + $0x18] sm:$0xff] %v386
        %487 = vst [vmem:[#allocation2 + $0x20] sm:$0xff] %v387
        %488 = vst [vmem:[#allocation2 + $0x28] sm:$0xff] %v388
        %489 = vst [vmem:[#allocation2 + $0x30] sm:$0xff] %v389
        %490 = vst [vmem:[#allocation2 + $0x38] sm:$0xff] %v390
        %491 = vst [vmem:[#allocation2 + $0x40] sm:$0xff] %v391
        %492 = vst [vmem:[#allocation2 + $0x48] sm:$0xff] %v392
        %493 = vst [vmem:[#allocation2 + $0x50] sm:$0xff] %v393
        %494 = vst [vmem:[#allocation2 + $0x58] sm:$0xff] %v394
        %495 = vst [vmem:[#allocation2 + $0x60] sm:$0xff] %v395
        %496 = vst [vmem:[#allocation2 + $0x68] sm:$0xff] %v396
        %497 = vst [vmem:[#allocation2 + $0x70] sm:$0xff] %v397
        %498 = vst [vmem:[#allocation2 + $0x78] sm:$0xff] %v398
        %499 = vst [vmem:[#allocation2 + $0x80] sm:$0xff] %v399
        %500 = vst [vmem:[#allocation2 + $0x88] sm:$0xff] %v400
        %501 = vst [vmem:[#allocation2 + $0x90] sm:$0xff] %v401
        %502 = vst [vmem:[#allocation2 + $0x98] sm:$0xff] %v402
        %503 = vst [vmem:[#allocation2 + $0xa0] sm:$0xff] %v403
        %504 = vst [vmem:[#allocation2 + $0xa8] sm:$0xff] %v404
        %505 = vst [vmem:[#allocation2 + $0xb0] sm:$0xff] %v405
        %506 = vst [vmem:[#allocation2 + $0xb8] sm:$0xff] %v406
        %507 = vst [vmem:[#allocation2 + $0xc0] sm:$0xff] %v407
        %508 = vst [vmem:[#allocation2 + $0xc8] sm:$0xff] %v408
        %509 = vst [vmem:[#allocation2 + $0xd0] sm:$0xff] %v409
        %510 = vst [vmem:[#allocation2 + $0xd8] sm:$0xff] %v410
        %511 = vst [vmem:[#allocation2 + $0xe0] sm:$0xff] %v411
        %512 = vst [vmem:[#allocation2 + $0xe8] sm:$0xff] %v412
        %513 = vst [vmem:[#allocation2 + $0xf0] sm:$0xff] %v413
        %514 = vst [vmem:[#allocation2 + $0xf8] sm:$0xff] %v414
        %515 = vst [vmem:[#allocation2 + $0x100] sm:$0xff] %v415
        %516 = vst [vmem:[#allocation2 + $0x108] sm:$0xff] %v416
        %517 = vst [vmem:[#allocation2 + $0x110] sm:$0xff] %v417
        %518 = vst [vmem:[#allocation2 + $0x118] sm:$0xff] %v418
        %519 = vst [vmem:[#allocation2 + $0x120] sm:$0xff] %v419
        %520 = vst [vmem:[#allocation2 + $0x128] sm:$0xff] %v420
        %521 = vst [vmem:[#allocation2 + $0x130] sm:$0xff] %v421
        %522 = vst [vmem:[#allocation2 + $0x138] sm:$0xff] %v422
        %523 = vst [vmem:[#allocation2 + $0x140] sm:$0xff] %v423
        %524 = vst [vmem:[#allocation2 + $0x148] sm:$0xff] %v424
        %525 = vst [vmem:[#allocation2 + $0x150] sm:$0xff] %v425
        %526 = vst [vmem:[#allocation2 + $0x158] sm:$0xff] %v426
        %527 = vst [vmem:[#allocation2 + $0x160] sm:$0xff] %v427
        %528 = vst [vmem:[#allocation2 + $0x168] sm:$0xff] %v428
        %529 = vst [vmem:[#allocation2 + $0x170] sm:$0xff] %v429
        %530 = vst [vmem:[#allocation2 + $0x178] sm:$0xff] %v430
        %531 = vst [vmem:[#allocation2 + $0x180] sm:$0xff] %v431
        %532 = vst [vmem:[#allocation2 + $0x188] sm:$0xff] %v432
        %533 = vst [vmem:[#allocation2 + $0x190] sm:$0xff] %v433
        %534 = vst [vmem:[#allocation2 + $0x198] sm:$0xff] %v434
        %535 = vst [vmem:[#allocation2 + $0x1a0] sm:$0xff] %v435
        %536 = vst [vmem:[#allocation2 + $0x1a8] sm:$0xff] %v436
        %537 = vst [vmem:[#allocation2 + $0x1b0] sm:$0xff] %v437
        %538 = vst [vmem:[#allocation2 + $0x1b8] sm:$0xff] %v438
        %539 = vst [vmem:[#allocation2 + $0x1c0] sm:$0xff] %v439
        %540 = vst [vmem:[#allocation2 + $0x1c8] sm:$0xff] %v440
        %541 = vst [vmem:[#allocation2 + $0x1d0] sm:$0xff] %v441
        %542 = vst [vmem:[#allocation2 + $0x1d8] sm:$0xff] %v442
        %543 = vst [vmem:[#allocation2 + $0x1e0] sm:$0xff] %v443
        %544 = vst [vmem:[#allocation2 + $0x1e8] sm:$0xff] %v444
        %545 = vst [vmem:[#allocation2 + $0x1f0] sm:$0xff] %v445
        %546 = vst [vmem:[#allocation2 + $0x1f8] sm:$0xff] %v446
        %547 = vst [vmem:[#allocation2 + $0x200] sm:$0xff] %v447
        %548 = vst [vmem:[#allocation2 + $0x208] sm:$0xff] %v448
        %549 = vst [vmem:[#allocation2 + $0x210] sm:$0xff] %v449
        %550 = vst [vmem:[#allocation2 + $0x218] sm:$0xff] %v450
        %551 = vst [vmem:[#allocation2 + $0x220] sm:$0xff] %v451
        %552 = vst [vmem:[#allocation2 + $0x228] sm:$0xff] %v452
        %553 = vst [vmem:[#allocation2 + $0x230] sm:$0xff] %v453
        %554 = vst [vmem:[#allocation2 + $0x238] sm:$0xff] %v454
        %555 = vst [vmem:[#allocation2 + $0x240] sm:$0xff] %v455
        %556 = vst [vmem:[#allocation2 + $0x248] sm:$0xff] %v456
        %557 = vst [vmem:[#allocation2 + $0x250] sm:$0xff] %v457
        %558 = vst [vmem:[#allocation2 + $0x258] sm:$0xff] %v458
        %559 = vst [vmem:[#allocation2 + $0x260] sm:$0xff] %v459
        %560 = vst [vmem:[#allocation2 + $0x268] sm:$0xff] %v460
        %561 = vst [vmem:[#allocation2 + $0x270] sm:$0xff] %v461
        %562 = vst [vmem:[#allocation2 + $0x278] sm:$0xff] %v462
        %563 = vst [vmem:[#allocation2 + $0x280] sm:$0xff] %v463
        %564 = vst [vmem:[#allocation2 + $0x288] sm:$0xff] %v464
        %565 = vst [vmem:[#allocation2 + $0x290] sm:$0xff] %v465
        %566 = vst [vmem:[#allocation2 + $0x298] sm:$0xff] %v466
        %567 = vst [vmem:[#allocation2 + $0x2a0] sm:$0xff] %v467
        %568 = vst [vmem:[#allocation2 + $0x2a8] sm:$0xff] %v468
        %569 = vst [vmem:[#allocation2 + $0x2b0] sm:$0xff] %v469
        %570 = vst [vmem:[#allocation2 + $0x2b8] sm:$0xff] %v470
        %571 = vst [vmem:[#allocation2 + $0x2c0] sm:$0xff] %v471
        %572 = vst [vmem:[#allocation2 + $0x2c8] sm:$0xff] %v472
        %573 = vst [vmem:[#allocation2 + $0x2d0] sm:$0xff] %v473
        %574 = vst [vmem:[#allocation2 + $0x2d8] sm:$0xff] %v474
        %575 = vst [vmem:[#allocation2 + $0x2e0] sm:$0xff] %v475
        %576 = vst [vmem:[#allocation2 + $0x2e8] sm:$0xff] %v476
        %577 = vst [vmem:[#allocation2 + $0x2f0] sm:$0xff] %v477
        %578 = vst [vmem:[#allocation2 + $0x2f8] sm:$0xff] %v478
        %579 = vst [vmem:[#allocation2 + $0x300] sm:$0xff] %v479
        %580 = vst [vmem:[#allocation2 + $0x308] sm:$0xff] %v480
        %581 = vst [vmem:[#allocation2 + $0x310] sm:$0xff] %v481
        %582 = vst [vmem:[#allocation2 + $0x318] sm:$0xff] %v482
        %v583 = vld [vmem:[%s324] sm:$0xff]
        %v584 = vld [vmem:[%s324 + $0x8] sm:$0xff]
        %585 = vst [vmem:[#allocation2 + $0x320] sm:$0xff] %v583
        %586 = vst [vmem:[#allocation2 + $0x328] sm:$0xff] %v584
        %v587 = vld [vmem:[%s315] sm:$0xff]
        %v588 = vld [vmem:[%s315 + $0x8] sm:$0xff]
        %v589 = vld [vmem:[%s315 + $0x10] sm:$0xff]
        %v590 = vld [vmem:[%s315 + $0x18] sm:$0xff]
        %v591 = vld [vmem:[%s315 + $0x20] sm:$0xff]
        %v592 = vld [vmem:[%s315 + $0x28] sm:$0xff]
        %v593 = vld [vmem:[%s315 + $0x30] sm:$0xff]
        %v594 = vld [vmem:[%s315 + $0x38] sm:$0xff]
        %v595 = vld [vmem:[%s315 + $0x40] sm:$0xff]
        %v596 = vld [vmem:[%s315 + $0x48] sm:$0xff]
        %v597 = vld [vmem:[%s315 + $0x50] sm:$0xff]
        %v598 = vld [vmem:[%s315 + $0x58] sm:$0xff]
        %v599 = vld [vmem:[%s315 + $0x60] sm:$0xff]
        %v600 = vld [vmem:[%s315 + $0x68] sm:$0xff]
        %v601 = vld [vmem:[%s315 + $0x70] sm:$0xff]
        %v602 = vld [vmem:[%s315 + $0x78] sm:$0xff]
        %v603 = vld [vmem:[%s315 + $0x80] sm:$0xff]
        %v604 = vld [vmem:[%s315 + $0x88] sm:$0xff]
        %v605 = vld [vmem:[%s315 + $0x90] sm:$0xff]
        %v606 = vld [vmem:[%s315 + $0x98] sm:$0xff]
        %v607 = vld [vmem:[%s315 + $0xa0] sm:$0xff]
        %v608 = vld [vmem:[%s315 + $0xa8] sm:$0xff]
        %v609 = vld [vmem:[%s315 + $0xb0] sm:$0xff]
        %v610 = vld [vmem:[%s315 + $0xb8] sm:$0xff]
        %v611 = vld [vmem:[%s315 + $0xc0] sm:$0xff]
        %v612 = vld [vmem:[%s315 + $0xc8] sm:$0xff]
        %v613 = vld [vmem:[%s315 + $0xd0] sm:$0xff]
        %v614 = vld [vmem:[%s315 + $0xd8] sm:$0xff]
        %v615 = vld [vmem:[%s315 + $0xe0] sm:$0xff]
        %v616 = vld [vmem:[%s315 + $0xe8] sm:$0xff]
        %v617 = vld [vmem:[%s315 + $0xf0] sm:$0xff]
        %v618 = vld [vmem:[%s315 + $0xf8] sm:$0xff]
        %v619 = vld [vmem:[%s315 + $0x100] sm:$0xff]
        %v620 = vld [vmem:[%s315 + $0x108] sm:$0xff]
        %v621 = vld [vmem:[%s315 + $0x110] sm:$0xff]
        %v622 = vld [vmem:[%s315 + $0x118] sm:$0xff]
        %v623 = vld [vmem:[%s315 + $0x120] sm:$0xff]
        %v624 = vld [vmem:[%s315 + $0x128] sm:$0xff]
        %v625 = vld [vmem:[%s315 + $0x130] sm:$0xff]
        %v626 = vld [vmem:[%s315 + $0x138] sm:$0xff]
        %v627 = vld [vmem:[%s315 + $0x140] sm:$0xff]
        %v628 = vld [vmem:[%s315 + $0x148] sm:$0xff]
        %v629 = vld [vmem:[%s315 + $0x150] sm:$0xff]
        %v630 = vld [vmem:[%s315 + $0x158] sm:$0xff]
        %v631 = vld [vmem:[%s315 + $0x160] sm:$0xff]
        %v632 = vld [vmem:[%s315 + $0x168] sm:$0xff]
        %v633 = vld [vmem:[%s315 + $0x170] sm:$0xff]
        %v634 = vld [vmem:[%s315 + $0x178] sm:$0xff]
        %v635 = vld [vmem:[%s315 + $0x180] sm:$0xff]
        %v636 = vld [vmem:[%s315 + $0x188] sm:$0xff]
        %v637 = vld [vmem:[%s315 + $0x190] sm:$0xff]
        %v638 = vld [vmem:[%s315 + $0x198] sm:$0xff]
        %v639 = vld [vmem:[%s315 + $0x1a0] sm:$0xff]
        %v640 = vld [vmem:[%s315 + $0x1a8] sm:$0xff]
        %v641 = vld [vmem:[%s315 + $0x1b0] sm:$0xff]
        %v642 = vld [vmem:[%s315 + $0x1b8] sm:$0xff]
        %v643 = vld [vmem:[%s315 + $0x1c0] sm:$0xff]
        %v644 = vld [vmem:[%s315 + $0x1c8] sm:$0xff]
        %v645 = vld [vmem:[%s315 + $0x1d0] sm:$0xff]
        %v646 = vld [vmem:[%s315 + $0x1d8] sm:$0xff]
        %v647 = vld [vmem:[%s315 + $0x1e0] sm:$0xff]
        %v648 = vld [vmem:[%s315 + $0x1e8] sm:$0xff]
        %v649 = vld [vmem:[%s315 + $0x1f0] sm:$0xff]
        %v650 = vld [vmem:[%s315 + $0x1f8] sm:$0xff]
        %v651 = vld [vmem:[%s315 + $0x200] sm:$0xff]
        %v652 = vld [vmem:[%s315 + $0x208] sm:$0xff]
        %v653 = vld [vmem:[%s315 + $0x210] sm:$0xff]
        %v654 = vld [vmem:[%s315 + $0x218] sm:$0xff]
        %v655 = vld [vmem:[%s315 + $0x220] sm:$0xff]
        %v656 = vld [vmem:[%s315 + $0x228] sm:$0xff]
        %v657 = vld [vmem:[%s315 + $0x230] sm:$0xff]
        %v658 = vld [vmem:[%s315 + $0x238] sm:$0xff]
        %v659 = vld [vmem:[%s315 + $0x240] sm:$0xff]
        %v660 = vld [vmem:[%s315 + $0x248] sm:$0xff]
        %v661 = vld [vmem:[%s315 + $0x250] sm:$0xff]
        %v662 = vld [vmem:[%s315 + $0x258] sm:$0xff]
        %v663 = vld [vmem:[%s315 + $0x260] sm:$0xff]
        %v664 = vld [vmem:[%s315 + $0x268] sm:$0xff]
        %v665 = vld [vmem:[%s315 + $0x270] sm:$0xff]
        %v666 = vld [vmem:[%s315 + $0x278] sm:$0xff]
        %v667 = vld [vmem:[%s315 + $0x280] sm:$0xff]
        %v668 = vld [vmem:[%s315 + $0x288] sm:$0xff]
        %v669 = vld [vmem:[%s315 + $0x290] sm:$0xff]
        %v670 = vld [vmem:[%s315 + $0x298] sm:$0xff]
        %v671 = vld [vmem:[%s315 + $0x2a0] sm:$0xff]
        %v672 = vld [vmem:[%s315 + $0x2a8] sm:$0xff]
        %v673 = vld [vmem:[%s315 + $0x2b0] sm:$0xff]
        %v674 = vld [vmem:[%s315 + $0x2b8] sm:$0xff]
        %v675 = vld [vmem:[%s315 + $0x2c0] sm:$0xff]
        %v676 = vld [vmem:[%s315 + $0x2c8] sm:$0xff]
        %v677 = vld [vmem:[%s315 + $0x2d0] sm:$0xff]
        %v678 = vld [vmem:[%s315 + $0x2d8] sm:$0xff]
        %v679 = vld [vmem:[%s315 + $0x2e0] sm:$0xff]
        %v680 = vld [vmem:[%s315 + $0x2e8] sm:$0xff]
        %v681 = vld [vmem:[%s315 + $0x2f0] sm:$0xff]
        %v682 = vld [vmem:[%s315 + $0x2f8] sm:$0xff]
        %v683 = vld [vmem:[%s315 + $0x300] sm:$0xff]
        %v684 = vld [vmem:[%s315 + $0x308] sm:$0xff]
        %v685 = vld [vmem:[%s315 + $0x310] sm:$0xff]
        %v686 = vld [vmem:[%s315 + $0x318] sm:$0xff]
        %v687 = vld [vmem:[#allocation8] sm:$0xff]
        %v688 = vld [vmem:[#allocation8 + $0x8] sm:$0xff]
        %v689 = vld [vmem:[#allocation8 + $0x10] sm:$0xff]
        %v690 = vld [vmem:[#allocation8 + $0x18] sm:$0xff]
        %v691 = vld [vmem:[#allocation8 + $0x20] sm:$0xff]
        %v692 = vld [vmem:[#allocation8 + $0x28] sm:$0xff]
        %v693 = vld [vmem:[#allocation8 + $0x30] sm:$0xff]
        %v694 = vld [vmem:[#allocation8 + $0x38] sm:$0xff]
        %v695 = vld [vmem:[#allocation8 + $0x40] sm:$0xff]
        %v696 = vld [vmem:[#allocation8 + $0x48] sm:$0xff]
        %v697 = vld [vmem:[#allocation8 + $0x50] sm:$0xff]
        %v698 = vld [vmem:[#allocation8 + $0x58] sm:$0xff]
        %v699 = vld [vmem:[#allocation8 + $0x60] sm:$0xff]
        %v700 = vld [vmem:[#allocation8 + $0x68] sm:$0xff]
        %v701 = vld [vmem:[#allocation8 + $0x70] sm:$0xff]
        %v702 = vld [vmem:[#allocation8 + $0x78] sm:$0xff]
        %v703 = vld [vmem:[#allocation9] sm:$0x1]
        %v705 = vlaneseq
        %v706 = vshrl.u32 %v705, 7
        %v707 = vsub.s32 0, %v706
        %v708 = vrot.slane %v703, %v707
        %710 = vmatprep.subr.mxu0 0.0
        %711 = vmatpush1.msra.mxu0 %v702
        %712 = vmatprep.subr.mxu0 0.0
        %713 = vmatpush1.msra.mxu0 %v701
        %714 = vmatprep.subr.mxu0 0.0
        %715 = vmatpush1.msra.mxu0 %v700
        %716 = vmatprep.subr.mxu0 0.0
        %717 = vmatpush1.msra.mxu0 %v699
        %718 = vmatprep.subr.mxu0 0.0
        %719 = vmatpush1.msra.mxu0 %v698
        %720 = vmatprep.subr.mxu0 0.0
        %721 = vmatpush1.msra.mxu0 %v697
        %722 = vmatprep.subr.mxu0 0.0
        %723 = vmatpush1.msra.mxu0 %v696
        %724 = vmatprep.subr.mxu0 0.0
        %725 = vmatpush1.msra.mxu0 %v695
        %726 = vmatprep.subr.mxu0 0.0
        %727 = vmatpush1.msra.mxu0 %v694
        %728 = vmatprep.subr.mxu0 0.0
        %729 = vmatpush1.msra.mxu0 %v693
        %730 = vmatprep.subr.mxu0 0.0
        %731 = vmatpush1.msra.mxu0 %v692
        %732 = vmatprep.subr.mxu0 0.0
        %733 = vmatpush1.msra.mxu0 %v691
        %734 = vmatprep.subr.mxu0 0.0
        %735 = vmatpush1.msra.mxu0 %v690
        %736 = vmatprep.subr.mxu0 0.0
        %737 = vmatpush1.msra.mxu0 %v689
        %738 = vmatprep.subr.mxu0 0.0
        %739 = vmatpush1.msra.mxu0 %v688
        %740 = vmatprep.subr.mxu0 0.0
        %741 = vmatpush1.msra.mxu0 %v687
        %742 = vmatprep.subr.mxu0 0.0
        %743 = vmatpush2.msra.mxu0 0.0
        %744 = vmatprep.subr.mxu0 0.0
        %745 = vmatpush2.msra.mxu0 0.0
        %746 = vmatprep.subr.mxu0 0.0
        %747 = vmatpush2.msra.mxu0 0.0
        %748 = vmatprep.subr.mxu0 0.0
        %749 = vmatpush2.msra.mxu0 0.0
        %750 = vmatprep.subr.mxu0 0.0
        %751 = vmatpush2.msra.mxu0 0.0
        %752 = vmatprep.subr.mxu0 0.0
        %753 = vmatpush2.msra.mxu0 0.0
        %754 = vmatprep.subr.mxu0 0.0
        %755 = vmatpush2.msra.mxu0 0.0
        %756 = vmatprep.subr.mxu0 0.0
        %757 = vmatpush2.msra.mxu0 0.0
        %758 = vmatprep.subr.mxu0 0.0
        %759 = vmatpush2.msra.mxu0 0.0
        %760 = vmatprep.subr.mxu0 0.0
        %761 = vmatpush2.msra.mxu0 0.0
        %762 = vmatprep.subr.mxu0 0.0
        %763 = vmatpush2.msra.mxu0 0.0
        %764 = vmatprep.subr.mxu0 0.0
        %765 = vmatpush2.msra.mxu0 0.0
        %766 = vmatprep.subr.mxu0 0.0
        %767 = vmatpush2.msra.mxu0 0.0
        %768 = vmatprep.subr.mxu0 0.0
        %769 = vmatpush2.msra.mxu0 0.0
        %770 = vmatprep.subr.mxu0 0.0
        %771 = vmatpush2.msra.mxu0 0.0
        %772 = vmatprep.subr.mxu0 0.0
        %773 = vmatpush2.msra.mxu0 0.0
        %774 = vmatprep.mubr.f32.mxu0 0.0
        %775 = vmatmul.mubr.f32.gmra.mxu0 %v587
        %v776 = vpop.f32.mrf.mxu0
        %v777 = vadd.f32 %v708, %v776
        %v778 = vpop.f32.mrf.mxu0
        %779 = vmatprep.mubr.f32.mxu0 0.0
        %780 = vmatmul.mubr.f32.gmra.mxu0 %v588
        %v781 = vpop.f32.mrf.mxu0
        %v782 = vadd.f32 %v708, %v781
        %v783 = vpop.f32.mrf.mxu0
        %784 = vmatprep.mubr.f32.mxu0 0.0
        %785 = vmatmul.mubr.f32.gmra.mxu0 %v589
        %v786 = vpop.f32.mrf.mxu0
        %v787 = vadd.f32 %v708, %v786
        %v788 = vpop.f32.mrf.mxu0
        %789 = vmatprep.mubr.f32.mxu0 0.0
        %790 = vmatmul.mubr.f32.gmra.mxu0 %v590
        %v791 = vpop.f32.mrf.mxu0
        %v792 = vadd.f32 %v708, %v791
        %v793 = vpop.f32.mrf.mxu0
        %794 = vmatprep.mubr.f32.mxu0 0.0
        %795 = vmatmul.mubr.f32.gmra.mxu0 %v591
        %v796 = vpop.f32.mrf.mxu0
        %v797 = vadd.f32 %v708, %v796
        %v798 = vpop.f32.mrf.mxu0
        %799 = vmatprep.mubr.f32.mxu0 0.0
        %800 = vmatmul.mubr.f32.gmra.mxu0 %v592
        %v801 = vpop.f32.mrf.mxu0
        %v802 = vadd.f32 %v708, %v801
        %v803 = vpop.f32.mrf.mxu0
        %804 = vmatprep.mubr.f32.mxu0 0.0
        %805 = vmatmul.mubr.f32.gmra.mxu0 %v593
        %v806 = vpop.f32.mrf.mxu0
        %v807 = vadd.f32 %v708, %v806
        %v808 = vpop.f32.mrf.mxu0
        %809 = vmatprep.mubr.f32.mxu0 0.0
        %810 = vmatmul.mubr.f32.gmra.mxu0 %v594
        %v811 = vpop.f32.mrf.mxu0
        %v812 = vadd.f32 %v708, %v811
        %v813 = vpop.f32.mrf.mxu0
        %814 = vmatprep.mubr.f32.mxu0 0.0
        %815 = vmatmul.mubr.f32.gmra.mxu0 %v595
        %v816 = vpop.f32.mrf.mxu0
        %v817 = vadd.f32 %v708, %v816
        %v818 = vpop.f32.mrf.mxu0
        %819 = vmatprep.mubr.f32.mxu0 0.0
        %820 = vmatmul.mubr.f32.gmra.mxu0 %v596
        %v821 = vpop.f32.mrf.mxu0
        %v822 = vadd.f32 %v708, %v821
        %v823 = vpop.f32.mrf.mxu0
        %824 = vmatprep.mubr.f32.mxu0 0.0
        %825 = vmatmul.mubr.f32.gmra.mxu0 %v597
        %v826 = vpop.f32.mrf.mxu0
        %v827 = vadd.f32 %v708, %v826
        %v828 = vpop.f32.mrf.mxu0
        %829 = vmatprep.mubr.f32.mxu0 0.0
        %830 = vmatmul.mubr.f32.gmra.mxu0 %v598
        %v831 = vpop.f32.mrf.mxu0
        %v832 = vadd.f32 %v708, %v831
        %v833 = vpop.f32.mrf.mxu0
        %834 = vmatprep.mubr.f32.mxu0 0.0
        %835 = vmatmul.mubr.f32.gmra.mxu0 %v599
        %v836 = vpop.f32.mrf.mxu0
        %v837 = vadd.f32 %v708, %v836
        %v838 = vpop.f32.mrf.mxu0
        %839 = vmatprep.mubr.f32.mxu0 0.0
        %840 = vmatmul.mubr.f32.gmra.mxu0 %v600
        %v841 = vpop.f32.mrf.mxu0
        %v842 = vadd.f32 %v708, %v841
        %v843 = vpop.f32.mrf.mxu0
        %844 = vmatprep.mubr.f32.mxu0 0.0
        %845 = vmatmul.mubr.f32.gmra.mxu0 %v601
        %v846 = vpop.f32.mrf.mxu0
        %v847 = vadd.f32 %v708, %v846
        %v848 = vpop.f32.mrf.mxu0
        %849 = vmatprep.mubr.f32.mxu0 0.0
        %850 = vmatmul.mubr.f32.gmra.mxu0 %v602
        %v851 = vpop.f32.mrf.mxu0
        %v852 = vadd.f32 %v708, %v851
        %v853 = vpop.f32.mrf.mxu0
        %854 = vmatprep.mubr.f32.mxu0 0.0
        %855 = vmatmul.mubr.f32.gmra.mxu0 %v603
        %v856 = vpop.f32.mrf.mxu0
        %v857 = vadd.f32 %v708, %v856
        %v858 = vpop.f32.mrf.mxu0
        %859 = vmatprep.mubr.f32.mxu0 0.0
        %860 = vmatmul.mubr.f32.gmra.mxu0 %v604
        %v861 = vpop.f32.mrf.mxu0
        %v862 = vadd.f32 %v708, %v861
        %v863 = vpop.f32.mrf.mxu0
        %864 = vmatprep.mubr.f32.mxu0 0.0
        %865 = vmatmul.mubr.f32.gmra.mxu0 %v605
        %v866 = vpop.f32.mrf.mxu0
        %v867 = vadd.f32 %v708, %v866
        %v868 = vpop.f32.mrf.mxu0
        %869 = vmatprep.mubr.f32.mxu0 0.0
        %870 = vmatmul.mubr.f32.gmra.mxu0 %v606
        %v871 = vpop.f32.mrf.mxu0
        %v872 = vadd.f32 %v708, %v871
        %v873 = vpop.f32.mrf.mxu0
        %874 = vmatprep.mubr.f32.mxu0 0.0
        %875 = vmatmul.mubr.f32.gmra.mxu0 %v607
        %v876 = vpop.f32.mrf.mxu0
        %v877 = vadd.f32 %v708, %v876
        %v878 = vpop.f32.mrf.mxu0
        %879 = vmatprep.mubr.f32.mxu0 0.0
        %880 = vmatmul.mubr.f32.gmra.mxu0 %v608
        %v881 = vpop.f32.mrf.mxu0
        %v882 = vadd.f32 %v708, %v881
        %v883 = vpop.f32.mrf.mxu0
        %884 = vmatprep.mubr.f32.mxu0 0.0
        %885 = vmatmul.mubr.f32.gmra.mxu0 %v609
        %v886 = vpop.f32.mrf.mxu0
        %v887 = vadd.f32 %v708, %v886
        %v888 = vpop.f32.mrf.mxu0
        %889 = vmatprep.mubr.f32.mxu0 0.0
        %890 = vmatmul.mubr.f32.gmra.mxu0 %v610
        %v891 = vpop.f32.mrf.mxu0
        %v892 = vadd.f32 %v708, %v891
        %v893 = vpop.f32.mrf.mxu0
        %894 = vmatprep.mubr.f32.mxu0 0.0
        %895 = vmatmul.mubr.f32.gmra.mxu0 %v611
        %v896 = vpop.f32.mrf.mxu0
        %v897 = vadd.f32 %v708, %v896
        %v898 = vpop.f32.mrf.mxu0
        %899 = vmatprep.mubr.f32.mxu0 0.0
        %900 = vmatmul.mubr.f32.gmra.mxu0 %v612
        %v901 = vpop.f32.mrf.mxu0
        %v902 = vadd.f32 %v708, %v901
        %v903 = vpop.f32.mrf.mxu0
        %904 = vmatprep.mubr.f32.mxu0 0.0
        %905 = vmatmul.mubr.f32.gmra.mxu0 %v613
        %v906 = vpop.f32.mrf.mxu0
        %v907 = vadd.f32 %v708, %v906
        %v908 = vpop.f32.mrf.mxu0
        %909 = vmatprep.mubr.f32.mxu0 0.0
        %910 = vmatmul.mubr.f32.gmra.mxu0 %v614
        %v911 = vpop.f32.mrf.mxu0
        %v912 = vadd.f32 %v708, %v911
        %v913 = vpop.f32.mrf.mxu0
        %914 = vmatprep.mubr.f32.mxu0 0.0
        %915 = vmatmul.mubr.f32.gmra.mxu0 %v615
        %v916 = vpop.f32.mrf.mxu0
        %v917 = vadd.f32 %v708, %v916
        %v918 = vpop.f32.mrf.mxu0
        %919 = vmatprep.mubr.f32.mxu0 0.0
        %920 = vmatmul.mubr.f32.gmra.mxu0 %v616
        %v921 = vpop.f32.mrf.mxu0
        %v922 = vadd.f32 %v708, %v921
        %v923 = vpop.f32.mrf.mxu0
        %924 = vmatprep.mubr.f32.mxu0 0.0
        %925 = vmatmul.mubr.f32.gmra.mxu0 %v617
        %v926 = vpop.f32.mrf.mxu0
        %v927 = vadd.f32 %v708, %v926
        %v928 = vpop.f32.mrf.mxu0
        %929 = vmatprep.mubr.f32.mxu0 0.0
        %930 = vmatmul.mubr.f32.gmra.mxu0 %v618
        %v931 = vpop.f32.mrf.mxu0
        %v932 = vadd.f32 %v708, %v931
        %v933 = vpop.f32.mrf.mxu0
        %934 = vmatprep.mubr.f32.mxu0 0.0
        %935 = vmatmul.mubr.f32.gmra.mxu0 %v619
        %v936 = vpop.f32.mrf.mxu0
        %v937 = vadd.f32 %v708, %v936
        %v938 = vpop.f32.mrf.mxu0
        %939 = vmatprep.mubr.f32.mxu0 0.0
        %940 = vmatmul.mubr.f32.gmra.mxu0 %v620
        %v941 = vpop.f32.mrf.mxu0
        %v942 = vadd.f32 %v708, %v941
        %v943 = vpop.f32.mrf.mxu0
        %944 = vmatprep.mubr.f32.mxu0 0.0
        %945 = vmatmul.mubr.f32.gmra.mxu0 %v621
        %v946 = vpop.f32.mrf.mxu0
        %v947 = vadd.f32 %v708, %v946
        %v948 = vpop.f32.mrf.mxu0
        %949 = vmatprep.mubr.f32.mxu0 0.0
        %950 = vmatmul.mubr.f32.gmra.mxu0 %v622
        %v951 = vpop.f32.mrf.mxu0
        %v952 = vadd.f32 %v708, %v951
        %v953 = vpop.f32.mrf.mxu0
        %954 = vmatprep.mubr.f32.mxu0 0.0
        %955 = vmatmul.mubr.f32.gmra.mxu0 %v623
        %v956 = vpop.f32.mrf.mxu0
        %v957 = vadd.f32 %v708, %v956
        %v958 = vpop.f32.mrf.mxu0
        %959 = vmatprep.mubr.f32.mxu0 0.0
        %960 = vmatmul.mubr.f32.gmra.mxu0 %v624
        %v961 = vpop.f32.mrf.mxu0
        %v962 = vadd.f32 %v708, %v961
        %v963 = vpop.f32.mrf.mxu0
        %964 = vmatprep.mubr.f32.mxu0 0.0
        %965 = vmatmul.mubr.f32.gmra.mxu0 %v625
        %v966 = vpop.f32.mrf.mxu0
        %v967 = vadd.f32 %v708, %v966
        %v968 = vpop.f32.mrf.mxu0
        %969 = vmatprep.mubr.f32.mxu0 0.0
        %970 = vmatmul.mubr.f32.gmra.mxu0 %v626
        %v971 = vpop.f32.mrf.mxu0
        %v972 = vadd.f32 %v708, %v971
        %v973 = vpop.f32.mrf.mxu0
        %974 = vmatprep.mubr.f32.mxu0 0.0
        %975 = vmatmul.mubr.f32.gmra.mxu0 %v627
        %v976 = vpop.f32.mrf.mxu0
        %v977 = vadd.f32 %v708, %v976
        %v978 = vpop.f32.mrf.mxu0
        %979 = vmatprep.mubr.f32.mxu0 0.0
        %980 = vmatmul.mubr.f32.gmra.mxu0 %v628
        %v981 = vpop.f32.mrf.mxu0
        %v982 = vadd.f32 %v708, %v981
        %v983 = vpop.f32.mrf.mxu0
        %984 = vmatprep.mubr.f32.mxu0 0.0
        %985 = vmatmul.mubr.f32.gmra.mxu0 %v629
        %v986 = vpop.f32.mrf.mxu0
        %v987 = vadd.f32 %v708, %v986
        %v988 = vpop.f32.mrf.mxu0
        %989 = vmatprep.mubr.f32.mxu0 0.0
        %990 = vmatmul.mubr.f32.gmra.mxu0 %v630
        %v991 = vpop.f32.mrf.mxu0
        %v992 = vadd.f32 %v708, %v991
        %v993 = vpop.f32.mrf.mxu0
        %994 = vmatprep.mubr.f32.mxu0 0.0
        %995 = vmatmul.mubr.f32.gmra.mxu0 %v631
        %v996 = vpop.f32.mrf.mxu0
        %v997 = vadd.f32 %v708, %v996
        %v998 = vpop.f32.mrf.mxu0
        %999 = vmatprep.mubr.f32.mxu0 0.0
        %1000 = vmatmul.mubr.f32.gmra.mxu0 %v632
        %v1001 = vpop.f32.mrf.mxu0
        %v1002 = vadd.f32 %v708, %v1001
        %v1003 = vpop.f32.mrf.mxu0
        %1004 = vmatprep.mubr.f32.mxu0 0.0
        %1005 = vmatmul.mubr.f32.gmra.mxu0 %v633
        %v1006 = vpop.f32.mrf.mxu0
        %v1007 = vadd.f32 %v708, %v1006
        %v1008 = vpop.f32.mrf.mxu0
        %1009 = vmatprep.mubr.f32.mxu0 0.0
        %1010 = vmatmul.mubr.f32.gmra.mxu0 %v634
        %v1011 = vpop.f32.mrf.mxu0
        %v1012 = vadd.f32 %v708, %v1011
        %v1013 = vpop.f32.mrf.mxu0
        %1014 = vmatprep.mubr.f32.mxu0 0.0
        %1015 = vmatmul.mubr.f32.gmra.mxu0 %v635
        %v1016 = vpop.f32.mrf.mxu0
        %v1017 = vadd.f32 %v708, %v1016
        %v1018 = vpop.f32.mrf.mxu0
        %1019 = vmatprep.mubr.f32.mxu0 0.0
        %1020 = vmatmul.mubr.f32.gmra.mxu0 %v636
        %v1021 = vpop.f32.mrf.mxu0
        %v1022 = vadd.f32 %v708, %v1021
        %v1023 = vpop.f32.mrf.mxu0
        %1024 = vmatprep.mubr.f32.mxu0 0.0
        %1025 = vmatmul.mubr.f32.gmra.mxu0 %v637
        %v1026 = vpop.f32.mrf.mxu0
        %v1027 = vadd.f32 %v708, %v1026
        %v1028 = vpop.f32.mrf.mxu0
        %1029 = vmatprep.mubr.f32.mxu0 0.0
        %1030 = vmatmul.mubr.f32.gmra.mxu0 %v638
        %v1031 = vpop.f32.mrf.mxu0
        %v1032 = vadd.f32 %v708, %v1031
        %v1033 = vpop.f32.mrf.mxu0
        %1034 = vmatprep.mubr.f32.mxu0 0.0
        %1035 = vmatmul.mubr.f32.gmra.mxu0 %v639
        %v1036 = vpop.f32.mrf.mxu0
        %v1037 = vadd.f32 %v708, %v1036
        %v1038 = vpop.f32.mrf.mxu0
        %1039 = vmatprep.mubr.f32.mxu0 0.0
        %1040 = vmatmul.mubr.f32.gmra.mxu0 %v640
        %v1041 = vpop.f32.mrf.mxu0
        %v1042 = vadd.f32 %v708, %v1041
        %v1043 = vpop.f32.mrf.mxu0
        %1044 = vmatprep.mubr.f32.mxu0 0.0
        %1045 = vmatmul.mubr.f32.gmra.mxu0 %v641
        %v1046 = vpop.f32.mrf.mxu0
        %v1047 = vadd.f32 %v708, %v1046
        %v1048 = vpop.f32.mrf.mxu0
        %1049 = vmatprep.mubr.f32.mxu0 0.0
        %1050 = vmatmul.mubr.f32.gmra.mxu0 %v642
        %v1051 = vpop.f32.mrf.mxu0
        %v1052 = vadd.f32 %v708, %v1051
        %v1053 = vpop.f32.mrf.mxu0
        %1054 = vmatprep.mubr.f32.mxu0 0.0
        %1055 = vmatmul.mubr.f32.gmra.mxu0 %v643
        %v1056 = vpop.f32.mrf.mxu0
        %v1057 = vadd.f32 %v708, %v1056
        %v1058 = vpop.f32.mrf.mxu0
        %1059 = vmatprep.mubr.f32.mxu0 0.0
        %1060 = vmatmul.mubr.f32.gmra.mxu0 %v644
        %v1061 = vpop.f32.mrf.mxu0
        %v1062 = vadd.f32 %v708, %v1061
        %v1063 = vpop.f32.mrf.mxu0
        %1064 = vmatprep.mubr.f32.mxu0 0.0
        %1065 = vmatmul.mubr.f32.gmra.mxu0 %v645
        %v1066 = vpop.f32.mrf.mxu0
        %v1067 = vadd.f32 %v708, %v1066
        %v1068 = vpop.f32.mrf.mxu0
        %1069 = vmatprep.mubr.f32.mxu0 0.0
        %1070 = vmatmul.mubr.f32.gmra.mxu0 %v646
        %v1071 = vpop.f32.mrf.mxu0
        %v1072 = vadd.f32 %v708, %v1071
        %v1073 = vpop.f32.mrf.mxu0
        %1074 = vmatprep.mubr.f32.mxu0 0.0
        %1075 = vmatmul.mubr.f32.gmra.mxu0 %v647
        %v1076 = vpop.f32.mrf.mxu0
        %v1077 = vadd.f32 %v708, %v1076
        %v1078 = vpop.f32.mrf.mxu0
        %1079 = vmatprep.mubr.f32.mxu0 0.0
        %1080 = vmatmul.mubr.f32.gmra.mxu0 %v648
        %v1081 = vpop.f32.mrf.mxu0
        %v1082 = vadd.f32 %v708, %v1081
        %v1083 = vpop.f32.mrf.mxu0
        %1084 = vmatprep.mubr.f32.mxu0 0.0
        %1085 = vmatmul.mubr.f32.gmra.mxu0 %v649
        %v1086 = vpop.f32.mrf.mxu0
        %v1087 = vadd.f32 %v708, %v1086
        %v1088 = vpop.f32.mrf.mxu0
        %1089 = vmatprep.mubr.f32.mxu0 0.0
        %1090 = vmatmul.mubr.f32.gmra.mxu0 %v650
        %v1091 = vpop.f32.mrf.mxu0
        %v1092 = vadd.f32 %v708, %v1091
        %v1093 = vpop.f32.mrf.mxu0
        %1094 = vmatprep.mubr.f32.mxu0 0.0
        %1095 = vmatmul.mubr.f32.gmra.mxu0 %v651
        %v1096 = vpop.f32.mrf.mxu0
        %v1097 = vadd.f32 %v708, %v1096
        %v1098 = vpop.f32.mrf.mxu0
        %1099 = vmatprep.mubr.f32.mxu0 0.0
        %1100 = vmatmul.mubr.f32.gmra.mxu0 %v652
        %v1101 = vpop.f32.mrf.mxu0
        %v1102 = vadd.f32 %v708, %v1101
        %v1103 = vpop.f32.mrf.mxu0
        %1104 = vmatprep.mubr.f32.mxu0 0.0
        %1105 = vmatmul.mubr.f32.gmra.mxu0 %v653
        %v1106 = vpop.f32.mrf.mxu0
        %v1107 = vadd.f32 %v708, %v1106
        %v1108 = vpop.f32.mrf.mxu0
        %1109 = vmatprep.mubr.f32.mxu0 0.0
        %1110 = vmatmul.mubr.f32.gmra.mxu0 %v654
        %v1111 = vpop.f32.mrf.mxu0
        %v1112 = vadd.f32 %v708, %v1111
        %v1113 = vpop.f32.mrf.mxu0
        %1114 = vmatprep.mubr.f32.mxu0 0.0
        %1115 = vmatmul.mubr.f32.gmra.mxu0 %v655
        %v1116 = vpop.f32.mrf.mxu0
        %v1117 = vadd.f32 %v708, %v1116
        %v1118 = vpop.f32.mrf.mxu0
        %1119 = vmatprep.mubr.f32.mxu0 0.0
        %1120 = vmatmul.mubr.f32.gmra.mxu0 %v656
        %v1121 = vpop.f32.mrf.mxu0
        %v1122 = vadd.f32 %v708, %v1121
        %v1123 = vpop.f32.mrf.mxu0
        %1124 = vmatprep.mubr.f32.mxu0 0.0
        %1125 = vmatmul.mubr.f32.gmra.mxu0 %v657
        %v1126 = vpop.f32.mrf.mxu0
        %v1127 = vadd.f32 %v708, %v1126
        %v1128 = vpop.f32.mrf.mxu0
        %1129 = vmatprep.mubr.f32.mxu0 0.0
        %1130 = vmatmul.mubr.f32.gmra.mxu0 %v658
        %v1131 = vpop.f32.mrf.mxu0
        %v1132 = vadd.f32 %v708, %v1131
        %v1133 = vpop.f32.mrf.mxu0
        %1134 = vmatprep.mubr.f32.mxu0 0.0
        %1135 = vmatmul.mubr.f32.gmra.mxu0 %v659
        %v1136 = vpop.f32.mrf.mxu0
        %v1137 = vadd.f32 %v708, %v1136
        %v1138 = vpop.f32.mrf.mxu0
        %1139 = vmatprep.mubr.f32.mxu0 0.0
        %1140 = vmatmul.mubr.f32.gmra.mxu0 %v660
        %v1141 = vpop.f32.mrf.mxu0
        %v1142 = vadd.f32 %v708, %v1141
        %v1143 = vpop.f32.mrf.mxu0
        %1144 = vmatprep.mubr.f32.mxu0 0.0
        %1145 = vmatmul.mubr.f32.gmra.mxu0 %v661
        %v1146 = vpop.f32.mrf.mxu0
        %v1147 = vadd.f32 %v708, %v1146
        %v1148 = vpop.f32.mrf.mxu0
        %1149 = vmatprep.mubr.f32.mxu0 0.0
        %1150 = vmatmul.mubr.f32.gmra.mxu0 %v662
        %v1151 = vpop.f32.mrf.mxu0
        %v1152 = vadd.f32 %v708, %v1151
        %v1153 = vpop.f32.mrf.mxu0
        %1154 = vmatprep.mubr.f32.mxu0 0.0
        %1155 = vmatmul.mubr.f32.gmra.mxu0 %v663
        %v1156 = vpop.f32.mrf.mxu0
        %v1157 = vadd.f32 %v708, %v1156
        %v1158 = vpop.f32.mrf.mxu0
        %1159 = vmatprep.mubr.f32.mxu0 0.0
        %1160 = vmatmul.mubr.f32.gmra.mxu0 %v664
        %v1161 = vpop.f32.mrf.mxu0
        %v1162 = vadd.f32 %v708, %v1161
        %v1163 = vpop.f32.mrf.mxu0
        %1164 = vmatprep.mubr.f32.mxu0 0.0
        %1165 = vmatmul.mubr.f32.gmra.mxu0 %v665
        %v1166 = vpop.f32.mrf.mxu0
        %v1167 = vadd.f32 %v708, %v1166
        %v1168 = vpop.f32.mrf.mxu0
        %1169 = vmatprep.mubr.f32.mxu0 0.0
        %1170 = vmatmul.mubr.f32.gmra.mxu0 %v666
        %v1171 = vpop.f32.mrf.mxu0
        %v1172 = vadd.f32 %v708, %v1171
        %v1173 = vpop.f32.mrf.mxu0
        %1174 = vmatprep.mubr.f32.mxu0 0.0
        %1175 = vmatmul.mubr.f32.gmra.mxu0 %v667
        %v1176 = vpop.f32.mrf.mxu0
        %v1177 = vadd.f32 %v708, %v1176
        %v1178 = vpop.f32.mrf.mxu0
        %1179 = vmatprep.mubr.f32.mxu0 0.0
        %1180 = vmatmul.mubr.f32.gmra.mxu0 %v668
        %v1181 = vpop.f32.mrf.mxu0
        %v1182 = vadd.f32 %v708, %v1181
        %v1183 = vpop.f32.mrf.mxu0
        %1184 = vmatprep.mubr.f32.mxu0 0.0
        %1185 = vmatmul.mubr.f32.gmra.mxu0 %v669
        %v1186 = vpop.f32.mrf.mxu0
        %v1187 = vadd.f32 %v708, %v1186
        %v1188 = vpop.f32.mrf.mxu0
        %1189 = vmatprep.mubr.f32.mxu0 0.0
        %1190 = vmatmul.mubr.f32.gmra.mxu0 %v670
        %v1191 = vpop.f32.mrf.mxu0
        %v1192 = vadd.f32 %v708, %v1191
        %v1193 = vpop.f32.mrf.mxu0
        %1194 = vmatprep.mubr.f32.mxu0 0.0
        %1195 = vmatmul.mubr.f32.gmra.mxu0 %v671
        %v1196 = vpop.f32.mrf.mxu0
        %v1197 = vadd.f32 %v708, %v1196
        %v1198 = vpop.f32.mrf.mxu0
        %1199 = vmatprep.mubr.f32.mxu0 0.0
        %1200 = vmatmul.mubr.f32.gmra.mxu0 %v672
        %v1201 = vpop.f32.mrf.mxu0
        %v1202 = vadd.f32 %v708, %v1201
        %v1203 = vpop.f32.mrf.mxu0
        %1204 = vmatprep.mubr.f32.mxu0 0.0
        %1205 = vmatmul.mubr.f32.gmra.mxu0 %v673
        %v1206 = vpop.f32.mrf.mxu0
        %v1207 = vadd.f32 %v708, %v1206
        %v1208 = vpop.f32.mrf.mxu0
        %1209 = vmatprep.mubr.f32.mxu0 0.0
        %1210 = vmatmul.mubr.f32.gmra.mxu0 %v674
        %v1211 = vpop.f32.mrf.mxu0
        %v1212 = vadd.f32 %v708, %v1211
        %v1213 = vpop.f32.mrf.mxu0
        %1214 = vmatprep.mubr.f32.mxu0 0.0
        %1215 = vmatmul.mubr.f32.gmra.mxu0 %v675
        %v1216 = vpop.f32.mrf.mxu0
        %v1217 = vadd.f32 %v708, %v1216
        %v1218 = vpop.f32.mrf.mxu0
        %1219 = vmatprep.mubr.f32.mxu0 0.0
        %1220 = vmatmul.mubr.f32.gmra.mxu0 %v676
        %v1221 = vpop.f32.mrf.mxu0
        %v1222 = vadd.f32 %v708, %v1221
        %v1223 = vpop.f32.mrf.mxu0
        %1224 = vmatprep.mubr.f32.mxu0 0.0
        %1225 = vmatmul.mubr.f32.gmra.mxu0 %v677
        %v1226 = vpop.f32.mrf.mxu0
        %v1227 = vadd.f32 %v708, %v1226
        %v1228 = vpop.f32.mrf.mxu0
        %1229 = vmatprep.mubr.f32.mxu0 0.0
        %1230 = vmatmul.mubr.f32.gmra.mxu0 %v678
        %v1231 = vpop.f32.mrf.mxu0
        %v1232 = vadd.f32 %v708, %v1231
        %v1233 = vpop.f32.mrf.mxu0
        %1234 = vmatprep.mubr.f32.mxu0 0.0
        %1235 = vmatmul.mubr.f32.gmra.mxu0 %v679
        %v1236 = vpop.f32.mrf.mxu0
        %v1237 = vadd.f32 %v708, %v1236
        %v1238 = vpop.f32.mrf.mxu0
        %1239 = vmatprep.mubr.f32.mxu0 0.0
        %1240 = vmatmul.mubr.f32.gmra.mxu0 %v680
        %v1241 = vpop.f32.mrf.mxu0
        %v1242 = vadd.f32 %v708, %v1241
        %v1243 = vpop.f32.mrf.mxu0
        %1244 = vmatprep.mubr.f32.mxu0 0.0
        %1245 = vmatmul.mubr.f32.gmra.mxu0 %v681
        %v1246 = vpop.f32.mrf.mxu0
        %v1247 = vadd.f32 %v708, %v1246
        %v1248 = vpop.f32.mrf.mxu0
        %1249 = vmatprep.mubr.f32.mxu0 0.0
        %1250 = vmatmul.mubr.f32.gmra.mxu0 %v682
        %v1251 = vpop.f32.mrf.mxu0
        %v1252 = vadd.f32 %v708, %v1251
        %v1253 = vpop.f32.mrf.mxu0
        %1254 = vmatprep.mubr.f32.mxu0 0.0
        %1255 = vmatmul.mubr.f32.gmra.mxu0 %v683
        %v1256 = vpop.f32.mrf.mxu0
        %v1257 = vadd.f32 %v708, %v1256
        %v1258 = vpop.f32.mrf.mxu0
        %1259 = vmatprep.mubr.f32.mxu0 0.0
        %1260 = vmatmul.mubr.f32.gmra.mxu0 %v684
        %v1261 = vpop.f32.mrf.mxu0
        %v1262 = vadd.f32 %v708, %v1261
        %v1263 = vpop.f32.mrf.mxu0
        %1264 = vmatprep.mubr.f32.mxu0 0.0
        %1265 = vmatmul.mubr.f32.gmra.mxu0 %v685
        %v1266 = vpop.f32.mrf.mxu0
        %v1267 = vadd.f32 %v708, %v1266
        %v1268 = vpop.f32.mrf.mxu0
        %1269 = vmatprep.mubr.f32.mxu0 0.0
        %1270 = vmatmul.mubr.f32.gmra.mxu0 %v686
        %v1271 = vpop.f32.mrf.mxu0
        %v1272 = vadd.f32 %v708, %v1271
        %v1273 = vpop.f32.mrf.mxu0
        %1274 = vdwg.mxu0
        %v1275 = vld [vmem:[#allocation2 + $0x8] sm:$0xff]
        %v1276 = vld [vmem:[#allocation2 + $0x10] sm:$0xff]
        %v1277 = vld [vmem:[#allocation2 + $0x18] sm:$0xff]
        %v1278 = vld [vmem:[#allocation2 + $0x20] sm:$0xff]
        %v1279 = vld [vmem:[#allocation2 + $0x28] sm:$0xff]
        %v1280 = vld [vmem:[#allocation2 + $0x30] sm:$0xff]
        %v1281 = vld [vmem:[#allocation2 + $0x38] sm:$0xff]
        %v1282 = vld [vmem:[#allocation2 + $0x40] sm:$0xff]
        %v1283 = vld [vmem:[#allocation2 + $0x48] sm:$0xff]
        %v1284 = vld [vmem:[#allocation2 + $0x50] sm:$0xff]
        %v1285 = vld [vmem:[#allocation2 + $0x58] sm:$0xff]
        %v1286 = vld [vmem:[#allocation2 + $0x60] sm:$0xff]
        %v1287 = vld [vmem:[#allocation2 + $0x68] sm:$0xff]
        %v1288 = vld [vmem:[#allocation2 + $0x70] sm:$0xff]
        %v1289 = vld [vmem:[#allocation2 + $0x78] sm:$0xff]
        %v1290 = vld [vmem:[#allocation2 + $0x80] sm:$0xff]
        %v1291 = vld [vmem:[#allocation2 + $0x88] sm:$0xff]
        %v1292 = vld [vmem:[#allocation2 + $0x90] sm:$0xff]
        %v1293 = vld [vmem:[#allocation2 + $0x98] sm:$0xff]
        %v1294 = vld [vmem:[#allocation2 + $0xa0] sm:$0xff]
        %v1295 = vld [vmem:[#allocation2 + $0xa8] sm:$0xff]
        %v1296 = vld [vmem:[#allocation2 + $0xb0] sm:$0xff]
        %v1297 = vld [vmem:[#allocation2 + $0xb8] sm:$0xff]
        %v1298 = vld [vmem:[#allocation2 + $0xc0] sm:$0xff]
        %v1299 = vld [vmem:[#allocation2 + $0xc8] sm:$0xff]
        %v1300 = vld [vmem:[#allocation2 + $0xd0] sm:$0xff]
        %v1301 = vld [vmem:[#allocation2 + $0xd8] sm:$0xff]
        %v1302 = vld [vmem:[#allocation2 + $0xe0] sm:$0xff]
        %v1303 = vld [vmem:[#allocation2 + $0xe8] sm:$0xff]
        %v1304 = vld [vmem:[#allocation2 + $0xf0] sm:$0xff]
        %v1305 = vld [vmem:[#allocation2 + $0xf8] sm:$0xff]
        %v1306 = vld [vmem:[#allocation2 + $0x100] sm:$0xff]
        %v1307 = vld [vmem:[#allocation2 + $0x108] sm:$0xff]
        %v1308 = vld [vmem:[#allocation2 + $0x110] sm:$0xff]
        %v1309 = vld [vmem:[#allocation2 + $0x118] sm:$0xff]
        %v1310 = vld [vmem:[#allocation2 + $0x120] sm:$0xff]
        %v1311 = vld [vmem:[#allocation2 + $0x128] sm:$0xff]
        %v1312 = vld [vmem:[#allocation2 + $0x130] sm:$0xff]
        %v1313 = vld [vmem:[#allocation2 + $0x138] sm:$0xff]
        %v1314 = vld [vmem:[#allocation2 + $0x140] sm:$0xff]
        %v1315 = vld [vmem:[#allocation2 + $0x148] sm:$0xff]
        %v1316 = vld [vmem:[#allocation2 + $0x150] sm:$0xff]
        %v1317 = vld [vmem:[#allocation2 + $0x158] sm:$0xff]
        %v1318 = vld [vmem:[#allocation2 + $0x160] sm:$0xff]
        %v1319 = vld [vmem:[#allocation2 + $0x168] sm:$0xff]
        %v1320 = vld [vmem:[#allocation2 + $0x170] sm:$0xff]
        %v1321 = vld [vmem:[#allocation2 + $0x178] sm:$0xff]
        %v1322 = vld [vmem:[#allocation2 + $0x180] sm:$0xff]
        %v1323 = vld [vmem:[#allocation2 + $0x188] sm:$0xff]
        %v1324 = vld [vmem:[#allocation2 + $0x190] sm:$0xff]
        %v1325 = vld [vmem:[#allocation2 + $0x198] sm:$0xff]
        %v1326 = vld [vmem:[#allocation2 + $0x1a0] sm:$0xff]
        %v1327 = vld [vmem:[#allocation2 + $0x1a8] sm:$0xff]
        %v1328 = vld [vmem:[#allocation2 + $0x1b0] sm:$0xff]
        %v1329 = vld [vmem:[#allocation2 + $0x1b8] sm:$0xff]
        %v1330 = vld [vmem:[#allocation2 + $0x1c0] sm:$0xff]
        %v1331 = vld [vmem:[#allocation2 + $0x1c8] sm:$0xff]
        %v1332 = vld [vmem:[#allocation2 + $0x1d0] sm:$0xff]
        %v1333 = vld [vmem:[#allocation2 + $0x1d8] sm:$0xff]
        %v1334 = vld [vmem:[#allocation2 + $0x1e0] sm:$0xff]
        %v1335 = vld [vmem:[#allocation2 + $0x1e8] sm:$0xff]
        %v1336 = vld [vmem:[#allocation2 + $0x1f0] sm:$0xff]
        %v1337 = vld [vmem:[#allocation2 + $0x1f8] sm:$0xff]
        %v1338 = vld [vmem:[#allocation2 + $0x200] sm:$0xff]
        %v1339 = vld [vmem:[#allocation2 + $0x208] sm:$0xff]
        %v1340 = vld [vmem:[#allocation2 + $0x210] sm:$0xff]
        %v1341 = vld [vmem:[#allocation2 + $0x218] sm:$0xff]
        %v1342 = vld [vmem:[#allocation2 + $0x220] sm:$0xff]
        %v1343 = vld [vmem:[#allocation2 + $0x228] sm:$0xff]
        %v1344 = vld [vmem:[#allocation2 + $0x230] sm:$0xff]
        %v1345 = vld [vmem:[#allocation2 + $0x238] sm:$0xff]
        %v1346 = vld [vmem:[#allocation2 + $0x240] sm:$0xff]
        %v1347 = vld [vmem:[#allocation2 + $0x248] sm:$0xff]
        %v1348 = vld [vmem:[#allocation2 + $0x250] sm:$0xff]
        %v1349 = vld [vmem:[#allocation2 + $0x258] sm:$0xff]
        %v1350 = vld [vmem:[#allocation2 + $0x260] sm:$0xff]
        %v1351 = vld [vmem:[#allocation2 + $0x268] sm:$0xff]
        %v1352 = vld [vmem:[#allocation2 + $0x270] sm:$0xff]
        %v1353 = vld [vmem:[#allocation2 + $0x278] sm:$0xff]
        %v1354 = vld [vmem:[#allocation2 + $0x280] sm:$0xff]
        %v1355 = vld [vmem:[#allocation2 + $0x288] sm:$0xff]
        %v1356 = vld [vmem:[#allocation2 + $0x290] sm:$0xff]
        %v1357 = vld [vmem:[#allocation2 + $0x298] sm:$0xff]
        %v1358 = vld [vmem:[#allocation2 + $0x2a0] sm:$0xff]
        %v1359 = vld [vmem:[#allocation2 + $0x2a8] sm:$0xff]
        %v1360 = vld [vmem:[#allocation2 + $0x2b0] sm:$0xff]
        %v1361 = vld [vmem:[#allocation2 + $0x2b8] sm:$0xff]
        %v1362 = vld [vmem:[#allocation2 + $0x2c0] sm:$0xff]
        %v1363 = vld [vmem:[#allocation2 + $0x2c8] sm:$0xff]
        %v1364 = vld [vmem:[#allocation2 + $0x2d0] sm:$0xff]
        %v1365 = vld [vmem:[#allocation2 + $0x2d8] sm:$0xff]
        %v1366 = vld [vmem:[#allocation2 + $0x2e0] sm:$0xff]
        %v1367 = vld [vmem:[#allocation2 + $0x2e8] sm:$0xff]
        %v1368 = vld [vmem:[#allocation2 + $0x2f0] sm:$0xff]
        %v1369 = vld [vmem:[#allocation2 + $0x2f8] sm:$0xff]
        %v1370 = vld [vmem:[#allocation2 + $0x300] sm:$0xff]
        %v1371 = vld [vmem:[#allocation2 + $0x308] sm:$0xff]
        %v1372 = vld [vmem:[#allocation2 + $0x310] sm:$0xff]
        %v1373 = vld [vmem:[#allocation2 + $0x318] sm:$0xff]
        %v1374 = vld [vmem:[#allocation2 + $0x320] sm:$0xff]
        %s1375 = scalar_lea.vmem [#allocation8], 128
        %v1376 = vld [vmem:[%s1375] sm:$0xff]
        %v1377 = vld [vmem:[%s1375 + $0x8] sm:$0xff]
        %v1378 = vld [vmem:[%s1375 + $0x10] sm:$0xff]
        %v1379 = vld [vmem:[%s1375 + $0x18] sm:$0xff]
        %v1380 = vld [vmem:[%s1375 + $0x20] sm:$0xff]
        %v1381 = vld [vmem:[%s1375 + $0x28] sm:$0xff]
        %v1382 = vld [vmem:[%s1375 + $0x30] sm:$0xff]
        %v1383 = vld [vmem:[%s1375 + $0x38] sm:$0xff]
        %v1384 = vld [vmem:[%s1375 + $0x40] sm:$0xff]
        %v1385 = vld [vmem:[%s1375 + $0x48] sm:$0xff]
        %v1386 = vld [vmem:[%s1375 + $0x50] sm:$0xff]
        %v1387 = vld [vmem:[%s1375 + $0x58] sm:$0xff]
        %v1388 = vld [vmem:[%s1375 + $0x60] sm:$0xff]
        %v1389 = vld [vmem:[%s1375 + $0x68] sm:$0xff]
        %v1390 = vld [vmem:[%s1375 + $0x70] sm:$0xff]
        %v1391 = vld [vmem:[%s1375 + $0x78] sm:$0xff]
        %1392 = vmatprep.subr.mxu0 0.0
        %1393 = vmatpush1.msra.mxu0 %v1391
        %1394 = vmatprep.subr.mxu0 0.0
        %1395 = vmatpush1.msra.mxu0 %v1390
        %1396 = vmatprep.subr.mxu0 0.0
        %1397 = vmatpush1.msra.mxu0 %v1389
        %1398 = vmatprep.subr.mxu0 0.0
        %1399 = vmatpush1.msra.mxu0 %v1388
        %1400 = vmatprep.subr.mxu0 0.0
        %1401 = vmatpush1.msra.mxu0 %v1387
        %1402 = vmatprep.subr.mxu0 0.0
        %1403 = vmatpush1.msra.mxu0 %v1386
        %1404 = vmatprep.subr.mxu0 0.0
        %1405 = vmatpush1.msra.mxu0 %v1385
        %1406 = vmatprep.subr.mxu0 0.0
        %1407 = vmatpush1.msra.mxu0 %v1384
        %1408 = vmatprep.subr.mxu0 0.0
        %1409 = vmatpush1.msra.mxu0 %v1383
        %1410 = vmatprep.subr.mxu0 0.0
        %1411 = vmatpush1.msra.mxu0 %v1382
        %1412 = vmatprep.subr.mxu0 0.0
        %1413 = vmatpush1.msra.mxu0 %v1381
        %1414 = vmatprep.subr.mxu0 0.0
        %1415 = vmatpush1.msra.mxu0 %v1380
        %1416 = vmatprep.subr.mxu0 0.0
        %1417 = vmatpush1.msra.mxu0 %v1379
        %1418 = vmatprep.subr.mxu0 0.0
        %1419 = vmatpush1.msra.mxu0 %v1378
        %1420 = vmatprep.subr.mxu0 0.0
        %1421 = vmatpush1.msra.mxu0 %v1377
        %1422 = vmatprep.subr.mxu0 0.0
        %1423 = vmatpush1.msra.mxu0 %v1376
        %1424 = vmatprep.subr.mxu0 0.0
        %1425 = vmatpush2.msra.mxu0 0.0
        %1426 = vmatprep.subr.mxu0 0.0
        %1427 = vmatpush2.msra.mxu0 0.0
        %1428 = vmatprep.subr.mxu0 0.0
        %1429 = vmatpush2.msra.mxu0 0.0
        %1430 = vmatprep.subr.mxu0 0.0
        %1431 = vmatpush2.msra.mxu0 0.0
        %1432 = vmatprep.subr.mxu0 0.0
        %1433 = vmatpush2.msra.mxu0 0.0
        %1434 = vmatprep.subr.mxu0 0.0
        %1435 = vmatpush2.msra.mxu0 0.0
        %1436 = vmatprep.subr.mxu0 0.0
        %1437 = vmatpush2.msra.mxu0 0.0
        %1438 = vmatprep.subr.mxu0 0.0
        %1439 = vmatpush2.msra.mxu0 0.0
        %1440 = vmatprep.subr.mxu0 0.0
        %1441 = vmatpush2.msra.mxu0 0.0
        %1442 = vmatprep.subr.mxu0 0.0
        %1443 = vmatpush2.msra.mxu0 0.0
        %1444 = vmatprep.subr.mxu0 0.0
        %1445 = vmatpush2.msra.mxu0 0.0
        %1446 = vmatprep.subr.mxu0 0.0
        %1447 = vmatpush2.msra.mxu0 0.0
        %1448 = vmatprep.subr.mxu0 0.0
        %1449 = vmatpush2.msra.mxu0 0.0
        %1450 = vmatprep.subr.mxu0 0.0
        %1451 = vmatpush2.msra.mxu0 0.0
        %1452 = vmatprep.subr.mxu0 0.0
        %1453 = vmatpush2.msra.mxu0 0.0
        %1454 = vmatprep.subr.mxu0 0.0
        %1455 = vmatpush2.msra.mxu0 0.0
        %1456 = vmatprep.mubr.f32.mxu0 0.0
        %1457 = vmatmul.mubr.f32.gmra.mxu0 %v1275
        %v1458 = vpop.f32.mrf.mxu0
        %v1459 = vadd.f32 0.0, %v1458
        %v1460 = vpop.f32.mrf.mxu0
        %1461 = vmatprep.mubr.f32.mxu0 0.0
        %1462 = vmatmul.mubr.f32.gmra.mxu0 %v1276
        %v1463 = vpop.f32.mrf.mxu0
        %v1464 = vadd.f32 0.0, %v1463
        %v1465 = vpop.f32.mrf.mxu0
        %1466 = vmatprep.mubr.f32.mxu0 0.0
        %1467 = vmatmul.mubr.f32.gmra.mxu0 %v1277
        %v1468 = vpop.f32.mrf.mxu0
        %v1469 = vadd.f32 0.0, %v1468
        %v1470 = vpop.f32.mrf.mxu0
        %1471 = vmatprep.mubr.f32.mxu0 0.0
        %1472 = vmatmul.mubr.f32.gmra.mxu0 %v1278
        %v1473 = vpop.f32.mrf.mxu0
        %v1474 = vadd.f32 0.0, %v1473
        %v1475 = vpop.f32.mrf.mxu0
        %1476 = vmatprep.mubr.f32.mxu0 0.0
        %1477 = vmatmul.mubr.f32.gmra.mxu0 %v1279
        %v1478 = vpop.f32.mrf.mxu0
        %v1479 = vadd.f32 0.0, %v1478
        %v1480 = vpop.f32.mrf.mxu0
        %1481 = vmatprep.mubr.f32.mxu0 0.0
        %1482 = vmatmul.mubr.f32.gmra.mxu0 %v1280
        %v1483 = vpop.f32.mrf.mxu0
        %v1484 = vadd.f32 0.0, %v1483
        %v1485 = vpop.f32.mrf.mxu0
        %1486 = vmatprep.mubr.f32.mxu0 0.0
        %1487 = vmatmul.mubr.f32.gmra.mxu0 %v1281
        %v1488 = vpop.f32.mrf.mxu0
        %v1489 = vadd.f32 0.0, %v1488
        %v1490 = vpop.f32.mrf.mxu0
        %1491 = vmatprep.mubr.f32.mxu0 0.0
        %1492 = vmatmul.mubr.f32.gmra.mxu0 %v1282
        %v1493 = vpop.f32.mrf.mxu0
        %v1494 = vadd.f32 0.0, %v1493
        %v1495 = vpop.f32.mrf.mxu0
        %1496 = vmatprep.mubr.f32.mxu0 0.0
        %1497 = vmatmul.mubr.f32.gmra.mxu0 %v1283
        %v1498 = vpop.f32.mrf.mxu0
        %v1499 = vadd.f32 0.0, %v1498
        %v1500 = vpop.f32.mrf.mxu0
        %1501 = vmatprep.mubr.f32.mxu0 0.0
        %1502 = vmatmul.mubr.f32.gmra.mxu0 %v1284
        %v1503 = vpop.f32.mrf.mxu0
        %v1504 = vadd.f32 0.0, %v1503
        %v1505 = vpop.f32.mrf.mxu0
        %1506 = vmatprep.mubr.f32.mxu0 0.0
        %1507 = vmatmul.mubr.f32.gmra.mxu0 %v1285
        %v1508 = vpop.f32.mrf.mxu0
        %v1509 = vadd.f32 0.0, %v1508
        %v1510 = vpop.f32.mrf.mxu0
        %1511 = vmatprep.mubr.f32.mxu0 0.0
        %1512 = vmatmul.mubr.f32.gmra.mxu0 %v1286
        %v1513 = vpop.f32.mrf.mxu0
        %v1514 = vadd.f32 0.0, %v1513
        %v1515 = vpop.f32.mrf.mxu0
        %1516 = vmatprep.mubr.f32.mxu0 0.0
        %1517 = vmatmul.mubr.f32.gmra.mxu0 %v1287
        %v1518 = vpop.f32.mrf.mxu0
        %v1519 = vadd.f32 0.0, %v1518
        %v1520 = vpop.f32.mrf.mxu0
        %1521 = vmatprep.mubr.f32.mxu0 0.0
        %1522 = vmatmul.mubr.f32.gmra.mxu0 %v1288
        %v1523 = vpop.f32.mrf.mxu0
        %v1524 = vadd.f32 0.0, %v1523
        %v1525 = vpop.f32.mrf.mxu0
        %1526 = vmatprep.mubr.f32.mxu0 0.0
        %1527 = vmatmul.mubr.f32.gmra.mxu0 %v1289
        %v1528 = vpop.f32.mrf.mxu0
        %v1529 = vadd.f32 0.0, %v1528
        %v1530 = vpop.f32.mrf.mxu0
        %1531 = vmatprep.mubr.f32.mxu0 0.0
        %1532 = vmatmul.mubr.f32.gmra.mxu0 %v1290
        %v1533 = vpop.f32.mrf.mxu0
        %v1534 = vadd.f32 0.0, %v1533
        %v1535 = vpop.f32.mrf.mxu0
        %1536 = vmatprep.mubr.f32.mxu0 0.0
        %1537 = vmatmul.mubr.f32.gmra.mxu0 %v1291
        %v1538 = vpop.f32.mrf.mxu0
        %v1539 = vadd.f32 0.0, %v1538
        %v1540 = vpop.f32.mrf.mxu0
        %1541 = vmatprep.mubr.f32.mxu0 0.0
        %1542 = vmatmul.mubr.f32.gmra.mxu0 %v1292
        %v1543 = vpop.f32.mrf.mxu0
        %v1544 = vadd.f32 0.0, %v1543
        %v1545 = vpop.f32.mrf.mxu0
        %1546 = vmatprep.mubr.f32.mxu0 0.0
        %1547 = vmatmul.mubr.f32.gmra.mxu0 %v1293
        %v1548 = vpop.f32.mrf.mxu0
        %v1549 = vadd.f32 0.0, %v1548
        %v1550 = vpop.f32.mrf.mxu0
        %1551 = vmatprep.mubr.f32.mxu0 0.0
        %1552 = vmatmul.mubr.f32.gmra.mxu0 %v1294
        %v1553 = vpop.f32.mrf.mxu0
        %v1554 = vadd.f32 0.0, %v1553
        %v1555 = vpop.f32.mrf.mxu0
        %1556 = vmatprep.mubr.f32.mxu0 0.0
        %1557 = vmatmul.mubr.f32.gmra.mxu0 %v1295
        %v1558 = vpop.f32.mrf.mxu0
        %v1559 = vadd.f32 0.0, %v1558
        %v1560 = vpop.f32.mrf.mxu0
        %1561 = vmatprep.mubr.f32.mxu0 0.0
        %1562 = vmatmul.mubr.f32.gmra.mxu0 %v1296
        %v1563 = vpop.f32.mrf.mxu0
        %v1564 = vadd.f32 0.0, %v1563
        %v1565 = vpop.f32.mrf.mxu0
        %1566 = vmatprep.mubr.f32.mxu0 0.0
        %1567 = vmatmul.mubr.f32.gmra.mxu0 %v1297
        %v1568 = vpop.f32.mrf.mxu0
        %v1569 = vadd.f32 0.0, %v1568
        %v1570 = vpop.f32.mrf.mxu0
        %1571 = vmatprep.mubr.f32.mxu0 0.0
        %1572 = vmatmul.mubr.f32.gmra.mxu0 %v1298
        %v1573 = vpop.f32.mrf.mxu0
        %v1574 = vadd.f32 0.0, %v1573
        %v1575 = vpop.f32.mrf.mxu0
        %1576 = vmatprep.mubr.f32.mxu0 0.0
        %1577 = vmatmul.mubr.f32.gmra.mxu0 %v1299
        %v1578 = vpop.f32.mrf.mxu0
        %v1579 = vadd.f32 0.0, %v1578
        %v1580 = vpop.f32.mrf.mxu0
        %1581 = vmatprep.mubr.f32.mxu0 0.0
        %1582 = vmatmul.mubr.f32.gmra.mxu0 %v1300
        %v1583 = vpop.f32.mrf.mxu0
        %v1584 = vadd.f32 0.0, %v1583
        %v1585 = vpop.f32.mrf.mxu0
        %1586 = vmatprep.mubr.f32.mxu0 0.0
        %1587 = vmatmul.mubr.f32.gmra.mxu0 %v1301
        %v1588 = vpop.f32.mrf.mxu0
        %v1589 = vadd.f32 0.0, %v1588
        %v1590 = vpop.f32.mrf.mxu0
        %1591 = vmatprep.mubr.f32.mxu0 0.0
        %1592 = vmatmul.mubr.f32.gmra.mxu0 %v1302
        %v1593 = vpop.f32.mrf.mxu0
        %v1594 = vadd.f32 0.0, %v1593
        %v1595 = vpop.f32.mrf.mxu0
        %1596 = vmatprep.mubr.f32.mxu0 0.0
        %1597 = vmatmul.mubr.f32.gmra.mxu0 %v1303
        %v1598 = vpop.f32.mrf.mxu0
        %v1599 = vadd.f32 0.0, %v1598
        %v1600 = vpop.f32.mrf.mxu0
        %1601 = vmatprep.mubr.f32.mxu0 0.0
        %1602 = vmatmul.mubr.f32.gmra.mxu0 %v1304
        %v1603 = vpop.f32.mrf.mxu0
        %v1604 = vadd.f32 0.0, %v1603
        %v1605 = vpop.f32.mrf.mxu0
        %1606 = vmatprep.mubr.f32.mxu0 0.0
        %1607 = vmatmul.mubr.f32.gmra.mxu0 %v1305
        %v1608 = vpop.f32.mrf.mxu0
        %v1609 = vadd.f32 0.0, %v1608
        %v1610 = vpop.f32.mrf.mxu0
        %1611 = vmatprep.mubr.f32.mxu0 0.0
        %1612 = vmatmul.mubr.f32.gmra.mxu0 %v1306
        %v1613 = vpop.f32.mrf.mxu0
        %v1614 = vadd.f32 0.0, %v1613
        %v1615 = vpop.f32.mrf.mxu0
        %1616 = vmatprep.mubr.f32.mxu0 0.0
        %1617 = vmatmul.mubr.f32.gmra.mxu0 %v1307
        %v1618 = vpop.f32.mrf.mxu0
        %v1619 = vadd.f32 0.0, %v1618
        %v1620 = vpop.f32.mrf.mxu0
        %1621 = vmatprep.mubr.f32.mxu0 0.0
        %1622 = vmatmul.mubr.f32.gmra.mxu0 %v1308
        %v1623 = vpop.f32.mrf.mxu0
        %v1624 = vadd.f32 0.0, %v1623
        %v1625 = vpop.f32.mrf.mxu0
        %1626 = vmatprep.mubr.f32.mxu0 0.0
        %1627 = vmatmul.mubr.f32.gmra.mxu0 %v1309
        %v1628 = vpop.f32.mrf.mxu0
        %v1629 = vadd.f32 0.0, %v1628
        %v1630 = vpop.f32.mrf.mxu0
        %1631 = vmatprep.mubr.f32.mxu0 0.0
        %1632 = vmatmul.mubr.f32.gmra.mxu0 %v1310
        %v1633 = vpop.f32.mrf.mxu0
        %v1634 = vadd.f32 0.0, %v1633
        %v1635 = vpop.f32.mrf.mxu0
        %1636 = vmatprep.mubr.f32.mxu0 0.0
        %1637 = vmatmul.mubr.f32.gmra.mxu0 %v1311
        %v1638 = vpop.f32.mrf.mxu0
        %v1639 = vadd.f32 0.0, %v1638
        %v1640 = vpop.f32.mrf.mxu0
        %1641 = vmatprep.mubr.f32.mxu0 0.0
        %1642 = vmatmul.mubr.f32.gmra.mxu0 %v1312
        %v1643 = vpop.f32.mrf.mxu0
        %v1644 = vadd.f32 0.0, %v1643
        %v1645 = vpop.f32.mrf.mxu0
        %1646 = vmatprep.mubr.f32.mxu0 0.0
        %1647 = vmatmul.mubr.f32.gmra.mxu0 %v1313
        %v1648 = vpop.f32.mrf.mxu0
        %v1649 = vadd.f32 0.0, %v1648
        %v1650 = vpop.f32.mrf.mxu0
        %1651 = vmatprep.mubr.f32.mxu0 0.0
        %1652 = vmatmul.mubr.f32.gmra.mxu0 %v1314
        %v1653 = vpop.f32.mrf.mxu0
        %v1654 = vadd.f32 0.0, %v1653
        %v1655 = vpop.f32.mrf.mxu0
        %1656 = vmatprep.mubr.f32.mxu0 0.0
        %1657 = vmatmul.mubr.f32.gmra.mxu0 %v1315
        %v1658 = vpop.f32.mrf.mxu0
        %v1659 = vadd.f32 0.0, %v1658
        %v1660 = vpop.f32.mrf.mxu0
        %1661 = vmatprep.mubr.f32.mxu0 0.0
        %1662 = vmatmul.mubr.f32.gmra.mxu0 %v1316
        %v1663 = vpop.f32.mrf.mxu0
        %v1664 = vadd.f32 0.0, %v1663
        %v1665 = vpop.f32.mrf.mxu0
        %1666 = vmatprep.mubr.f32.mxu0 0.0
        %1667 = vmatmul.mubr.f32.gmra.mxu0 %v1317
        %v1668 = vpop.f32.mrf.mxu0
        %v1669 = vadd.f32 0.0, %v1668
        %v1670 = vpop.f32.mrf.mxu0
        %1671 = vmatprep.mubr.f32.mxu0 0.0
        %1672 = vmatmul.mubr.f32.gmra.mxu0 %v1318
        %v1673 = vpop.f32.mrf.mxu0
        %v1674 = vadd.f32 0.0, %v1673
        %v1675 = vpop.f32.mrf.mxu0
        %1676 = vmatprep.mubr.f32.mxu0 0.0
        %1677 = vmatmul.mubr.f32.gmra.mxu0 %v1319
        %v1678 = vpop.f32.mrf.mxu0
        %v1679 = vadd.f32 0.0, %v1678
        %v1680 = vpop.f32.mrf.mxu0
        %1681 = vmatprep.mubr.f32.mxu0 0.0
        %1682 = vmatmul.mubr.f32.gmra.mxu0 %v1320
        %v1683 = vpop.f32.mrf.mxu0
        %v1684 = vadd.f32 0.0, %v1683
        %v1685 = vpop.f32.mrf.mxu0
        %1686 = vmatprep.mubr.f32.mxu0 0.0
        %1687 = vmatmul.mubr.f32.gmra.mxu0 %v1321
        %v1688 = vpop.f32.mrf.mxu0
        %v1689 = vadd.f32 0.0, %v1688
        %v1690 = vpop.f32.mrf.mxu0
        %1691 = vmatprep.mubr.f32.mxu0 0.0
        %1692 = vmatmul.mubr.f32.gmra.mxu0 %v1322
        %v1693 = vpop.f32.mrf.mxu0
        %v1694 = vadd.f32 0.0, %v1693
        %v1695 = vpop.f32.mrf.mxu0
        %1696 = vmatprep.mubr.f32.mxu0 0.0
        %1697 = vmatmul.mubr.f32.gmra.mxu0 %v1323
        %v1698 = vpop.f32.mrf.mxu0
        %v1699 = vadd.f32 0.0, %v1698
        %v1700 = vpop.f32.mrf.mxu0
        %1701 = vmatprep.mubr.f32.mxu0 0.0
        %1702 = vmatmul.mubr.f32.gmra.mxu0 %v1324
        %v1703 = vpop.f32.mrf.mxu0
        %v1704 = vadd.f32 0.0, %v1703
        %v1705 = vpop.f32.mrf.mxu0
        %1706 = vmatprep.mubr.f32.mxu0 0.0
        %1707 = vmatmul.mubr.f32.gmra.mxu0 %v1325
        %v1708 = vpop.f32.mrf.mxu0
        %v1709 = vadd.f32 0.0, %v1708
        %v1710 = vpop.f32.mrf.mxu0
        %1711 = vmatprep.mubr.f32.mxu0 0.0
        %1712 = vmatmul.mubr.f32.gmra.mxu0 %v1326
        %v1713 = vpop.f32.mrf.mxu0
        %v1714 = vadd.f32 0.0, %v1713
        %v1715 = vpop.f32.mrf.mxu0
        %1716 = vmatprep.mubr.f32.mxu0 0.0
        %1717 = vmatmul.mubr.f32.gmra.mxu0 %v1327
        %v1718 = vpop.f32.mrf.mxu0
        %v1719 = vadd.f32 0.0, %v1718
        %v1720 = vpop.f32.mrf.mxu0
        %1721 = vmatprep.mubr.f32.mxu0 0.0
        %1722 = vmatmul.mubr.f32.gmra.mxu0 %v1328
        %v1723 = vpop.f32.mrf.mxu0
        %v1724 = vadd.f32 0.0, %v1723
        %v1725 = vpop.f32.mrf.mxu0
        %1726 = vmatprep.mubr.f32.mxu0 0.0
        %1727 = vmatmul.mubr.f32.gmra.mxu0 %v1329
        %v1728 = vpop.f32.mrf.mxu0
        %v1729 = vadd.f32 0.0, %v1728
        %v1730 = vpop.f32.mrf.mxu0
        %1731 = vmatprep.mubr.f32.mxu0 0.0
        %1732 = vmatmul.mubr.f32.gmra.mxu0 %v1330
        %v1733 = vpop.f32.mrf.mxu0
        %v1734 = vadd.f32 0.0, %v1733
        %v1735 = vpop.f32.mrf.mxu0
        %1736 = vmatprep.mubr.f32.mxu0 0.0
        %1737 = vmatmul.mubr.f32.gmra.mxu0 %v1331
        %v1738 = vpop.f32.mrf.mxu0
        %v1739 = vadd.f32 0.0, %v1738
        %v1740 = vpop.f32.mrf.mxu0
        %1741 = vmatprep.mubr.f32.mxu0 0.0
        %1742 = vmatmul.mubr.f32.gmra.mxu0 %v1332
        %v1743 = vpop.f32.mrf.mxu0
        %v1744 = vadd.f32 0.0, %v1743
        %v1745 = vpop.f32.mrf.mxu0
        %1746 = vmatprep.mubr.f32.mxu0 0.0
        %1747 = vmatmul.mubr.f32.gmra.mxu0 %v1333
        %v1748 = vpop.f32.mrf.mxu0
        %v1749 = vadd.f32 0.0, %v1748
        %v1750 = vpop.f32.mrf.mxu0
        %1751 = vmatprep.mubr.f32.mxu0 0.0
        %1752 = vmatmul.mubr.f32.gmra.mxu0 %v1334
        %v1753 = vpop.f32.mrf.mxu0
        %v1754 = vadd.f32 0.0, %v1753
        %v1755 = vpop.f32.mrf.mxu0
        %1756 = vmatprep.mubr.f32.mxu0 0.0
        %1757 = vmatmul.mubr.f32.gmra.mxu0 %v1335
        %v1758 = vpop.f32.mrf.mxu0
        %v1759 = vadd.f32 0.0, %v1758
        %v1760 = vpop.f32.mrf.mxu0
        %1761 = vmatprep.mubr.f32.mxu0 0.0
        %1762 = vmatmul.mubr.f32.gmra.mxu0 %v1336
        %v1763 = vpop.f32.mrf.mxu0
        %v1764 = vadd.f32 0.0, %v1763
        %v1765 = vpop.f32.mrf.mxu0
        %1766 = vmatprep.mubr.f32.mxu0 0.0
        %1767 = vmatmul.mubr.f32.gmra.mxu0 %v1337
        %v1768 = vpop.f32.mrf.mxu0
        %v1769 = vadd.f32 0.0, %v1768
        %v1770 = vpop.f32.mrf.mxu0
        %1771 = vmatprep.mubr.f32.mxu0 0.0
        %1772 = vmatmul.mubr.f32.gmra.mxu0 %v1338
        %v1773 = vpop.f32.mrf.mxu0
        %v1774 = vadd.f32 0.0, %v1773
        %v1775 = vpop.f32.mrf.mxu0
        %1776 = vmatprep.mubr.f32.mxu0 0.0
        %1777 = vmatmul.mubr.f32.gmra.mxu0 %v1339
        %v1778 = vpop.f32.mrf.mxu0
        %v1779 = vadd.f32 0.0, %v1778
        %v1780 = vpop.f32.mrf.mxu0
        %1781 = vmatprep.mubr.f32.mxu0 0.0
        %1782 = vmatmul.mubr.f32.gmra.mxu0 %v1340
        %v1783 = vpop.f32.mrf.mxu0
        %v1784 = vadd.f32 0.0, %v1783
        %v1785 = vpop.f32.mrf.mxu0
        %1786 = vmatprep.mubr.f32.mxu0 0.0
        %1787 = vmatmul.mubr.f32.gmra.mxu0 %v1341
        %v1788 = vpop.f32.mrf.mxu0
        %v1789 = vadd.f32 0.0, %v1788
        %v1790 = vpop.f32.mrf.mxu0
        %1791 = vmatprep.mubr.f32.mxu0 0.0
        %1792 = vmatmul.mubr.f32.gmra.mxu0 %v1342
        %v1793 = vpop.f32.mrf.mxu0
        %v1794 = vadd.f32 0.0, %v1793
        %v1795 = vpop.f32.mrf.mxu0
        %1796 = vmatprep.mubr.f32.mxu0 0.0
        %1797 = vmatmul.mubr.f32.gmra.mxu0 %v1343
        %v1798 = vpop.f32.mrf.mxu0
        %v1799 = vadd.f32 0.0, %v1798
        %v1800 = vpop.f32.mrf.mxu0
        %1801 = vmatprep.mubr.f32.mxu0 0.0
        %1802 = vmatmul.mubr.f32.gmra.mxu0 %v1344
        %v1803 = vpop.f32.mrf.mxu0
        %v1804 = vadd.f32 0.0, %v1803
        %v1805 = vpop.f32.mrf.mxu0
        %1806 = vmatprep.mubr.f32.mxu0 0.0
        %1807 = vmatmul.mubr.f32.gmra.mxu0 %v1345
        %v1808 = vpop.f32.mrf.mxu0
        %v1809 = vadd.f32 0.0, %v1808
        %v1810 = vpop.f32.mrf.mxu0
        %1811 = vmatprep.mubr.f32.mxu0 0.0
        %1812 = vmatmul.mubr.f32.gmra.mxu0 %v1346
        %v1813 = vpop.f32.mrf.mxu0
        %v1814 = vadd.f32 0.0, %v1813
        %v1815 = vpop.f32.mrf.mxu0
        %1816 = vmatprep.mubr.f32.mxu0 0.0
        %1817 = vmatmul.mubr.f32.gmra.mxu0 %v1347
        %v1818 = vpop.f32.mrf.mxu0
        %v1819 = vadd.f32 0.0, %v1818
        %v1820 = vpop.f32.mrf.mxu0
        %1821 = vmatprep.mubr.f32.mxu0 0.0
        %1822 = vmatmul.mubr.f32.gmra.mxu0 %v1348
        %v1823 = vpop.f32.mrf.mxu0
        %v1824 = vadd.f32 0.0, %v1823
        %v1825 = vpop.f32.mrf.mxu0
        %1826 = vmatprep.mubr.f32.mxu0 0.0
        %1827 = vmatmul.mubr.f32.gmra.mxu0 %v1349
        %v1828 = vpop.f32.mrf.mxu0
        %v1829 = vadd.f32 0.0, %v1828
        %v1830 = vpop.f32.mrf.mxu0
        %1831 = vmatprep.mubr.f32.mxu0 0.0
        %1832 = vmatmul.mubr.f32.gmra.mxu0 %v1350
        %v1833 = vpop.f32.mrf.mxu0
        %v1834 = vadd.f32 0.0, %v1833
        %v1835 = vpop.f32.mrf.mxu0
        %1836 = vmatprep.mubr.f32.mxu0 0.0
        %1837 = vmatmul.mubr.f32.gmra.mxu0 %v1351
        %v1838 = vpop.f32.mrf.mxu0
        %v1839 = vadd.f32 0.0, %v1838
        %v1840 = vpop.f32.mrf.mxu0
        %1841 = vmatprep.mubr.f32.mxu0 0.0
        %1842 = vmatmul.mubr.f32.gmra.mxu0 %v1352
        %v1843 = vpop.f32.mrf.mxu0
        %v1844 = vadd.f32 0.0, %v1843
        %v1845 = vpop.f32.mrf.mxu0
        %1846 = vmatprep.mubr.f32.mxu0 0.0
        %1847 = vmatmul.mubr.f32.gmra.mxu0 %v1353
        %v1848 = vpop.f32.mrf.mxu0
        %v1849 = vadd.f32 0.0, %v1848
        %v1850 = vpop.f32.mrf.mxu0
        %1851 = vmatprep.mubr.f32.mxu0 0.0
        %1852 = vmatmul.mubr.f32.gmra.mxu0 %v1354
        %v1853 = vpop.f32.mrf.mxu0
        %v1854 = vadd.f32 0.0, %v1853
        %v1855 = vpop.f32.mrf.mxu0
        %1856 = vmatprep.mubr.f32.mxu0 0.0
        %1857 = vmatmul.mubr.f32.gmra.mxu0 %v1355
        %v1858 = vpop.f32.mrf.mxu0
        %v1859 = vadd.f32 0.0, %v1858
        %v1860 = vpop.f32.mrf.mxu0
        %1861 = vmatprep.mubr.f32.mxu0 0.0
        %1862 = vmatmul.mubr.f32.gmra.mxu0 %v1356
        %v1863 = vpop.f32.mrf.mxu0
        %v1864 = vadd.f32 0.0, %v1863
        %v1865 = vpop.f32.mrf.mxu0
        %1866 = vmatprep.mubr.f32.mxu0 0.0
        %1867 = vmatmul.mubr.f32.gmra.mxu0 %v1357
        %v1868 = vpop.f32.mrf.mxu0
        %v1869 = vadd.f32 0.0, %v1868
        %v1870 = vpop.f32.mrf.mxu0
        %1871 = vmatprep.mubr.f32.mxu0 0.0
        %1872 = vmatmul.mubr.f32.gmra.mxu0 %v1358
        %v1873 = vpop.f32.mrf.mxu0
        %v1874 = vadd.f32 0.0, %v1873
        %v1875 = vpop.f32.mrf.mxu0
        %1876 = vmatprep.mubr.f32.mxu0 0.0
        %1877 = vmatmul.mubr.f32.gmra.mxu0 %v1359
        %v1878 = vpop.f32.mrf.mxu0
        %v1879 = vadd.f32 0.0, %v1878
        %v1880 = vpop.f32.mrf.mxu0
        %1881 = vmatprep.mubr.f32.mxu0 0.0
        %1882 = vmatmul.mubr.f32.gmra.mxu0 %v1360
        %v1883 = vpop.f32.mrf.mxu0
        %v1884 = vadd.f32 0.0, %v1883
        %v1885 = vpop.f32.mrf.mxu0
        %1886 = vmatprep.mubr.f32.mxu0 0.0
        %1887 = vmatmul.mubr.f32.gmra.mxu0 %v1361
        %v1888 = vpop.f32.mrf.mxu0
        %v1889 = vadd.f32 0.0, %v1888
        %v1890 = vpop.f32.mrf.mxu0
        %1891 = vmatprep.mubr.f32.mxu0 0.0
        %1892 = vmatmul.mubr.f32.gmra.mxu0 %v1362
        %v1893 = vpop.f32.mrf.mxu0
        %v1894 = vadd.f32 0.0, %v1893
        %v1895 = vpop.f32.mrf.mxu0
        %1896 = vmatprep.mubr.f32.mxu0 0.0
        %1897 = vmatmul.mubr.f32.gmra.mxu0 %v1363
        %v1898 = vpop.f32.mrf.mxu0
        %v1899 = vadd.f32 0.0, %v1898
        %v1900 = vpop.f32.mrf.mxu0
        %1901 = vmatprep.mubr.f32.mxu0 0.0
        %1902 = vmatmul.mubr.f32.gmra.mxu0 %v1364
        %v1903 = vpop.f32.mrf.mxu0
        %v1904 = vadd.f32 0.0, %v1903
        %v1905 = vpop.f32.mrf.mxu0
        %1906 = vmatprep.mubr.f32.mxu0 0.0
        %1907 = vmatmul.mubr.f32.gmra.mxu0 %v1365
        %v1908 = vpop.f32.mrf.mxu0
        %v1909 = vadd.f32 0.0, %v1908
        %v1910 = vpop.f32.mrf.mxu0
        %1911 = vmatprep.mubr.f32.mxu0 0.0
        %1912 = vmatmul.mubr.f32.gmra.mxu0 %v1366
        %v1913 = vpop.f32.mrf.mxu0
        %v1914 = vadd.f32 0.0, %v1913
        %v1915 = vpop.f32.mrf.mxu0
        %1916 = vmatprep.mubr.f32.mxu0 0.0
        %1917 = vmatmul.mubr.f32.gmra.mxu0 %v1367
        %v1918 = vpop.f32.mrf.mxu0
        %v1919 = vadd.f32 0.0, %v1918
        %v1920 = vpop.f32.mrf.mxu0
        %1921 = vmatprep.mubr.f32.mxu0 0.0
        %1922 = vmatmul.mubr.f32.gmra.mxu0 %v1368
        %v1923 = vpop.f32.mrf.mxu0
        %v1924 = vadd.f32 0.0, %v1923
        %v1925 = vpop.f32.mrf.mxu0
        %1926 = vmatprep.mubr.f32.mxu0 0.0
        %1927 = vmatmul.mubr.f32.gmra.mxu0 %v1369
        %v1928 = vpop.f32.mrf.mxu0
        %v1929 = vadd.f32 0.0, %v1928
        %v1930 = vpop.f32.mrf.mxu0
        %1931 = vmatprep.mubr.f32.mxu0 0.0
        %1932 = vmatmul.mubr.f32.gmra.mxu0 %v1370
        %v1933 = vpop.f32.mrf.mxu0
        %v1934 = vadd.f32 0.0, %v1933
        %v1935 = vpop.f32.mrf.mxu0
        %1936 = vmatprep.mubr.f32.mxu0 0.0
        %1937 = vmatmul.mubr.f32.gmra.mxu0 %v1371
        %v1938 = vpop.f32.mrf.mxu0
        %v1939 = vadd.f32 0.0, %v1938
        %v1940 = vpop.f32.mrf.mxu0
        %1941 = vmatprep.mubr.f32.mxu0 0.0
        %1942 = vmatmul.mubr.f32.gmra.mxu0 %v1372
        %v1943 = vpop.f32.mrf.mxu0
        %v1944 = vadd.f32 0.0, %v1943
        %v1945 = vpop.f32.mrf.mxu0
        %1946 = vmatprep.mubr.f32.mxu0 0.0
        %1947 = vmatmul.mubr.f32.gmra.mxu0 %v1373
        %v1948 = vpop.f32.mrf.mxu0
        %v1949 = vadd.f32 0.0, %v1948
        %v1950 = vpop.f32.mrf.mxu0
        %1951 = vmatprep.mubr.f32.mxu0 0.0
        %1952 = vmatmul.mubr.f32.gmra.mxu0 %v1374
        %v1953 = vpop.f32.mrf.mxu0
        %v1954 = vadd.f32 0.0, %v1953
        %v1955 = vpop.f32.mrf.mxu0
        %1956 = vdwg.mxu0
        %v1957 = vadd.f32 %v777, %v1459
        %v1958 = vadd.f32 %v782, %v1464
        %v1959 = vadd.f32 %v787, %v1469
        %v1960 = vadd.f32 %v792, %v1474
        %v1961 = vadd.f32 %v797, %v1479
        %v1962 = vadd.f32 %v802, %v1484
        %v1963 = vadd.f32 %v807, %v1489
        %v1964 = vadd.f32 %v812, %v1494
        %v1965 = vadd.f32 %v817, %v1499
        %v1966 = vadd.f32 %v822, %v1504
        %v1967 = vadd.f32 %v827, %v1509
        %v1968 = vadd.f32 %v832, %v1514
        %v1969 = vadd.f32 %v837, %v1519
        %v1970 = vadd.f32 %v842, %v1524
        %v1971 = vadd.f32 %v847, %v1529
        %v1972 = vadd.f32 %v852, %v1534
        %v1973 = vadd.f32 %v857, %v1539
        %v1974 = vadd.f32 %v862, %v1544
        %v1975 = vadd.f32 %v867, %v1549
        %v1976 = vadd.f32 %v872, %v1554
        %v1977 = vadd.f32 %v877, %v1559
        %v1978 = vadd.f32 %v882, %v1564
        %v1979 = vadd.f32 %v887, %v1569
        %v1980 = vadd.f32 %v892, %v1574
        %v1981 = vadd.f32 %v897, %v1579
        %v1982 = vadd.f32 %v902, %v1584
        %v1983 = vadd.f32 %v907, %v1589
        %v1984 = vadd.f32 %v912, %v1594
        %v1985 = vadd.f32 %v917, %v1599
        %v1986 = vadd.f32 %v922, %v1604
        %v1987 = vadd.f32 %v927, %v1609
        %v1988 = vadd.f32 %v932, %v1614
        %v1989 = vadd.f32 %v937, %v1619
        %v1990 = vadd.f32 %v942, %v1624
        %v1991 = vadd.f32 %v947, %v1629
        %v1992 = vadd.f32 %v952, %v1634
        %v1993 = vadd.f32 %v957, %v1639
        %v1994 = vadd.f32 %v962, %v1644
        %v1995 = vadd.f32 %v967, %v1649
        %v1996 = vadd.f32 %v972, %v1654
        %v1997 = vadd.f32 %v977, %v1659
        %v1998 = vadd.f32 %v982, %v1664
        %v1999 = vadd.f32 %v987, %v1669
        %v2000 = vadd.f32 %v992, %v1674
        %v2001 = vadd.f32 %v997, %v1679
        %v2002 = vadd.f32 %v1002, %v1684
        %v2003 = vadd.f32 %v1007, %v1689
        %v2004 = vadd.f32 %v1012, %v1694
        %v2005 = vadd.f32 %v1017, %v1699
        %v2006 = vadd.f32 %v1022, %v1704
        %v2007 = vadd.f32 %v1027, %v1709
        %v2008 = vadd.f32 %v1032, %v1714
        %v2009 = vadd.f32 %v1037, %v1719
        %v2010 = vadd.f32 %v1042, %v1724
        %v2011 = vadd.f32 %v1047, %v1729
        %v2012 = vadd.f32 %v1052, %v1734
        %v2013 = vadd.f32 %v1057, %v1739
        %v2014 = vadd.f32 %v1062, %v1744
        %v2015 = vadd.f32 %v1067, %v1749
        %v2016 = vadd.f32 %v1072, %v1754
        %v2017 = vadd.f32 %v1077, %v1759
        %v2018 = vadd.f32 %v1082, %v1764
        %v2019 = vadd.f32 %v1087, %v1769
        %v2020 = vadd.f32 %v1092, %v1774
        %v2021 = vadd.f32 %v1097, %v1779
        %v2022 = vadd.f32 %v1102, %v1784
        %v2023 = vadd.f32 %v1107, %v1789
        %v2024 = vadd.f32 %v1112, %v1794
        %v2025 = vadd.f32 %v1117, %v1799
        %v2026 = vadd.f32 %v1122, %v1804
        %v2027 = vadd.f32 %v1127, %v1809
        %v2028 = vadd.f32 %v1132, %v1814
        %v2029 = vadd.f32 %v1137, %v1819
        %v2030 = vadd.f32 %v1142, %v1824
        %v2031 = vadd.f32 %v1147, %v1829
        %v2032 = vadd.f32 %v1152, %v1834
        %v2033 = vadd.f32 %v1157, %v1839
        %v2034 = vadd.f32 %v1162, %v1844
        %v2035 = vadd.f32 %v1167, %v1849
        %v2036 = vadd.f32 %v1172, %v1854
        %v2037 = vadd.f32 %v1177, %v1859
        %v2038 = vadd.f32 %v1182, %v1864
        %v2039 = vadd.f32 %v1187, %v1869
        %v2040 = vadd.f32 %v1192, %v1874
        %v2041 = vadd.f32 %v1197, %v1879
        %v2042 = vadd.f32 %v1202, %v1884
        %v2043 = vadd.f32 %v1207, %v1889
        %v2044 = vadd.f32 %v1212, %v1894
        %v2045 = vadd.f32 %v1217, %v1899
        %v2046 = vadd.f32 %v1222, %v1904
        %v2047 = vadd.f32 %v1227, %v1909
        %v2048 = vadd.f32 %v1232, %v1914
        %v2049 = vadd.f32 %v1237, %v1919
        %v2050 = vadd.f32 %v1242, %v1924
        %v2051 = vadd.f32 %v1247, %v1929
        %v2052 = vadd.f32 %v1252, %v1934
        %v2053 = vadd.f32 %v1257, %v1939
        %v2054 = vadd.f32 %v1262, %v1944
        %v2055 = vadd.f32 %v1267, %v1949
        %v2056 = vadd.f32 %v1272, %v1954
        %v2057 = vmax.f32 %v587, %v1275
        %v2058 = vmax.f32 %v588, %v1276
        %v2059 = vmax.f32 %v589, %v1277
        %v2060 = vmax.f32 %v590, %v1278
        %v2061 = vmax.f32 %v591, %v1279
        %v2062 = vmax.f32 %v592, %v1280
        %v2063 = vmax.f32 %v593, %v1281
        %v2064 = vmax.f32 %v594, %v1282
        %v2065 = vmax.f32 %v595, %v1283
        %v2066 = vmax.f32 %v596, %v1284
        %v2067 = vmax.f32 %v597, %v1285
        %v2068 = vmax.f32 %v598, %v1286
        %v2069 = vmax.f32 %v599, %v1287
        %v2070 = vmax.f32 %v600, %v1288
        %v2071 = vmax.f32 %v601, %v1289
        %v2072 = vmax.f32 %v602, %v1290
        %v2073 = vmax.f32 %v603, %v1291
        %v2074 = vmax.f32 %v604, %v1292
        %v2075 = vmax.f32 %v605, %v1293
        %v2076 = vmax.f32 %v606, %v1294
        %v2077 = vmax.f32 %v607, %v1295
        %v2078 = vmax.f32 %v608, %v1296
        %v2079 = vmax.f32 %v609, %v1297
        %v2080 = vmax.f32 %v610, %v1298
        %v2081 = vmax.f32 %v611, %v1299
        %v2082 = vmax.f32 %v612, %v1300
        %v2083 = vmax.f32 %v613, %v1301
        %v2084 = vmax.f32 %v614, %v1302
        %v2085 = vmax.f32 %v615, %v1303
        %v2086 = vmax.f32 %v616, %v1304
        %v2087 = vmax.f32 %v617, %v1305
        %v2088 = vmax.f32 %v618, %v1306
        %v2089 = vmax.f32 %v619, %v1307
        %v2090 = vmax.f32 %v620, %v1308
        %v2091 = vmax.f32 %v621, %v1309
        %v2092 = vmax.f32 %v622, %v1310
        %v2093 = vmax.f32 %v623, %v1311
        %v2094 = vmax.f32 %v624, %v1312
        %v2095 = vmax.f32 %v625, %v1313
        %v2096 = vmax.f32 %v626, %v1314
        %v2097 = vmax.f32 %v627, %v1315
        %v2098 = vmax.f32 %v628, %v1316
        %v2099 = vmax.f32 %v629, %v1317
        %v2100 = vmax.f32 %v630, %v1318
        %v2101 = vmax.f32 %v631, %v1319
        %v2102 = vmax.f32 %v632, %v1320
        %v2103 = vmax.f32 %v633, %v1321
        %v2104 = vmax.f32 %v634, %v1322
        %v2105 = vmax.f32 %v635, %v1323
        %v2106 = vmax.f32 %v636, %v1324
        %v2107 = vmax.f32 %v637, %v1325
        %v2108 = vmax.f32 %v638, %v1326
        %v2109 = vmax.f32 %v639, %v1327
        %v2110 = vmax.f32 %v640, %v1328
        %v2111 = vmax.f32 %v641, %v1329
        %v2112 = vmax.f32 %v642, %v1330
        %v2113 = vmax.f32 %v643, %v1331
        %v2114 = vmax.f32 %v644, %v1332
        %v2115 = vmax.f32 %v645, %v1333
        %v2116 = vmax.f32 %v646, %v1334
        %v2117 = vmax.f32 %v647, %v1335
        %v2118 = vmax.f32 %v648, %v1336
        %v2119 = vmax.f32 %v649, %v1337
        %v2120 = vmax.f32 %v650, %v1338
        %v2121 = vmax.f32 %v651, %v1339
        %v2122 = vmax.f32 %v652, %v1340
        %v2123 = vmax.f32 %v653, %v1341
        %v2124 = vmax.f32 %v654, %v1342
        %v2125 = vmax.f32 %v655, %v1343
        %v2126 = vmax.f32 %v656, %v1344
        %v2127 = vmax.f32 %v657, %v1345
        %v2128 = vmax.f32 %v658, %v1346
        %v2129 = vmax.f32 %v659, %v1347
        %v2130 = vmax.f32 %v660, %v1348
        %v2131 = vmax.f32 %v661, %v1349
        %v2132 = vmax.f32 %v662, %v1350
        %v2133 = vmax.f32 %v663, %v1351
        %v2134 = vmax.f32 %v664, %v1352
        %v2135 = vmax.f32 %v665, %v1353
        %v2136 = vmax.f32 %v666, %v1354
        %v2137 = vmax.f32 %v667, %v1355
        %v2138 = vmax.f32 %v668, %v1356
        %v2139 = vmax.f32 %v669, %v1357
        %v2140 = vmax.f32 %v670, %v1358
        %v2141 = vmax.f32 %v671, %v1359
        %v2142 = vmax.f32 %v672, %v1360
        %v2143 = vmax.f32 %v673, %v1361
        %v2144 = vmax.f32 %v674, %v1362
        %v2145 = vmax.f32 %v675, %v1363
        %v2146 = vmax.f32 %v676, %v1364
        %v2147 = vmax.f32 %v677, %v1365
        %v2148 = vmax.f32 %v678, %v1366
        %v2149 = vmax.f32 %v679, %v1367
        %v2150 = vmax.f32 %v680, %v1368
        %v2151 = vmax.f32 %v681, %v1369
        %v2152 = vmax.f32 %v682, %v1370
        %v2153 = vmax.f32 %v683, %v1371
        %v2154 = vmax.f32 %v684, %v1372
        %v2155 = vmax.f32 %v685, %v1373
        %v2156 = vmax.f32 %v686, %v1374
        %v2157 = vld [vmem:[#allocation2 + $0x10] sm:$0xff]
        %v2158 = vld [vmem:[#allocation2 + $0x18] sm:$0xff]
        %v2159 = vld [vmem:[#allocation2 + $0x20] sm:$0xff]
        %v2160 = vld [vmem:[#allocation2 + $0x28] sm:$0xff]
        %v2161 = vld [vmem:[#allocation2 + $0x30] sm:$0xff]
        %v2162 = vld [vmem:[#allocation2 + $0x38] sm:$0xff]
        %v2163 = vld [vmem:[#allocation2 + $0x40] sm:$0xff]
        %v2164 = vld [vmem:[#allocation2 + $0x48] sm:$0xff]
        %v2165 = vld [vmem:[#allocation2 + $0x50] sm:$0xff]
        %v2166 = vld [vmem:[#allocation2 + $0x58] sm:$0xff]
        %v2167 = vld [vmem:[#allocation2 + $0x60] sm:$0xff]
        %v2168 = vld [vmem:[#allocation2 + $0x68] sm:$0xff]
        %v2169 = vld [vmem:[#allocation2 + $0x70] sm:$0xff]
        %v2170 = vld [vmem:[#allocation2 + $0x78] sm:$0xff]
        %v2171 = vld [vmem:[#allocation2 + $0x80] sm:$0xff]
        %v2172 = vld [vmem:[#allocation2 + $0x88] sm:$0xff]
        %v2173 = vld [vmem:[#allocation2 + $0x90] sm:$0xff]
        %v2174 = vld [vmem:[#allocation2 + $0x98] sm:$0xff]
        %v2175 = vld [vmem:[#allocation2 + $0xa0] sm:$0xff]
        %v2176 = vld [vmem:[#allocation2 + $0xa8] sm:$0xff]
        %v2177 = vld [vmem:[#allocation2 + $0xb0] sm:$0xff]
        %v2178 = vld [vmem:[#allocation2 + $0xb8] sm:$0xff]
        %v2179 = vld [vmem:[#allocation2 + $0xc0] sm:$0xff]
        %v2180 = vld [vmem:[#allocation2 + $0xc8] sm:$0xff]
        %v2181 = vld [vmem:[#allocation2 + $0xd0] sm:$0xff]
        %v2182 = vld [vmem:[#allocation2 + $0xd8] sm:$0xff]
        %v2183 = vld [vmem:[#allocation2 + $0xe0] sm:$0xff]
        %v2184 = vld [vmem:[#allocation2 + $0xe8] sm:$0xff]
        %v2185 = vld [vmem:[#allocation2 + $0xf0] sm:$0xff]
        %v2186 = vld [vmem:[#allocation2 + $0xf8] sm:$0xff]
        %v2187 = vld [vmem:[#allocation2 + $0x100] sm:$0xff]
        %v2188 = vld [vmem:[#allocation2 + $0x108] sm:$0xff]
        %v2189 = vld [vmem:[#allocation2 + $0x110] sm:$0xff]
        %v2190 = vld [vmem:[#allocation2 + $0x118] sm:$0xff]
        %v2191 = vld [vmem:[#allocation2 + $0x120] sm:$0xff]
        %v2192 = vld [vmem:[#allocation2 + $0x128] sm:$0xff]
        %v2193 = vld [vmem:[#allocation2 + $0x130] sm:$0xff]
        %v2194 = vld [vmem:[#allocation2 + $0x138] sm:$0xff]
        %v2195 = vld [vmem:[#allocation2 + $0x140] sm:$0xff]
        %v2196 = vld [vmem:[#allocation2 + $0x148] sm:$0xff]
        %v2197 = vld [vmem:[#allocation2 + $0x150] sm:$0xff]
        %v2198 = vld [vmem:[#allocation2 + $0x158] sm:$0xff]
        %v2199 = vld [vmem:[#allocation2 + $0x160] sm:$0xff]
        %v2200 = vld [vmem:[#allocation2 + $0x168] sm:$0xff]
        %v2201 = vld [vmem:[#allocation2 + $0x170] sm:$0xff]
        %v2202 = vld [vmem:[#allocation2 + $0x178] sm:$0xff]
        %v2203 = vld [vmem:[#allocation2 + $0x180] sm:$0xff]
        %v2204 = vld [vmem:[#allocation2 + $0x188] sm:$0xff]
        %v2205 = vld [vmem:[#allocation2 + $0x190] sm:$0xff]
        %v2206 = vld [vmem:[#allocation2 + $0x198] sm:$0xff]
        %v2207 = vld [vmem:[#allocation2 + $0x1a0] sm:$0xff]
        %v2208 = vld [vmem:[#allocation2 + $0x1a8] sm:$0xff]
        %v2209 = vld [vmem:[#allocation2 + $0x1b0] sm:$0xff]
        %v2210 = vld [vmem:[#allocation2 + $0x1b8] sm:$0xff]
        %v2211 = vld [vmem:[#allocation2 + $0x1c0] sm:$0xff]
        %v2212 = vld [vmem:[#allocation2 + $0x1c8] sm:$0xff]
        %v2213 = vld [vmem:[#allocation2 + $0x1d0] sm:$0xff]
        %v2214 = vld [vmem:[#allocation2 + $0x1d8] sm:$0xff]
        %v2215 = vld [vmem:[#allocation2 + $0x1e0] sm:$0xff]
        %v2216 = vld [vmem:[#allocation2 + $0x1e8] sm:$0xff]
        %v2217 = vld [vmem:[#allocation2 + $0x1f0] sm:$0xff]
        %v2218 = vld [vmem:[#allocation2 + $0x1f8] sm:$0xff]
        %v2219 = vld [vmem:[#allocation2 + $0x200] sm:$0xff]
        %v2220 = vld [vmem:[#allocation2 + $0x208] sm:$0xff]
        %v2221 = vld [vmem:[#allocation2 + $0x210] sm:$0xff]
        %v2222 = vld [vmem:[#allocation2 + $0x218] sm:$0xff]
        %v2223 = vld [vmem:[#allocation2 + $0x220] sm:$0xff]
        %v2224 = vld [vmem:[#allocation2 + $0x228] sm:$0xff]
        %v2225 = vld [vmem:[#allocation2 + $0x230] sm:$0xff]
        %v2226 = vld [vmem:[#allocation2 + $0x238] sm:$0xff]
        %v2227 = vld [vmem:[#allocation2 + $0x240] sm:$0xff]
        %v2228 = vld [vmem:[#allocation2 + $0x248] sm:$0xff]
        %v2229 = vld [vmem:[#allocation2 + $0x250] sm:$0xff]
        %v2230 = vld [vmem:[#allocation2 + $0x258] sm:$0xff]
        %v2231 = vld [vmem:[#allocation2 + $0x260] sm:$0xff]
        %v2232 = vld [vmem:[#allocation2 + $0x268] sm:$0xff]
        %v2233 = vld [vmem:[#allocation2 + $0x270] sm:$0xff]
        %v2234 = vld [vmem:[#allocation2 + $0x278] sm:$0xff]
        %v2235 = vld [vmem:[#allocation2 + $0x280] sm:$0xff]
        %v2236 = vld [vmem:[#allocation2 + $0x288] sm:$0xff]
        %v2237 = vld [vmem:[#allocation2 + $0x290] sm:$0xff]
        %v2238 = vld [vmem:[#allocation2 + $0x298] sm:$0xff]
        %v2239 = vld [vmem:[#allocation2 + $0x2a0] sm:$0xff]
        %v2240 = vld [vmem:[#allocation2 + $0x2a8] sm:$0xff]
        %v2241 = vld [vmem:[#allocation2 + $0x2b0] sm:$0xff]
        %v2242 = vld [vmem:[#allocation2 + $0x2b8] sm:$0xff]
        %v2243 = vld [vmem:[#allocation2 + $0x2c0] sm:$0xff]
        %v2244 = vld [vmem:[#allocation2 + $0x2c8] sm:$0xff]
        %v2245 = vld [vmem:[#allocation2 + $0x2d0] sm:$0xff]
        %v2246 = vld [vmem:[#allocation2 + $0x2d8] sm:$0xff]
        %v2247 = vld [vmem:[#allocation2 + $0x2e0] sm:$0xff]
        %v2248 = vld [vmem:[#allocation2 + $0x2e8] sm:$0xff]
        %v2249 = vld [vmem:[#allocation2 + $0x2f0] sm:$0xff]
        %v2250 = vld [vmem:[#allocation2 + $0x2f8] sm:$0xff]
        %v2251 = vld [vmem:[#allocation2 + $0x300] sm:$0xff]
        %v2252 = vld [vmem:[#allocation2 + $0x308] sm:$0xff]
        %v2253 = vld [vmem:[#allocation2 + $0x310] sm:$0xff]
        %v2254 = vld [vmem:[#allocation2 + $0x318] sm:$0xff]
        %v2255 = vld [vmem:[#allocation2 + $0x320] sm:$0xff]
        %v2256 = vld [vmem:[#allocation2 + $0x328] sm:$0xff]
        %s2257 = scalar_lea.vmem [#allocation8], 256
        %v2258 = vld [vmem:[%s2257] sm:$0xff]
        %v2259 = vld [vmem:[%s2257 + $0x8] sm:$0xff]
        %v2260 = vld [vmem:[%s2257 + $0x10] sm:$0xff]
        %v2261 = vld [vmem:[%s2257 + $0x18] sm:$0xff]
        %v2262 = vld [vmem:[%s2257 + $0x20] sm:$0xff]
        %v2263 = vld [vmem:[%s2257 + $0x28] sm:$0xff]
        %v2264 = vld [vmem:[%s2257 + $0x30] sm:$0xff]
        %v2265 = vld [vmem:[%s2257 + $0x38] sm:$0xff]
        %v2266 = vld [vmem:[%s2257 + $0x40] sm:$0xff]
        %v2267 = vld [vmem:[%s2257 + $0x48] sm:$0xff]
        %v2268 = vld [vmem:[%s2257 + $0x50] sm:$0xff]
        %v2269 = vld [vmem:[%s2257 + $0x58] sm:$0xff]
        %v2270 = vld [vmem:[%s2257 + $0x60] sm:$0xff]
        %v2271 = vld [vmem:[%s2257 + $0x68] sm:$0xff]
        %v2272 = vld [vmem:[%s2257 + $0x70] sm:$0xff]
        %v2273 = vld [vmem:[%s2257 + $0x78] sm:$0xff]
        %2274 = vmatprep.subr.mxu0 0.0
        %2275 = vmatpush1.msra.mxu0 %v2273
        %2276 = vmatprep.subr.mxu0 0.0
        %2277 = vmatpush1.msra.mxu0 %v2272
        %2278 = vmatprep.subr.mxu0 0.0
        %2279 = vmatpush1.msra.mxu0 %v2271
        %2280 = vmatprep.subr.mxu0 0.0
        %2281 = vmatpush1.msra.mxu0 %v2270
        %2282 = vmatprep.subr.mxu0 0.0
        %2283 = vmatpush1.msra.mxu0 %v2269
        %2284 = vmatprep.subr.mxu0 0.0
        %2285 = vmatpush1.msra.mxu0 %v2268
        %2286 = vmatprep.subr.mxu0 0.0
        %2287 = vmatpush1.msra.mxu0 %v2267
        %2288 = vmatprep.subr.mxu0 0.0
        %2289 = vmatpush1.msra.mxu0 %v2266
        %2290 = vmatprep.subr.mxu0 0.0
        %2291 = vmatpush1.msra.mxu0 %v2265
        %2292 = vmatprep.subr.mxu0 0.0
        %2293 = vmatpush1.msra.mxu0 %v2264
        %2294 = vmatprep.subr.mxu0 0.0
        %2295 = vmatpush1.msra.mxu0 %v2263
        %2296 = vmatprep.subr.mxu0 0.0
        %2297 = vmatpush1.msra.mxu0 %v2262
        %2298 = vmatprep.subr.mxu0 0.0
        %2299 = vmatpush1.msra.mxu0 %v2261
        %2300 = vmatprep.subr.mxu0 0.0
        %2301 = vmatpush1.msra.mxu0 %v2260
        %2302 = vmatprep.subr.mxu0 0.0
        %2303 = vmatpush1.msra.mxu0 %v2259
        %2304 = vmatprep.subr.mxu0 0.0
        %2305 = vmatpush1.msra.mxu0 %v2258
        %2306 = vmatprep.subr.mxu0 0.0
        %2307 = vmatpush2.msra.mxu0 0.0
        %2308 = vmatprep.subr.mxu0 0.0
        %2309 = vmatpush2.msra.mxu0 0.0
        %2310 = vmatprep.subr.mxu0 0.0
        %2311 = vmatpush2.msra.mxu0 0.0
        %2312 = vmatprep.subr.mxu0 0.0
        %2313 = vmatpush2.msra.mxu0 0.0
        %2314 = vmatprep.subr.mxu0 0.0
        %2315 = vmatpush2.msra.mxu0 0.0
        %2316 = vmatprep.subr.mxu0 0.0
        %2317 = vmatpush2.msra.mxu0 0.0
        %2318 = vmatprep.subr.mxu0 0.0
        %2319 = vmatpush2.msra.mxu0 0.0
        %2320 = vmatprep.subr.mxu0 0.0
        %2321 = vmatpush2.msra.mxu0 0.0
        %2322 = vmatprep.subr.mxu0 0.0
        %2323 = vmatpush2.msra.mxu0 0.0
        %2324 = vmatprep.subr.mxu0 0.0
        %2325 = vmatpush2.msra.mxu0 0.0
        %2326 = vmatprep.subr.mxu0 0.0
        %2327 = vmatpush2.msra.mxu0 0.0
        %2328 = vmatprep.subr.mxu0 0.0
        %2329 = vmatpush2.msra.mxu0 0.0
        %2330 = vmatprep.subr.mxu0 0.0
        %2331 = vmatpush2.msra.mxu0 0.0
        %2332 = vmatprep.subr.mxu0 0.0
        %2333 = vmatpush2.msra.mxu0 0.0
        %2334 = vmatprep.subr.mxu0 0.0
        %2335 = vmatpush2.msra.mxu0 0.0
        %2336 = vmatprep.subr.mxu0 0.0
        %2337 = vmatpush2.msra.mxu0 0.0
        %2338 = vmatprep.mubr.f32.mxu0 0.0
        %2339 = vmatmul.mubr.f32.gmra.mxu0 %v2157
        %v2340 = vpop.f32.mrf.mxu0
        %v2341 = vadd.f32 0.0, %v2340
        %v2342 = vpop.f32.mrf.mxu0
        %2343 = vmatprep.mubr.f32.mxu0 0.0
        %2344 = vmatmul.mubr.f32.gmra.mxu0 %v2158
        %v2345 = vpop.f32.mrf.mxu0
        %v2346 = vadd.f32 0.0, %v2345
        %v2347 = vpop.f32.mrf.mxu0
        %2348 = vmatprep.mubr.f32.mxu0 0.0
        %2349 = vmatmul.mubr.f32.gmra.mxu0 %v2159
        %v2350 = vpop.f32.mrf.mxu0
        %v2351 = vadd.f32 0.0, %v2350
        %v2352 = vpop.f32.mrf.mxu0
        %2353 = vmatprep.mubr.f32.mxu0 0.0
        %2354 = vmatmul.mubr.f32.gmra.mxu0 %v2160
        %v2355 = vpop.f32.mrf.mxu0
        %v2356 = vadd.f32 0.0, %v2355
        %v2357 = vpop.f32.mrf.mxu0
        %2358 = vmatprep.mubr.f32.mxu0 0.0
        %2359 = vmatmul.mubr.f32.gmra.mxu0 %v2161
        %v2360 = vpop.f32.mrf.mxu0
        %v2361 = vadd.f32 0.0, %v2360
        %v2362 = vpop.f32.mrf.mxu0
        %2363 = vmatprep.mubr.f32.mxu0 0.0
        %2364 = vmatmul.mubr.f32.gmra.mxu0 %v2162
        %v2365 = vpop.f32.mrf.mxu0
        %v2366 = vadd.f32 0.0, %v2365
        %v2367 = vpop.f32.mrf.mxu0
        %2368 = vmatprep.mubr.f32.mxu0 0.0
        %2369 = vmatmul.mubr.f32.gmra.mxu0 %v2163
        %v2370 = vpop.f32.mrf.mxu0
        %v2371 = vadd.f32 0.0, %v2370
        %v2372 = vpop.f32.mrf.mxu0
        %2373 = vmatprep.mubr.f32.mxu0 0.0
        %2374 = vmatmul.mubr.f32.gmra.mxu0 %v2164
        %v2375 = vpop.f32.mrf.mxu0
        %v2376 = vadd.f32 0.0, %v2375
        %v2377 = vpop.f32.mrf.mxu0
        %2378 = vmatprep.mubr.f32.mxu0 0.0
        %2379 = vmatmul.mubr.f32.gmra.mxu0 %v2165
        %v2380 = vpop.f32.mrf.mxu0
        %v2381 = vadd.f32 0.0, %v2380
        %v2382 = vpop.f32.mrf.mxu0
        %2383 = vmatprep.mubr.f32.mxu0 0.0
        %2384 = vmatmul.mubr.f32.gmra.mxu0 %v2166
        %v2385 = vpop.f32.mrf.mxu0
        %v2386 = vadd.f32 0.0, %v2385
        %v2387 = vpop.f32.mrf.mxu0
        %2388 = vmatprep.mubr.f32.mxu0 0.0
        %2389 = vmatmul.mubr.f32.gmra.mxu0 %v2167
        %v2390 = vpop.f32.mrf.mxu0
        %v2391 = vadd.f32 0.0, %v2390
        %v2392 = vpop.f32.mrf.mxu0
        %2393 = vmatprep.mubr.f32.mxu0 0.0
        %2394 = vmatmul.mubr.f32.gmra.mxu0 %v2168
        %v2395 = vpop.f32.mrf.mxu0
        %v2396 = vadd.f32 0.0, %v2395
        %v2397 = vpop.f32.mrf.mxu0
        %2398 = vmatprep.mubr.f32.mxu0 0.0
        %2399 = vmatmul.mubr.f32.gmra.mxu0 %v2169
        %v2400 = vpop.f32.mrf.mxu0
        %v2401 = vadd.f32 0.0, %v2400
        %v2402 = vpop.f32.mrf.mxu0
        %2403 = vmatprep.mubr.f32.mxu0 0.0
        %2404 = vmatmul.mubr.f32.gmra.mxu0 %v2170
        %v2405 = vpop.f32.mrf.mxu0
        %v2406 = vadd.f32 0.0, %v2405
        %v2407 = vpop.f32.mrf.mxu0
        %2408 = vmatprep.mubr.f32.mxu0 0.0
        %2409 = vmatmul.mubr.f32.gmra.mxu0 %v2171
        %v2410 = vpop.f32.mrf.mxu0
        %v2411 = vadd.f32 0.0, %v2410
        %v2412 = vpop.f32.mrf.mxu0
        %2413 = vmatprep.mubr.f32.mxu0 0.0
        %2414 = vmatmul.mubr.f32.gmra.mxu0 %v2172
        %v2415 = vpop.f32.mrf.mxu0
        %v2416 = vadd.f32 0.0, %v2415
        %v2417 = vpop.f32.mrf.mxu0
        %2418 = vmatprep.mubr.f32.mxu0 0.0
        %2419 = vmatmul.mubr.f32.gmra.mxu0 %v2173
        %v2420 = vpop.f32.mrf.mxu0
        %v2421 = vadd.f32 0.0, %v2420
        %v2422 = vpop.f32.mrf.mxu0
        %2423 = vmatprep.mubr.f32.mxu0 0.0
        %2424 = vmatmul.mubr.f32.gmra.mxu0 %v2174
        %v2425 = vpop.f32.mrf.mxu0
        %v2426 = vadd.f32 0.0, %v2425
        %v2427 = vpop.f32.mrf.mxu0
        %2428 = vmatprep.mubr.f32.mxu0 0.0
        %2429 = vmatmul.mubr.f32.gmra.mxu0 %v2175
        %v2430 = vpop.f32.mrf.mxu0
        %v2431 = vadd.f32 0.0, %v2430
        %v2432 = vpop.f32.mrf.mxu0
        %2433 = vmatprep.mubr.f32.mxu0 0.0
        %2434 = vmatmul.mubr.f32.gmra.mxu0 %v2176
        %v2435 = vpop.f32.mrf.mxu0
        %v2436 = vadd.f32 0.0, %v2435
        %v2437 = vpop.f32.mrf.mxu0
        %2438 = vmatprep.mubr.f32.mxu0 0.0
        %2439 = vmatmul.mubr.f32.gmra.mxu0 %v2177
        %v2440 = vpop.f32.mrf.mxu0
        %v2441 = vadd.f32 0.0, %v2440
        %v2442 = vpop.f32.mrf.mxu0
        %2443 = vmatprep.mubr.f32.mxu0 0.0
        %2444 = vmatmul.mubr.f32.gmra.mxu0 %v2178
        %v2445 = vpop.f32.mrf.mxu0
        %v2446 = vadd.f32 0.0, %v2445
        %v2447 = vpop.f32.mrf.mxu0
        %2448 = vmatprep.mubr.f32.mxu0 0.0
        %2449 = vmatmul.mubr.f32.gmra.mxu0 %v2179
        %v2450 = vpop.f32.mrf.mxu0
        %v2451 = vadd.f32 0.0, %v2450
        %v2452 = vpop.f32.mrf.mxu0
        %2453 = vmatprep.mubr.f32.mxu0 0.0
        %2454 = vmatmul.mubr.f32.gmra.mxu0 %v2180
        %v2455 = vpop.f32.mrf.mxu0
        %v2456 = vadd.f32 0.0, %v2455
        %v2457 = vpop.f32.mrf.mxu0
        %2458 = vmatprep.mubr.f32.mxu0 0.0
        %2459 = vmatmul.mubr.f32.gmra.mxu0 %v2181
        %v2460 = vpop.f32.mrf.mxu0
        %v2461 = vadd.f32 0.0, %v2460
        %v2462 = vpop.f32.mrf.mxu0
        %2463 = vmatprep.mubr.f32.mxu0 0.0
        %2464 = vmatmul.mubr.f32.gmra.mxu0 %v2182
        %v2465 = vpop.f32.mrf.mxu0
        %v2466 = vadd.f32 0.0, %v2465
        %v2467 = vpop.f32.mrf.mxu0
        %2468 = vmatprep.mubr.f32.mxu0 0.0
        %2469 = vmatmul.mubr.f32.gmra.mxu0 %v2183
        %v2470 = vpop.f32.mrf.mxu0
        %v2471 = vadd.f32 0.0, %v2470
        %v2472 = vpop.f32.mrf.mxu0
        %2473 = vmatprep.mubr.f32.mxu0 0.0
        %2474 = vmatmul.mubr.f32.gmra.mxu0 %v2184
        %v2475 = vpop.f32.mrf.mxu0
        %v2476 = vadd.f32 0.0, %v2475
        %v2477 = vpop.f32.mrf.mxu0
        %2478 = vmatprep.mubr.f32.mxu0 0.0
        %2479 = vmatmul.mubr.f32.gmra.mxu0 %v2185
        %v2480 = vpop.f32.mrf.mxu0
        %v2481 = vadd.f32 0.0, %v2480
        %v2482 = vpop.f32.mrf.mxu0
        %2483 = vmatprep.mubr.f32.mxu0 0.0
        %2484 = vmatmul.mubr.f32.gmra.mxu0 %v2186
        %v2485 = vpop.f32.mrf.mxu0
        %v2486 = vadd.f32 0.0, %v2485
        %v2487 = vpop.f32.mrf.mxu0
        %2488 = vmatprep.mubr.f32.mxu0 0.0
        %2489 = vmatmul.mubr.f32.gmra.mxu0 %v2187
        %v2490 = vpop.f32.mrf.mxu0
        %v2491 = vadd.f32 0.0, %v2490
        %v2492 = vpop.f32.mrf.mxu0
        %2493 = vmatprep.mubr.f32.mxu0 0.0
        %2494 = vmatmul.mubr.f32.gmra.mxu0 %v2188
        %v2495 = vpop.f32.mrf.mxu0
        %v2496 = vadd.f32 0.0, %v2495
        %v2497 = vpop.f32.mrf.mxu0
        %2498 = vmatprep.mubr.f32.mxu0 0.0
        %2499 = vmatmul.mubr.f32.gmra.mxu0 %v2189
        %v2500 = vpop.f32.mrf.mxu0
        %v2501 = vadd.f32 0.0, %v2500
        %v2502 = vpop.f32.mrf.mxu0
        %2503 = vmatprep.mubr.f32.mxu0 0.0
        %2504 = vmatmul.mubr.f32.gmra.mxu0 %v2190
        %v2505 = vpop.f32.mrf.mxu0
        %v2506 = vadd.f32 0.0, %v2505
        %v2507 = vpop.f32.mrf.mxu0
        %2508 = vmatprep.mubr.f32.mxu0 0.0
        %2509 = vmatmul.mubr.f32.gmra.mxu0 %v2191
        %v2510 = vpop.f32.mrf.mxu0
        %v2511 = vadd.f32 0.0, %v2510
        %v2512 = vpop.f32.mrf.mxu0
        %2513 = vmatprep.mubr.f32.mxu0 0.0
        %2514 = vmatmul.mubr.f32.gmra.mxu0 %v2192
        %v2515 = vpop.f32.mrf.mxu0
        %v2516 = vadd.f32 0.0, %v2515
        %v2517 = vpop.f32.mrf.mxu0
        %2518 = vmatprep.mubr.f32.mxu0 0.0
        %2519 = vmatmul.mubr.f32.gmra.mxu0 %v2193
        %v2520 = vpop.f32.mrf.mxu0
        %v2521 = vadd.f32 0.0, %v2520
        %v2522 = vpop.f32.mrf.mxu0
        %2523 = vmatprep.mubr.f32.mxu0 0.0
        %2524 = vmatmul.mubr.f32.gmra.mxu0 %v2194
        %v2525 = vpop.f32.mrf.mxu0
        %v2526 = vadd.f32 0.0, %v2525
        %v2527 = vpop.f32.mrf.mxu0
        %2528 = vmatprep.mubr.f32.mxu0 0.0
        %2529 = vmatmul.mubr.f32.gmra.mxu0 %v2195
        %v2530 = vpop.f32.mrf.mxu0
        %v2531 = vadd.f32 0.0, %v2530
        %v2532 = vpop.f32.mrf.mxu0
        %2533 = vmatprep.mubr.f32.mxu0 0.0
        %2534 = vmatmul.mubr.f32.gmra.mxu0 %v2196
        %v2535 = vpop.f32.mrf.mxu0
        %v2536 = vadd.f32 0.0, %v2535
        %v2537 = vpop.f32.mrf.mxu0
        %2538 = vmatprep.mubr.f32.mxu0 0.0
        %2539 = vmatmul.mubr.f32.gmra.mxu0 %v2197
        %v2540 = vpop.f32.mrf.mxu0
        %v2541 = vadd.f32 0.0, %v2540
        %v2542 = vpop.f32.mrf.mxu0
        %2543 = vmatprep.mubr.f32.mxu0 0.0
        %2544 = vmatmul.mubr.f32.gmra.mxu0 %v2198
        %v2545 = vpop.f32.mrf.mxu0
        %v2546 = vadd.f32 0.0, %v2545
        %v2547 = vpop.f32.mrf.mxu0
        %2548 = vmatprep.mubr.f32.mxu0 0.0
        %2549 = vmatmul.mubr.f32.gmra.mxu0 %v2199
        %v2550 = vpop.f32.mrf.mxu0
        %v2551 = vadd.f32 0.0, %v2550
        %v2552 = vpop.f32.mrf.mxu0
        %2553 = vmatprep.mubr.f32.mxu0 0.0
        %2554 = vmatmul.mubr.f32.gmra.mxu0 %v2200
        %v2555 = vpop.f32.mrf.mxu0
        %v2556 = vadd.f32 0.0, %v2555
        %v2557 = vpop.f32.mrf.mxu0
        %2558 = vmatprep.mubr.f32.mxu0 0.0
        %2559 = vmatmul.mubr.f32.gmra.mxu0 %v2201
        %v2560 = vpop.f32.mrf.mxu0
        %v2561 = vadd.f32 0.0, %v2560
        %v2562 = vpop.f32.mrf.mxu0
        %2563 = vmatprep.mubr.f32.mxu0 0.0
        %2564 = vmatmul.mubr.f32.gmra.mxu0 %v2202
        %v2565 = vpop.f32.mrf.mxu0
        %v2566 = vadd.f32 0.0, %v2565
        %v2567 = vpop.f32.mrf.mxu0
        %2568 = vmatprep.mubr.f32.mxu0 0.0
        %2569 = vmatmul.mubr.f32.gmra.mxu0 %v2203
        %v2570 = vpop.f32.mrf.mxu0
        %v2571 = vadd.f32 0.0, %v2570
        %v2572 = vpop.f32.mrf.mxu0
        %2573 = vmatprep.mubr.f32.mxu0 0.0
        %2574 = vmatmul.mubr.f32.gmra.mxu0 %v2204
        %v2575 = vpop.f32.mrf.mxu0
        %v2576 = vadd.f32 0.0, %v2575
        %v2577 = vpop.f32.mrf.mxu0
        %2578 = vmatprep.mubr.f32.mxu0 0.0
        %2579 = vmatmul.mubr.f32.gmra.mxu0 %v2205
        %v2580 = vpop.f32.mrf.mxu0
        %v2581 = vadd.f32 0.0, %v2580
        %v2582 = vpop.f32.mrf.mxu0
        %2583 = vmatprep.mubr.f32.mxu0 0.0
        %2584 = vmatmul.mubr.f32.gmra.mxu0 %v2206
        %v2585 = vpop.f32.mrf.mxu0
        %v2586 = vadd.f32 0.0, %v2585
        %v2587 = vpop.f32.mrf.mxu0
        %2588 = vmatprep.mubr.f32.mxu0 0.0
        %2589 = vmatmul.mubr.f32.gmra.mxu0 %v2207
        %v2590 = vpop.f32.mrf.mxu0
        %v2591 = vadd.f32 0.0, %v2590
        %v2592 = vpop.f32.mrf.mxu0
        %2593 = vmatprep.mubr.f32.mxu0 0.0
        %2594 = vmatmul.mubr.f32.gmra.mxu0 %v2208
        %v2595 = vpop.f32.mrf.mxu0
        %v2596 = vadd.f32 0.0, %v2595
        %v2597 = vpop.f32.mrf.mxu0
        %2598 = vmatprep.mubr.f32.mxu0 0.0
        %2599 = vmatmul.mubr.f32.gmra.mxu0 %v2209
        %v2600 = vpop.f32.mrf.mxu0
        %v2601 = vadd.f32 0.0, %v2600
        %v2602 = vpop.f32.mrf.mxu0
        %2603 = vmatprep.mubr.f32.mxu0 0.0
        %2604 = vmatmul.mubr.f32.gmra.mxu0 %v2210
        %v2605 = vpop.f32.mrf.mxu0
        %v2606 = vadd.f32 0.0, %v2605
        %v2607 = vpop.f32.mrf.mxu0
        %2608 = vmatprep.mubr.f32.mxu0 0.0
        %2609 = vmatmul.mubr.f32.gmra.mxu0 %v2211
        %v2610 = vpop.f32.mrf.mxu0
        %v2611 = vadd.f32 0.0, %v2610
        %v2612 = vpop.f32.mrf.mxu0
        %2613 = vmatprep.mubr.f32.mxu0 0.0
        %2614 = vmatmul.mubr.f32.gmra.mxu0 %v2212
        %v2615 = vpop.f32.mrf.mxu0
        %v2616 = vadd.f32 0.0, %v2615
        %v2617 = vpop.f32.mrf.mxu0
        %2618 = vmatprep.mubr.f32.mxu0 0.0
        %2619 = vmatmul.mubr.f32.gmra.mxu0 %v2213
        %v2620 = vpop.f32.mrf.mxu0
        %v2621 = vadd.f32 0.0, %v2620
        %v2622 = vpop.f32.mrf.mxu0
        %2623 = vmatprep.mubr.f32.mxu0 0.0
        %2624 = vmatmul.mubr.f32.gmra.mxu0 %v2214
        %v2625 = vpop.f32.mrf.mxu0
        %v2626 = vadd.f32 0.0, %v2625
        %v2627 = vpop.f32.mrf.mxu0
        %2628 = vmatprep.mubr.f32.mxu0 0.0
        %2629 = vmatmul.mubr.f32.gmra.mxu0 %v2215
        %v2630 = vpop.f32.mrf.mxu0
        %v2631 = vadd.f32 0.0, %v2630
        %v2632 = vpop.f32.mrf.mxu0
        %2633 = vmatprep.mubr.f32.mxu0 0.0
        %2634 = vmatmul.mubr.f32.gmra.mxu0 %v2216
        %v2635 = vpop.f32.mrf.mxu0
        %v2636 = vadd.f32 0.0, %v2635
        %v2637 = vpop.f32.mrf.mxu0
        %2638 = vmatprep.mubr.f32.mxu0 0.0
        %2639 = vmatmul.mubr.f32.gmra.mxu0 %v2217
        %v2640 = vpop.f32.mrf.mxu0
        %v2641 = vadd.f32 0.0, %v2640
        %v2642 = vpop.f32.mrf.mxu0
        %2643 = vmatprep.mubr.f32.mxu0 0.0
        %2644 = vmatmul.mubr.f32.gmra.mxu0 %v2218
        %v2645 = vpop.f32.mrf.mxu0
        %v2646 = vadd.f32 0.0, %v2645
        %v2647 = vpop.f32.mrf.mxu0
        %2648 = vmatprep.mubr.f32.mxu0 0.0
        %2649 = vmatmul.mubr.f32.gmra.mxu0 %v2219
        %v2650 = vpop.f32.mrf.mxu0
        %v2651 = vadd.f32 0.0, %v2650
        %v2652 = vpop.f32.mrf.mxu0
        %2653 = vmatprep.mubr.f32.mxu0 0.0
        %2654 = vmatmul.mubr.f32.gmra.mxu0 %v2220
        %v2655 = vpop.f32.mrf.mxu0
        %v2656 = vadd.f32 0.0, %v2655
        %v2657 = vpop.f32.mrf.mxu0
        %2658 = vmatprep.mubr.f32.mxu0 0.0
        %2659 = vmatmul.mubr.f32.gmra.mxu0 %v2221
        %v2660 = vpop.f32.mrf.mxu0
        %v2661 = vadd.f32 0.0, %v2660
        %v2662 = vpop.f32.mrf.mxu0
        %2663 = vmatprep.mubr.f32.mxu0 0.0
        %2664 = vmatmul.mubr.f32.gmra.mxu0 %v2222
        %v2665 = vpop.f32.mrf.mxu0
        %v2666 = vadd.f32 0.0, %v2665
        %v2667 = vpop.f32.mrf.mxu0
        %2668 = vmatprep.mubr.f32.mxu0 0.0
        %2669 = vmatmul.mubr.f32.gmra.mxu0 %v2223
        %v2670 = vpop.f32.mrf.mxu0
        %v2671 = vadd.f32 0.0, %v2670
        %v2672 = vpop.f32.mrf.mxu0
        %2673 = vmatprep.mubr.f32.mxu0 0.0
        %2674 = vmatmul.mubr.f32.gmra.mxu0 %v2224
        %v2675 = vpop.f32.mrf.mxu0
        %v2676 = vadd.f32 0.0, %v2675
        %v2677 = vpop.f32.mrf.mxu0
        %2678 = vmatprep.mubr.f32.mxu0 0.0
        %2679 = vmatmul.mubr.f32.gmra.mxu0 %v2225
        %v2680 = vpop.f32.mrf.mxu0
        %v2681 = vadd.f32 0.0, %v2680
        %v2682 = vpop.f32.mrf.mxu0
        %2683 = vmatprep.mubr.f32.mxu0 0.0
        %2684 = vmatmul.mubr.f32.gmra.mxu0 %v2226
        %v2685 = vpop.f32.mrf.mxu0
        %v2686 = vadd.f32 0.0, %v2685
        %v2687 = vpop.f32.mrf.mxu0
        %2688 = vmatprep.mubr.f32.mxu0 0.0
        %2689 = vmatmul.mubr.f32.gmra.mxu0 %v2227
        %v2690 = vpop.f32.mrf.mxu0
        %v2691 = vadd.f32 0.0, %v2690
        %v2692 = vpop.f32.mrf.mxu0
        %2693 = vmatprep.mubr.f32.mxu0 0.0
        %2694 = vmatmul.mubr.f32.gmra.mxu0 %v2228
        %v2695 = vpop.f32.mrf.mxu0
        %v2696 = vadd.f32 0.0, %v2695
        %v2697 = vpop.f32.mrf.mxu0
        %2698 = vmatprep.mubr.f32.mxu0 0.0
        %2699 = vmatmul.mubr.f32.gmra.mxu0 %v2229
        %v2700 = vpop.f32.mrf.mxu0
        %v2701 = vadd.f32 0.0, %v2700
        %v2702 = vpop.f32.mrf.mxu0
        %2703 = vmatprep.mubr.f32.mxu0 0.0
        %2704 = vmatmul.mubr.f32.gmra.mxu0 %v2230
        %v2705 = vpop.f32.mrf.mxu0
        %v2706 = vadd.f32 0.0, %v2705
        %v2707 = vpop.f32.mrf.mxu0
        %2708 = vmatprep.mubr.f32.mxu0 0.0
        %2709 = vmatmul.mubr.f32.gmra.mxu0 %v2231
        %v2710 = vpop.f32.mrf.mxu0
        %v2711 = vadd.f32 0.0, %v2710
        %v2712 = vpop.f32.mrf.mxu0
        %2713 = vmatprep.mubr.f32.mxu0 0.0
        %2714 = vmatmul.mubr.f32.gmra.mxu0 %v2232
        %v2715 = vpop.f32.mrf.mxu0
        %v2716 = vadd.f32 0.0, %v2715
        %v2717 = vpop.f32.mrf.mxu0
        %2718 = vmatprep.mubr.f32.mxu0 0.0
        %2719 = vmatmul.mubr.f32.gmra.mxu0 %v2233
        %v2720 = vpop.f32.mrf.mxu0
        %v2721 = vadd.f32 0.0, %v2720
        %v2722 = vpop.f32.mrf.mxu0
        %2723 = vmatprep.mubr.f32.mxu0 0.0
        %2724 = vmatmul.mubr.f32.gmra.mxu0 %v2234
        %v2725 = vpop.f32.mrf.mxu0
        %v2726 = vadd.f32 0.0, %v2725
        %v2727 = vpop.f32.mrf.mxu0
        %2728 = vmatprep.mubr.f32.mxu0 0.0
        %2729 = vmatmul.mubr.f32.gmra.mxu0 %v2235
        %v2730 = vpop.f32.mrf.mxu0
        %v2731 = vadd.f32 0.0, %v2730
        %v2732 = vpop.f32.mrf.mxu0
        %2733 = vmatprep.mubr.f32.mxu0 0.0
        %2734 = vmatmul.mubr.f32.gmra.mxu0 %v2236
        %v2735 = vpop.f32.mrf.mxu0
        %v2736 = vadd.f32 0.0, %v2735
        %v2737 = vpop.f32.mrf.mxu0
        %2738 = vmatprep.mubr.f32.mxu0 0.0
        %2739 = vmatmul.mubr.f32.gmra.mxu0 %v2237
        %v2740 = vpop.f32.mrf.mxu0
        %v2741 = vadd.f32 0.0, %v2740
        %v2742 = vpop.f32.mrf.mxu0
        %2743 = vmatprep.mubr.f32.mxu0 0.0
        %2744 = vmatmul.mubr.f32.gmra.mxu0 %v2238
        %v2745 = vpop.f32.mrf.mxu0
        %v2746 = vadd.f32 0.0, %v2745
        %v2747 = vpop.f32.mrf.mxu0
        %2748 = vmatprep.mubr.f32.mxu0 0.0
        %2749 = vmatmul.mubr.f32.gmra.mxu0 %v2239
        %v2750 = vpop.f32.mrf.mxu0
        %v2751 = vadd.f32 0.0, %v2750
        %v2752 = vpop.f32.mrf.mxu0
        %2753 = vmatprep.mubr.f32.mxu0 0.0
        %2754 = vmatmul.mubr.f32.gmra.mxu0 %v2240
        %v2755 = vpop.f32.mrf.mxu0
        %v2756 = vadd.f32 0.0, %v2755
        %v2757 = vpop.f32.mrf.mxu0
        %2758 = vmatprep.mubr.f32.mxu0 0.0
        %2759 = vmatmul.mubr.f32.gmra.mxu0 %v2241
        %v2760 = vpop.f32.mrf.mxu0
        %v2761 = vadd.f32 0.0, %v2760
        %v2762 = vpop.f32.mrf.mxu0
        %2763 = vmatprep.mubr.f32.mxu0 0.0
        %2764 = vmatmul.mubr.f32.gmra.mxu0 %v2242
        %v2765 = vpop.f32.mrf.mxu0
        %v2766 = vadd.f32 0.0, %v2765
        %v2767 = vpop.f32.mrf.mxu0
        %2768 = vmatprep.mubr.f32.mxu0 0.0
        %2769 = vmatmul.mubr.f32.gmra.mxu0 %v2243
        %v2770 = vpop.f32.mrf.mxu0
        %v2771 = vadd.f32 0.0, %v2770
        %v2772 = vpop.f32.mrf.mxu0
        %2773 = vmatprep.mubr.f32.mxu0 0.0
        %2774 = vmatmul.mubr.f32.gmra.mxu0 %v2244
        %v2775 = vpop.f32.mrf.mxu0
        %v2776 = vadd.f32 0.0, %v2775
        %v2777 = vpop.f32.mrf.mxu0
        %2778 = vmatprep.mubr.f32.mxu0 0.0
        %2779 = vmatmul.mubr.f32.gmra.mxu0 %v2245
        %v2780 = vpop.f32.mrf.mxu0
        %v2781 = vadd.f32 0.0, %v2780
        %v2782 = vpop.f32.mrf.mxu0
        %2783 = vmatprep.mubr.f32.mxu0 0.0
        %2784 = vmatmul.mubr.f32.gmra.mxu0 %v2246
        %v2785 = vpop.f32.mrf.mxu0
        %v2786 = vadd.f32 0.0, %v2785
        %v2787 = vpop.f32.mrf.mxu0
        %2788 = vmatprep.mubr.f32.mxu0 0.0
        %2789 = vmatmul.mubr.f32.gmra.mxu0 %v2247
        %v2790 = vpop.f32.mrf.mxu0
        %v2791 = vadd.f32 0.0, %v2790
        %v2792 = vpop.f32.mrf.mxu0
        %2793 = vmatprep.mubr.f32.mxu0 0.0
        %2794 = vmatmul.mubr.f32.gmra.mxu0 %v2248
        %v2795 = vpop.f32.mrf.mxu0
        %v2796 = vadd.f32 0.0, %v2795
        %v2797 = vpop.f32.mrf.mxu0
        %2798 = vmatprep.mubr.f32.mxu0 0.0
        %2799 = vmatmul.mubr.f32.gmra.mxu0 %v2249
        %v2800 = vpop.f32.mrf.mxu0
        %v2801 = vadd.f32 0.0, %v2800
        %v2802 = vpop.f32.mrf.mxu0
        %2803 = vmatprep.mubr.f32.mxu0 0.0
        %2804 = vmatmul.mubr.f32.gmra.mxu0 %v2250
        %v2805 = vpop.f32.mrf.mxu0
        %v2806 = vadd.f32 0.0, %v2805
        %v2807 = vpop.f32.mrf.mxu0
        %2808 = vmatprep.mubr.f32.mxu0 0.0
        %2809 = vmatmul.mubr.f32.gmra.mxu0 %v2251
        %v2810 = vpop.f32.mrf.mxu0
        %v2811 = vadd.f32 0.0, %v2810
        %v2812 = vpop.f32.mrf.mxu0
        %2813 = vmatprep.mubr.f32.mxu0 0.0
        %2814 = vmatmul.mubr.f32.gmra.mxu0 %v2252
        %v2815 = vpop.f32.mrf.mxu0
        %v2816 = vadd.f32 0.0, %v2815
        %v2817 = vpop.f32.mrf.mxu0
        %2818 = vmatprep.mubr.f32.mxu0 0.0
        %2819 = vmatmul.mubr.f32.gmra.mxu0 %v2253
        %v2820 = vpop.f32.mrf.mxu0
        %v2821 = vadd.f32 0.0, %v2820
        %v2822 = vpop.f32.mrf.mxu0
        %2823 = vmatprep.mubr.f32.mxu0 0.0
        %2824 = vmatmul.mubr.f32.gmra.mxu0 %v2254
        %v2825 = vpop.f32.mrf.mxu0
        %v2826 = vadd.f32 0.0, %v2825
        %v2827 = vpop.f32.mrf.mxu0
        %2828 = vmatprep.mubr.f32.mxu0 0.0
        %2829 = vmatmul.mubr.f32.gmra.mxu0 %v2255
        %v2830 = vpop.f32.mrf.mxu0
        %v2831 = vadd.f32 0.0, %v2830
        %v2832 = vpop.f32.mrf.mxu0
        %2833 = vmatprep.mubr.f32.mxu0 0.0
        %2834 = vmatmul.mubr.f32.gmra.mxu0 %v2256
        %v2835 = vpop.f32.mrf.mxu0
        %v2836 = vadd.f32 0.0, %v2835
        %v2837 = vpop.f32.mrf.mxu0
        %2838 = vdwg.mxu0
        %v2839 = vadd.f32 %v1957, %v2341
        %v2840 = vadd.f32 %v1958, %v2346
        %v2841 = vadd.f32 %v1959, %v2351
        %v2842 = vadd.f32 %v1960, %v2356
        %v2843 = vadd.f32 %v1961, %v2361
        %v2844 = vadd.f32 %v1962, %v2366
        %v2845 = vadd.f32 %v1963, %v2371
        %v2846 = vadd.f32 %v1964, %v2376
        %v2847 = vadd.f32 %v1965, %v2381
        %v2848 = vadd.f32 %v1966, %v2386
        %v2849 = vadd.f32 %v1967, %v2391
        %v2850 = vadd.f32 %v1968, %v2396
        %v2851 = vadd.f32 %v1969, %v2401
        %v2852 = vadd.f32 %v1970, %v2406
        %v2853 = vadd.f32 %v1971, %v2411
        %v2854 = vadd.f32 %v1972, %v2416
        %v2855 = vadd.f32 %v1973, %v2421
        %v2856 = vadd.f32 %v1974, %v2426
        %v2857 = vadd.f32 %v1975, %v2431
        %v2858 = vadd.f32 %v1976, %v2436
        %v2859 = vadd.f32 %v1977, %v2441
        %v2860 = vadd.f32 %v1978, %v2446
        %v2861 = vadd.f32 %v1979, %v2451
        %v2862 = vadd.f32 %v1980, %v2456
        %v2863 = vadd.f32 %v1981, %v2461
        %v2864 = vadd.f32 %v1982, %v2466
        %v2865 = vadd.f32 %v1983, %v2471
        %v2866 = vadd.f32 %v1984, %v2476
        %v2867 = vadd.f32 %v1985, %v2481
        %v2868 = vadd.f32 %v1986, %v2486
        %v2869 = vadd.f32 %v1987, %v2491
        %v2870 = vadd.f32 %v1988, %v2496
        %v2871 = vadd.f32 %v1989, %v2501
        %v2872 = vadd.f32 %v1990, %v2506
        %v2873 = vadd.f32 %v1991, %v2511
        %v2874 = vadd.f32 %v1992, %v2516
        %v2875 = vadd.f32 %v1993, %v2521
        %v2876 = vadd.f32 %v1994, %v2526
        %v2877 = vadd.f32 %v1995, %v2531
        %v2878 = vadd.f32 %v1996, %v2536
        %v2879 = vadd.f32 %v1997, %v2541
        %v2880 = vadd.f32 %v1998, %v2546
        %v2881 = vadd.f32 %v1999, %v2551
        %v2882 = vadd.f32 %v2000, %v2556
        %v2883 = vadd.f32 %v2001, %v2561
        %v2884 = vadd.f32 %v2002, %v2566
        %v2885 = vadd.f32 %v2003, %v2571
        %v2886 = vadd.f32 %v2004, %v2576
        %v2887 = vadd.f32 %v2005, %v2581
        %v2888 = vadd.f32 %v2006, %v2586
        %v2889 = vadd.f32 %v2007, %v2591
        %v2890 = vadd.f32 %v2008, %v2596
        %v2891 = vadd.f32 %v2009, %v2601
        %v2892 = vadd.f32 %v2010, %v2606
        %v2893 = vadd.f32 %v2011, %v2611
        %v2894 = vadd.f32 %v2012, %v2616
        %v2895 = vadd.f32 %v2013, %v2621
        %v2896 = vadd.f32 %v2014, %v2626
        %v2897 = vadd.f32 %v2015, %v2631
        %v2898 = vadd.f32 %v2016, %v2636
        %v2899 = vadd.f32 %v2017, %v2641
        %v2900 = vadd.f32 %v2018, %v2646
        %v2901 = vadd.f32 %v2019, %v2651
        %v2902 = vadd.f32 %v2020, %v2656
        %v2903 = vadd.f32 %v2021, %v2661
        %v2904 = vadd.f32 %v2022, %v2666
        %v2905 = vadd.f32 %v2023, %v2671
        %v2906 = vadd.f32 %v2024, %v2676
        %v2907 = vadd.f32 %v2025, %v2681
        %v2908 = vadd.f32 %v2026, %v2686
        %v2909 = vadd.f32 %v2027, %v2691
        %v2910 = vadd.f32 %v2028, %v2696
        %v2911 = vadd.f32 %v2029, %v2701
        %v2912 = vadd.f32 %v2030, %v2706
        %v2913 = vadd.f32 %v2031, %v2711
        %v2914 = vadd.f32 %v2032, %v2716
        %v2915 = vadd.f32 %v2033, %v2721
        %v2916 = vadd.f32 %v2034, %v2726
        %v2917 = vadd.f32 %v2035, %v2731
        %v2918 = vadd.f32 %v2036, %v2736
        %v2919 = vadd.f32 %v2037, %v2741
        %v2920 = vadd.f32 %v2038, %v2746
        %v2921 = vadd.f32 %v2039, %v2751
        %v2922 = vadd.f32 %v2040, %v2756
        %v2923 = vadd.f32 %v2041, %v2761
        %v2924 = vadd.f32 %v2042, %v2766
        %v2925 = vadd.f32 %v2043, %v2771
        %v2926 = vadd.f32 %v2044, %v2776
        %v2927 = vadd.f32 %v2045, %v2781
        %v2928 = vadd.f32 %v2046, %v2786
        %v2929 = vadd.f32 %v2047, %v2791
        %v2930 = vadd.f32 %v2048, %v2796
        %v2931 = vadd.f32 %v2049, %v2801
        %v2932 = vadd.f32 %v2050, %v2806
        %v2933 = vadd.f32 %v2051, %v2811
        %v2934 = vadd.f32 %v2052, %v2816
        %v2935 = vadd.f32 %v2053, %v2821
        %v2936 = vadd.f32 %v2054, %v2826
        %v2937 = vadd.f32 %v2055, %v2831
        %v2938 = vadd.f32 %v2056, %v2836
        %v2939 = vmax.f32 %v2057, %v2157
        %v2940 = vmax.f32 %v2058, %v2158
        %v2941 = vmax.f32 %v2059, %v2159
        %v2942 = vmax.f32 %v2060, %v2160
        %v2943 = vmax.f32 %v2061, %v2161
        %v2944 = vmax.f32 %v2062, %v2162
        %v2945 = vmax.f32 %v2063, %v2163
        %v2946 = vmax.f32 %v2064, %v2164
        %v2947 = vmax.f32 %v2065, %v2165
        %v2948 = vmax.f32 %v2066, %v2166
        %v2949 = vmax.f32 %v2067, %v2167
        %v2950 = vmax.f32 %v2068, %v2168
        %v2951 = vmax.f32 %v2069, %v2169
        %v2952 = vmax.f32 %v2070, %v2170
        %v2953 = vmax.f32 %v2071, %v2171
        %v2954 = vmax.f32 %v2072, %v2172
        %v2955 = vmax.f32 %v2073, %v2173
        %v2956 = vmax.f32 %v2074, %v2174
        %v2957 = vmax.f32 %v2075, %v2175
        %v2958 = vmax.f32 %v2076, %v2176
        %v2959 = vmax.f32 %v2077, %v2177
        %v2960 = vmax.f32 %v2078, %v2178
        %v2961 = vmax.f32 %v2079, %v2179
        %v2962 = vmax.f32 %v2080, %v2180
        %v2963 = vmax.f32 %v2081, %v2181
        %v2964 = vmax.f32 %v2082, %v2182
        %v2965 = vmax.f32 %v2083, %v2183
        %v2966 = vmax.f32 %v2084, %v2184
        %v2967 = vmax.f32 %v2085, %v2185
        %v2968 = vmax.f32 %v2086, %v2186
        %v2969 = vmax.f32 %v2087, %v2187
        %v2970 = vmax.f32 %v2088, %v2188
        %v2971 = vmax.f32 %v2089, %v2189
        %v2972 = vmax.f32 %v2090, %v2190
        %v2973 = vmax.f32 %v2091, %v2191
        %v2974 = vmax.f32 %v2092, %v2192
        %v2975 = vmax.f32 %v2093, %v2193
        %v2976 = vmax.f32 %v2094, %v2194
        %v2977 = vmax.f32 %v2095, %v2195
        %v2978 = vmax.f32 %v2096, %v2196
        %v2979 = vmax.f32 %v2097, %v2197
        %v2980 = vmax.f32 %v2098, %v2198
        %v2981 = vmax.f32 %v2099, %v2199
        %v2982 = vmax.f32 %v2100, %v2200
        %v2983 = vmax.f32 %v2101, %v2201
        %v2984 = vmax.f32 %v2102, %v2202
        %v2985 = vmax.f32 %v2103, %v2203
        %v2986 = vmax.f32 %v2104, %v2204
        %v2987 = vmax.f32 %v2105, %v2205
        %v2988 = vmax.f32 %v2106, %v2206
        %v2989 = vmax.f32 %v2107, %v2207
        %v2990 = vmax.f32 %v2108, %v2208
        %v2991 = vmax.f32 %v2109, %v2209
        %v2992 = vmax.f32 %v2110, %v2210
        %v2993 = vmax.f32 %v2111, %v2211
        %v2994 = vmax.f32 %v2112, %v2212
        %v2995 = vmax.f32 %v2113, %v2213
        %v2996 = vmax.f32 %v2114, %v2214
        %v2997 = vmax.f32 %v2115, %v2215
        %v2998 = vmax.f32 %v2116, %v2216
        %v2999 = vmax.f32 %v2117, %v2217
        %v3000 = vmax.f32 %v2118, %v2218
        %v3001 = vmax.f32 %v2119, %v2219
        %v3002 = vmax.f32 %v2120, %v2220
        %v3003 = vmax.f32 %v2121, %v2221
        %v3004 = vmax.f32 %v2122, %v2222
        %v3005 = vmax.f32 %v2123, %v2223
        %v3006 = vmax.f32 %v2124, %v2224
        %v3007 = vmax.f32 %v2125, %v2225
        %v3008 = vmax.f32 %v2126, %v2226
        %v3009 = vmax.f32 %v2127, %v2227
        %v3010 = vmax.f32 %v2128, %v2228
        %v3011 = vmax.f32 %v2129, %v2229
        %v3012 = vmax.f32 %v2130, %v2230
        %v3013 = vmax.f32 %v2131, %v2231
        %v3014 = vmax.f32 %v2132, %v2232
        %v3015 = vmax.f32 %v2133, %v2233
        %v3016 = vmax.f32 %v2134, %v2234
        %v3017 = vmax.f32 %v2135, %v2235
        %v3018 = vmax.f32 %v2136, %v2236
        %v3019 = vmax.f32 %v2137, %v2237
        %v3020 = vmax.f32 %v2138, %v2238
        %v3021 = vmax.f32 %v2139, %v2239
        %v3022 = vmax.f32 %v2140, %v2240
        %v3023 = vmax.f32 %v2141, %v2241
        %v3024 = vmax.f32 %v2142, %v2242
        %v3025 = vmax.f32 %v2143, %v2243
        %v3026 = vmax.f32 %v2144, %v2244
        %v3027 = vmax.f32 %v2145, %v2245
        %v3028 = vmax.f32 %v2146, %v2246
        %v3029 = vmax.f32 %v2147, %v2247
        %v3030 = vmax.f32 %v2148, %v2248
        %v3031 = vmax.f32 %v2149, %v2249
        %v3032 = vmax.f32 %v2150, %v2250
        %v3033 = vmax.f32 %v2151, %v2251
        %v3034 = vmax.f32 %v2152, %v2252
        %v3035 = vmax.f32 %v2153, %v2253
        %v3036 = vmax.f32 %v2154, %v2254
        %v3037 = vmax.f32 %v2155, %v2255
        %v3038 = vmax.f32 %v2156, %v2256
        %v3039 = vmax.f32 %v2839, 0.0
        %v3040 = vmax.f32 %v2840, 0.0
        %v3041 = vmax.f32 %v2841, 0.0
        %v3042 = vmax.f32 %v2842, 0.0
        %v3043 = vmax.f32 %v2843, 0.0
        %v3044 = vmax.f32 %v2844, 0.0
        %v3045 = vmax.f32 %v2845, 0.0
        %v3046 = vmax.f32 %v2846, 0.0
        %v3047 = vmax.f32 %v2847, 0.0
        %v3048 = vmax.f32 %v2848, 0.0
        %v3049 = vmax.f32 %v2849, 0.0
        %v3050 = vmax.f32 %v2850, 0.0
        %v3051 = vmax.f32 %v2851, 0.0
        %v3052 = vmax.f32 %v2852, 0.0
        %v3053 = vmax.f32 %v2853, 0.0
        %v3054 = vmax.f32 %v2854, 0.0
        %v3055 = vmax.f32 %v2855, 0.0
        %v3056 = vmax.f32 %v2856, 0.0
        %v3057 = vmax.f32 %v2857, 0.0
        %v3058 = vmax.f32 %v2858, 0.0
        %v3059 = vmax.f32 %v2859, 0.0
        %v3060 = vmax.f32 %v2860, 0.0
        %v3061 = vmax.f32 %v2861, 0.0
        %v3062 = vmax.f32 %v2862, 0.0
        %v3063 = vmax.f32 %v2863, 0.0
        %v3064 = vmax.f32 %v2864, 0.0
        %v3065 = vmax.f32 %v2865, 0.0
        %v3066 = vmax.f32 %v2866, 0.0
        %v3067 = vmax.f32 %v2867, 0.0
        %v3068 = vmax.f32 %v2868, 0.0
        %v3069 = vmax.f32 %v2869, 0.0
        %v3070 = vmax.f32 %v2870, 0.0
        %v3071 = vmax.f32 %v2871, 0.0
        %v3072 = vmax.f32 %v2872, 0.0
        %v3073 = vmax.f32 %v2873, 0.0
        %v3074 = vmax.f32 %v2874, 0.0
        %v3075 = vmax.f32 %v2875, 0.0
        %v3076 = vmax.f32 %v2876, 0.0
        %v3077 = vmax.f32 %v2877, 0.0
        %v3078 = vmax.f32 %v2878, 0.0
        %v3079 = vmax.f32 %v2879, 0.0
        %v3080 = vmax.f32 %v2880, 0.0
        %v3081 = vmax.f32 %v2881, 0.0
        %v3082 = vmax.f32 %v2882, 0.0
        %v3083 = vmax.f32 %v2883, 0.0
        %v3084 = vmax.f32 %v2884, 0.0
        %v3085 = vmax.f32 %v2885, 0.0
        %v3086 = vmax.f32 %v2886, 0.0
        %v3087 = vmax.f32 %v2887, 0.0
        %v3088 = vmax.f32 %v2888, 0.0
        %v3089 = vmax.f32 %v2889, 0.0
        %v3090 = vmax.f32 %v2890, 0.0
        %v3091 = vmax.f32 %v2891, 0.0
        %v3092 = vmax.f32 %v2892, 0.0
        %v3093 = vmax.f32 %v2893, 0.0
        %v3094 = vmax.f32 %v2894, 0.0
        %v3095 = vmax.f32 %v2895, 0.0
        %v3096 = vmax.f32 %v2896, 0.0
        %v3097 = vmax.f32 %v2897, 0.0
        %v3098 = vmax.f32 %v2898, 0.0
        %v3099 = vmax.f32 %v2899, 0.0
        %v3100 = vmax.f32 %v2900, 0.0
        %v3101 = vmax.f32 %v2901, 0.0
        %v3102 = vmax.f32 %v2902, 0.0
        %v3103 = vmax.f32 %v2903, 0.0
        %v3104 = vmax.f32 %v2904, 0.0
        %v3105 = vmax.f32 %v2905, 0.0
        %v3106 = vmax.f32 %v2906, 0.0
        %v3107 = vmax.f32 %v2907, 0.0
        %v3108 = vmax.f32 %v2908, 0.0
        %v3109 = vmax.f32 %v2909, 0.0
        %v3110 = vmax.f32 %v2910, 0.0
        %v3111 = vmax.f32 %v2911, 0.0
        %v3112 = vmax.f32 %v2912, 0.0
        %v3113 = vmax.f32 %v2913, 0.0
        %v3114 = vmax.f32 %v2914, 0.0
        %v3115 = vmax.f32 %v2915, 0.0
        %v3116 = vmax.f32 %v2916, 0.0
        %v3117 = vmax.f32 %v2917, 0.0
        %v3118 = vmax.f32 %v2918, 0.0
        %v3119 = vmax.f32 %v2919, 0.0
        %v3120 = vmax.f32 %v2920, 0.0
        %v3121 = vmax.f32 %v2921, 0.0
        %v3122 = vmax.f32 %v2922, 0.0
        %v3123 = vmax.f32 %v2923, 0.0
        %v3124 = vmax.f32 %v2924, 0.0
        %v3125 = vmax.f32 %v2925, 0.0
        %v3126 = vmax.f32 %v2926, 0.0
        %v3127 = vmax.f32 %v2927, 0.0
        %v3128 = vmax.f32 %v2928, 0.0
        %v3129 = vmax.f32 %v2929, 0.0
        %v3130 = vmax.f32 %v2930, 0.0
        %v3131 = vmax.f32 %v2931, 0.0
        %v3132 = vmax.f32 %v2932, 0.0
        %v3133 = vmax.f32 %v2933, 0.0
        %v3134 = vmax.f32 %v2934, 0.0
        %v3135 = vmax.f32 %v2935, 0.0
        %v3136 = vmax.f32 %v2936, 0.0
        %v3137 = vmax.f32 %v2937, 0.0
        %v3138 = vmax.f32 %v2938, 0.0
        %v3139 = vadd.f32 %v3039, %v2939
        %v3140 = vadd.f32 %v3040, %v2940
        %v3141 = vadd.f32 %v3041, %v2941
        %v3142 = vadd.f32 %v3042, %v2942
        %v3143 = vadd.f32 %v3043, %v2943
        %v3144 = vadd.f32 %v3044, %v2944
        %v3145 = vadd.f32 %v3045, %v2945
        %v3146 = vadd.f32 %v3046, %v2946
        %v3147 = vadd.f32 %v3047, %v2947
        %v3148 = vadd.f32 %v3048, %v2948
        %v3149 = vadd.f32 %v3049, %v2949
        %v3150 = vadd.f32 %v3050, %v2950
        %v3151 = vadd.f32 %v3051, %v2951
        %v3152 = vadd.f32 %v3052, %v2952
        %v3153 = vadd.f32 %v3053, %v2953
        %v3154 = vadd.f32 %v3054, %v2954
        %v3155 = vadd.f32 %v3055, %v2955
        %v3156 = vadd.f32 %v3056, %v2956
        %v3157 = vadd.f32 %v3057, %v2957
        %v3158 = vadd.f32 %v3058, %v2958
        %v3159 = vadd.f32 %v3059, %v2959
        %v3160 = vadd.f32 %v3060, %v2960
        %v3161 = vadd.f32 %v3061, %v2961
        %v3162 = vadd.f32 %v3062, %v2962
        %v3163 = vadd.f32 %v3063, %v2963
        %v3164 = vadd.f32 %v3064, %v2964
        %v3165 = vadd.f32 %v3065, %v2965
        %v3166 = vadd.f32 %v3066, %v2966
        %v3167 = vadd.f32 %v3067, %v2967
        %v3168 = vadd.f32 %v3068, %v2968
        %v3169 = vadd.f32 %v3069, %v2969
        %v3170 = vadd.f32 %v3070, %v2970
        %v3171 = vadd.f32 %v3071, %v2971
        %v3172 = vadd.f32 %v3072, %v2972
        %v3173 = vadd.f32 %v3073, %v2973
        %v3174 = vadd.f32 %v3074, %v2974
        %v3175 = vadd.f32 %v3075, %v2975
        %v3176 = vadd.f32 %v3076, %v2976
        %v3177 = vadd.f32 %v3077, %v2977
        %v3178 = vadd.f32 %v3078, %v2978
        %v3179 = vadd.f32 %v3079, %v2979
        %v3180 = vadd.f32 %v3080, %v2980
        %v3181 = vadd.f32 %v3081, %v2981
        %v3182 = vadd.f32 %v3082, %v2982
        %v3183 = vadd.f32 %v3083, %v2983
        %v3184 = vadd.f32 %v3084, %v2984
        %v3185 = vadd.f32 %v3085, %v2985
        %v3186 = vadd.f32 %v3086, %v2986
        %v3187 = vadd.f32 %v3087, %v2987
        %v3188 = vadd.f32 %v3088, %v2988
        %v3189 = vadd.f32 %v3089, %v2989
        %v3190 = vadd.f32 %v3090, %v2990
        %v3191 = vadd.f32 %v3091, %v2991
        %v3192 = vadd.f32 %v3092, %v2992
        %v3193 = vadd.f32 %v3093, %v2993
        %v3194 = vadd.f32 %v3094, %v2994
        %v3195 = vadd.f32 %v3095, %v2995
        %v3196 = vadd.f32 %v3096, %v2996
        %v3197 = vadd.f32 %v3097, %v2997
        %v3198 = vadd.f32 %v3098, %v2998
        %v3199 = vadd.f32 %v3099, %v2999
        %v3200 = vadd.f32 %v3100, %v3000
        %v3201 = vadd.f32 %v3101, %v3001
        %v3202 = vadd.f32 %v3102, %v3002
        %v3203 = vadd.f32 %v3103, %v3003
        %v3204 = vadd.f32 %v3104, %v3004
        %v3205 = vadd.f32 %v3105, %v3005
        %v3206 = vadd.f32 %v3106, %v3006
        %v3207 = vadd.f32 %v3107, %v3007
        %v3208 = vadd.f32 %v3108, %v3008
        %v3209 = vadd.f32 %v3109, %v3009
        %v3210 = vadd.f32 %v3110, %v3010
        %v3211 = vadd.f32 %v3111, %v3011
        %v3212 = vadd.f32 %v3112, %v3012
        %v3213 = vadd.f32 %v3113, %v3013
        %v3214 = vadd.f32 %v3114, %v3014
        %v3215 = vadd.f32 %v3115, %v3015
        %v3216 = vadd.f32 %v3116, %v3016
        %v3217 = vadd.f32 %v3117, %v3017
        %v3218 = vadd.f32 %v3118, %v3018
        %v3219 = vadd.f32 %v3119, %v3019
        %v3220 = vadd.f32 %v3120, %v3020
        %v3221 = vadd.f32 %v3121, %v3021
        %v3222 = vadd.f32 %v3122, %v3022
        %v3223 = vadd.f32 %v3123, %v3023
        %v3224 = vadd.f32 %v3124, %v3024
        %v3225 = vadd.f32 %v3125, %v3025
        %v3226 = vadd.f32 %v3126, %v3026
        %v3227 = vadd.f32 %v3127, %v3027
        %v3228 = vadd.f32 %v3128, %v3028
        %v3229 = vadd.f32 %v3129, %v3029
        %v3230 = vadd.f32 %v3130, %v3030
        %v3231 = vadd.f32 %v3131, %v3031
        %v3232 = vadd.f32 %v3132, %v3032
        %v3233 = vadd.f32 %v3133, %v3033
        %v3234 = vadd.f32 %v3134, %v3034
        %v3235 = vadd.f32 %v3135, %v3035
        %v3236 = vadd.f32 %v3136, %v3036
        %v3237 = vadd.f32 %v3137, %v3037
        %v3238 = vadd.f32 %v3138, %v3038
        %v3239 = vadd.f32 %v3139, %v2157
        %v3240 = vadd.f32 %v3140, %v2158
        %v3241 = vadd.f32 %v3141, %v2159
        %v3242 = vadd.f32 %v3142, %v2160
        %v3243 = vadd.f32 %v3143, %v2161
        %v3244 = vadd.f32 %v3144, %v2162
        %v3245 = vadd.f32 %v3145, %v2163
        %v3246 = vadd.f32 %v3146, %v2164
        %v3247 = vadd.f32 %v3147, %v2165
        %v3248 = vadd.f32 %v3148, %v2166
        %v3249 = vadd.f32 %v3149, %v2167
        %v3250 = vadd.f32 %v3150, %v2168
        %v3251 = vadd.f32 %v3151, %v2169
        %v3252 = vadd.f32 %v3152, %v2170
        %v3253 = vadd.f32 %v3153, %v2171
        %v3254 = vadd.f32 %v3154, %v2172
        %v3255 = vadd.f32 %v3155, %v2173
        %v3256 = vadd.f32 %v3156, %v2174
        %v3257 = vadd.f32 %v3157, %v2175
        %v3258 = vadd.f32 %v3158, %v2176
        %v3259 = vadd.f32 %v3159, %v2177
        %v3260 = vadd.f32 %v3160, %v2178
        %v3261 = vadd.f32 %v3161, %v2179
        %v3262 = vadd.f32 %v3162, %v2180
        %v3263 = vadd.f32 %v3163, %v2181
        %v3264 = vadd.f32 %v3164, %v2182
        %v3265 = vadd.f32 %v3165, %v2183
        %v3266 = vadd.f32 %v3166, %v2184
        %v3267 = vadd.f32 %v3167, %v2185
        %v3268 = vadd.f32 %v3168, %v2186
        %v3269 = vadd.f32 %v3169, %v2187
        %v3270 = vadd.f32 %v3170, %v2188
        %v3271 = vadd.f32 %v3171, %v2189
        %v3272 = vadd.f32 %v3172, %v2190
        %v3273 = vadd.f32 %v3173, %v2191
        %v3274 = vadd.f32 %v3174, %v2192
        %v3275 = vadd.f32 %v3175, %v2193
        %v3276 = vadd.f32 %v3176, %v2194
        %v3277 = vadd.f32 %v3177, %v2195
        %v3278 = vadd.f32 %v3178, %v2196
        %v3279 = vadd.f32 %v3179, %v2197
        %v3280 = vadd.f32 %v3180, %v2198
        %v3281 = vadd.f32 %v3181, %v2199
        %v3282 = vadd.f32 %v3182, %v2200
        %v3283 = vadd.f32 %v3183, %v2201
        %v3284 = vadd.f32 %v3184, %v2202
        %v3285 = vadd.f32 %v3185, %v2203
        %v3286 = vadd.f32 %v3186, %v2204
        %v3287 = vadd.f32 %v3187, %v2205
        %v3288 = vadd.f32 %v3188, %v2206
        %v3289 = vadd.f32 %v3189, %v2207
        %v3290 = vadd.f32 %v3190, %v2208
        %v3291 = vadd.f32 %v3191, %v2209
        %v3292 = vadd.f32 %v3192, %v2210
        %v3293 = vadd.f32 %v3193, %v2211
        %v3294 = vadd.f32 %v3194, %v2212
        %v3295 = vadd.f32 %v3195, %v2213
        %v3296 = vadd.f32 %v3196, %v2214
        %v3297 = vadd.f32 %v3197, %v2215
        %v3298 = vadd.f32 %v3198, %v2216
        %v3299 = vadd.f32 %v3199, %v2217
        %v3300 = vadd.f32 %v3200, %v2218
        %v3301 = vadd.f32 %v3201, %v2219
        %v3302 = vadd.f32 %v3202, %v2220
        %v3303 = vadd.f32 %v3203, %v2221
        %v3304 = vadd.f32 %v3204, %v2222
        %v3305 = vadd.f32 %v3205, %v2223
        %v3306 = vadd.f32 %v3206, %v2224
        %v3307 = vadd.f32 %v3207, %v2225
        %v3308 = vadd.f32 %v3208, %v2226
        %v3309 = vadd.f32 %v3209, %v2227
        %v3310 = vadd.f32 %v3210, %v2228
        %v3311 = vadd.f32 %v3211, %v2229
        %v3312 = vadd.f32 %v3212, %v2230
        %v3313 = vadd.f32 %v3213, %v2231
        %v3314 = vadd.f32 %v3214, %v2232
        %v3315 = vadd.f32 %v3215, %v2233
        %v3316 = vadd.f32 %v3216, %v2234
        %v3317 = vadd.f32 %v3217, %v2235
        %v3318 = vadd.f32 %v3218, %v2236
        %v3319 = vadd.f32 %v3219, %v2237
        %v3320 = vadd.f32 %v3220, %v2238
        %v3321 = vadd.f32 %v3221, %v2239
        %v3322 = vadd.f32 %v3222, %v2240
        %v3323 = vadd.f32 %v3223, %v2241
        %v3324 = vadd.f32 %v3224, %v2242
        %v3325 = vadd.f32 %v3225, %v2243
        %v3326 = vadd.f32 %v3226, %v2244
        %v3327 = vadd.f32 %v3227, %v2245
        %v3328 = vadd.f32 %v3228, %v2246
        %v3329 = vadd.f32 %v3229, %v2247
        %v3330 = vadd.f32 %v3230, %v2248
        %v3331 = vadd.f32 %v3231, %v2249
        %v3332 = vadd.f32 %v3232, %v2250
        %v3333 = vadd.f32 %v3233, %v2251
        %v3334 = vadd.f32 %v3234, %v2252
        %v3335 = vadd.f32 %v3235, %v2253
        %v3336 = vadd.f32 %v3236, %v2254
        %v3337 = vadd.f32 %v3237, %v2255
        %v3338 = vadd.f32 %v3238, %v2256
        %3339 = vadd.xlane.f32.xlu0 %v3239
        %v3340 = vpop.xlane.xlu0 %3339
        %3341 = vadd.xlane.f32.xlu0 %v3240
        %v3342 = vpop.xlane.xlu0 %3341
        %3343 = vadd.xlane.f32.xlu0 %v3241
        %v3344 = vpop.xlane.xlu0 %3343
        %3345 = vadd.xlane.f32.xlu0 %v3242
        %v3346 = vpop.xlane.xlu0 %3345
        %3347 = vadd.xlane.f32.xlu0 %v3243
        %v3348 = vpop.xlane.xlu0 %3347
        %3349 = vadd.xlane.f32.xlu0 %v3244
        %v3350 = vpop.xlane.xlu0 %3349
        %3351 = vadd.xlane.f32.xlu0 %v3245
        %v3352 = vpop.xlane.xlu0 %3351
        %3353 = vadd.xlane.f32.xlu0 %v3246
        %v3354 = vpop.xlane.xlu0 %3353
        %3355 = vadd.xlane.f32.xlu0 %v3247
        %v3356 = vpop.xlane.xlu0 %3355
        %3357 = vadd.xlane.f32.xlu0 %v3248
        %v3358 = vpop.xlane.xlu0 %3357
        %3359 = vadd.xlane.f32.xlu0 %v3249
        %v3360 = vpop.xlane.xlu0 %3359
        %3361 = vadd.xlane.f32.xlu0 %v3250
        %v3362 = vpop.xlane.xlu0 %3361
        %3363 = vadd.xlane.f32.xlu0 %v3251
        %v3364 = vpop.xlane.xlu0 %3363
        %3365 = vadd.xlane.f32.xlu0 %v3252
        %v3366 = vpop.xlane.xlu0 %3365
        %3367 = vadd.xlane.f32.xlu0 %v3253
        %v3368 = vpop.xlane.xlu0 %3367
        %3369 = vadd.xlane.f32.xlu0 %v3254
        %v3370 = vpop.xlane.xlu0 %3369
        %3371 = vadd.xlane.f32.xlu0 %v3255
        %v3372 = vpop.xlane.xlu0 %3371
        %3373 = vadd.xlane.f32.xlu0 %v3256
        %v3374 = vpop.xlane.xlu0 %3373
        %3375 = vadd.xlane.f32.xlu0 %v3257
        %v3376 = vpop.xlane.xlu0 %3375
        %3377 = vadd.xlane.f32.xlu0 %v3258
        %v3378 = vpop.xlane.xlu0 %3377
        %3379 = vadd.xlane.f32.xlu0 %v3259
        %v3380 = vpop.xlane.xlu0 %3379
        %3381 = vadd.xlane.f32.xlu0 %v3260
        %v3382 = vpop.xlane.xlu0 %3381
        %3383 = vadd.xlane.f32.xlu0 %v3261
        %v3384 = vpop.xlane.xlu0 %3383
        %3385 = vadd.xlane.f32.xlu0 %v3262
        %v3386 = vpop.xlane.xlu0 %3385
        %3387 = vadd.xlane.f32.xlu0 %v3263
        %v3388 = vpop.xlane.xlu0 %3387
        %3389 = vadd.xlane.f32.xlu0 %v3264
        %v3390 = vpop.xlane.xlu0 %3389
        %3391 = vadd.xlane.f32.xlu0 %v3265
        %v3392 = vpop.xlane.xlu0 %3391
        %3393 = vadd.xlane.f32.xlu0 %v3266
        %v3394 = vpop.xlane.xlu0 %3393
        %3395 = vadd.xlane.f32.xlu0 %v3267
        %v3396 = vpop.xlane.xlu0 %3395
        %3397 = vadd.xlane.f32.xlu0 %v3268
        %v3398 = vpop.xlane.xlu0 %3397
        %3399 = vadd.xlane.f32.xlu0 %v3269
        %v3400 = vpop.xlane.xlu0 %3399
        %3401 = vadd.xlane.f32.xlu0 %v3270
        %v3402 = vpop.xlane.xlu0 %3401
        %3403 = vadd.xlane.f32.xlu0 %v3271
        %v3404 = vpop.xlane.xlu0 %3403
        %3405 = vadd.xlane.f32.xlu0 %v3272
        %v3406 = vpop.xlane.xlu0 %3405
        %3407 = vadd.xlane.f32.xlu0 %v3273
        %v3408 = vpop.xlane.xlu0 %3407
        %3409 = vadd.xlane.f32.xlu0 %v3274
        %v3410 = vpop.xlane.xlu0 %3409
        %3411 = vadd.xlane.f32.xlu0 %v3275
        %v3412 = vpop.xlane.xlu0 %3411
        %3413 = vadd.xlane.f32.xlu0 %v3276
        %v3414 = vpop.xlane.xlu0 %3413
        %3415 = vadd.xlane.f32.xlu0 %v3277
        %v3416 = vpop.xlane.xlu0 %3415
        %3417 = vadd.xlane.f32.xlu0 %v3278
        %v3418 = vpop.xlane.xlu0 %3417
        %3419 = vadd.xlane.f32.xlu0 %v3279
        %v3420 = vpop.xlane.xlu0 %3419
        %3421 = vadd.xlane.f32.xlu0 %v3280
        %v3422 = vpop.xlane.xlu0 %3421
        %3423 = vadd.xlane.f32.xlu0 %v3281
        %v3424 = vpop.xlane.xlu0 %3423
        %3425 = vadd.xlane.f32.xlu0 %v3282
        %v3426 = vpop.xlane.xlu0 %3425
        %3427 = vadd.xlane.f32.xlu0 %v3283
        %v3428 = vpop.xlane.xlu0 %3427
        %3429 = vadd.xlane.f32.xlu0 %v3284
        %v3430 = vpop.xlane.xlu0 %3429
        %3431 = vadd.xlane.f32.xlu0 %v3285
        %v3432 = vpop.xlane.xlu0 %3431
        %3433 = vadd.xlane.f32.xlu0 %v3286
        %v3434 = vpop.xlane.xlu0 %3433
        %3435 = vadd.xlane.f32.xlu0 %v3287
        %v3436 = vpop.xlane.xlu0 %3435
        %3437 = vadd.xlane.f32.xlu0 %v3288
        %v3438 = vpop.xlane.xlu0 %3437
        %3439 = vadd.xlane.f32.xlu0 %v3289
        %v3440 = vpop.xlane.xlu0 %3439
        %3441 = vadd.xlane.f32.xlu0 %v3290
        %v3442 = vpop.xlane.xlu0 %3441
        %3443 = vadd.xlane.f32.xlu0 %v3291
        %v3444 = vpop.xlane.xlu0 %3443
        %3445 = vadd.xlane.f32.xlu0 %v3292
        %v3446 = vpop.xlane.xlu0 %3445
        %3447 = vadd.xlane.f32.xlu0 %v3293
        %v3448 = vpop.xlane.xlu0 %3447
        %3449 = vadd.xlane.f32.xlu0 %v3294
        %v3450 = vpop.xlane.xlu0 %3449
        %3451 = vadd.xlane.f32.xlu0 %v3295
        %v3452 = vpop.xlane.xlu0 %3451
        %3453 = vadd.xlane.f32.xlu0 %v3296
        %v3454 = vpop.xlane.xlu0 %3453
        %3455 = vadd.xlane.f32.xlu0 %v3297
        %v3456 = vpop.xlane.xlu0 %3455
        %3457 = vadd.xlane.f32.xlu0 %v3298
        %v3458 = vpop.xlane.xlu0 %3457
        %3459 = vadd.xlane.f32.xlu0 %v3299
        %v3460 = vpop.xlane.xlu0 %3459
        %3461 = vadd.xlane.f32.xlu0 %v3300
        %v3462 = vpop.xlane.xlu0 %3461
        %3463 = vadd.xlane.f32.xlu0 %v3301
        %v3464 = vpop.xlane.xlu0 %3463
        %3465 = vadd.xlane.f32.xlu0 %v3302
        %v3466 = vpop.xlane.xlu0 %3465
        %3467 = vadd.xlane.f32.xlu0 %v3303
        %v3468 = vpop.xlane.xlu0 %3467
        %3469 = vadd.xlane.f32.xlu0 %v3304
        %v3470 = vpop.xlane.xlu0 %3469
        %3471 = vadd.xlane.f32.xlu0 %v3305
        %v3472 = vpop.xlane.xlu0 %3471
        %3473 = vadd.xlane.f32.xlu0 %v3306
        %v3474 = vpop.xlane.xlu0 %3473
        %3475 = vadd.xlane.f32.xlu0 %v3307
        %v3476 = vpop.xlane.xlu0 %3475
        %3477 = vadd.xlane.f32.xlu0 %v3308
        %v3478 = vpop.xlane.xlu0 %3477
        %3479 = vadd.xlane.f32.xlu0 %v3309
        %v3480 = vpop.xlane.xlu0 %3479
        %3481 = vadd.xlane.f32.xlu0 %v3310
        %v3482 = vpop.xlane.xlu0 %3481
        %3483 = vadd.xlane.f32.xlu0 %v3311
        %v3484 = vpop.xlane.xlu0 %3483
        %3485 = vadd.xlane.f32.xlu0 %v3312
        %v3486 = vpop.xlane.xlu0 %3485
        %3487 = vadd.xlane.f32.xlu0 %v3313
        %v3488 = vpop.xlane.xlu0 %3487
        %3489 = vadd.xlane.f32.xlu0 %v3314
        %v3490 = vpop.xlane.xlu0 %3489
        %3491 = vadd.xlane.f32.xlu0 %v3315
        %v3492 = vpop.xlane.xlu0 %3491
        %3493 = vadd.xlane.f32.xlu0 %v3316
        %v3494 = vpop.xlane.xlu0 %3493
        %3495 = vadd.xlane.f32.xlu0 %v3317
        %v3496 = vpop.xlane.xlu0 %3495
        %3497 = vadd.xlane.f32.xlu0 %v3318
        %v3498 = vpop.xlane.xlu0 %3497
        %3499 = vadd.xlane.f32.xlu0 %v3319
        %v3500 = vpop.xlane.xlu0 %3499
        %3501 = vadd.xlane.f32.xlu0 %v3320
        %v3502 = vpop.xlane.xlu0 %3501
        %3503 = vadd.xlane.f32.xlu0 %v3321
        %v3504 = vpop.xlane.xlu0 %3503
        %3505 = vadd.xlane.f32.xlu0 %v3322
        %v3506 = vpop.xlane.xlu0 %3505
        %3507 = vadd.xlane.f32.xlu0 %v3323
        %v3508 = vpop.xlane.xlu0 %3507
        %3509 = vadd.xlane.f32.xlu0 %v3324
        %v3510 = vpop.xlane.xlu0 %3509
        %3511 = vadd.xlane.f32.xlu0 %v3325
        %v3512 = vpop.xlane.xlu0 %3511
        %3513 = vadd.xlane.f32.xlu0 %v3326
        %v3514 = vpop.xlane.xlu0 %3513
        %3515 = vadd.xlane.f32.xlu0 %v3327
        %v3516 = vpop.xlane.xlu0 %3515
        %3517 = vadd.xlane.f32.xlu0 %v3328
        %v3518 = vpop.xlane.xlu0 %3517
        %3519 = vadd.xlane.f32.xlu0 %v3329
        %v3520 = vpop.xlane.xlu0 %3519
        %3521 = vadd.xlane.f32.xlu0 %v3330
        %v3522 = vpop.xlane.xlu0 %3521
        %3523 = vadd.xlane.f32.xlu0 %v3331
        %v3524 = vpop.xlane.xlu0 %3523
        %3525 = vadd.xlane.f32.xlu0 %v3332
        %v3526 = vpop.xlane.xlu0 %3525
        %3527 = vadd.xlane.f32.xlu0 %v3333
        %v3528 = vpop.xlane.xlu0 %3527
        %3529 = vadd.xlane.f32.xlu0 %v3334
        %v3530 = vpop.xlane.xlu0 %3529
        %3531 = vadd.xlane.f32.xlu0 %v3335
        %v3532 = vpop.xlane.xlu0 %3531
        %3533 = vadd.xlane.f32.xlu0 %v3336
        %v3534 = vpop.xlane.xlu0 %3533
        %3535 = vadd.xlane.f32.xlu0 %v3337
        %v3536 = vpop.xlane.xlu0 %3535
        %3537 = vadd.xlane.f32.xlu0 %v3338
        %v3538 = vpop.xlane.xlu0 %3537
        %v3539 = vmul.f32 %v3340, 0.03125
        %v3540 = vmul.f32 %v3342, 0.03125
        %v3541 = vmul.f32 %v3344, 0.03125
        %v3542 = vmul.f32 %v3346, 0.03125
        %v3543 = vmul.f32 %v3348, 0.03125
        %v3544 = vmul.f32 %v3350, 0.03125
        %v3545 = vmul.f32 %v3352, 0.03125
        %v3546 = vmul.f32 %v3354, 0.03125
        %v3547 = vmul.f32 %v3356, 0.03125
        %v3548 = vmul.f32 %v3358, 0.03125
        %v3549 = vmul.f32 %v3360, 0.03125
        %v3550 = vmul.f32 %v3362, 0.03125
        %v3551 = vmul.f32 %v3364, 0.03125
        %v3552 = vmul.f32 %v3366, 0.03125
        %v3553 = vmul.f32 %v3368, 0.03125
        %v3554 = vmul.f32 %v3370, 0.03125
        %v3555 = vmul.f32 %v3372, 0.03125
        %v3556 = vmul.f32 %v3374, 0.03125
        %v3557 = vmul.f32 %v3376, 0.03125
        %v3558 = vmul.f32 %v3378, 0.03125
        %v3559 = vmul.f32 %v3380, 0.03125
        %v3560 = vmul.f32 %v3382, 0.03125
        %v3561 = vmul.f32 %v3384, 0.03125
        %v3562 = vmul.f32 %v3386, 0.03125
        %v3563 = vmul.f32 %v3388, 0.03125
        %v3564 = vmul.f32 %v3390, 0.03125
        %v3565 = vmul.f32 %v3392, 0.03125
        %v3566 = vmul.f32 %v3394, 0.03125
        %v3567 = vmul.f32 %v3396, 0.03125
        %v3568 = vmul.f32 %v3398, 0.03125
        %v3569 = vmul.f32 %v3400, 0.03125
        %v3570 = vmul.f32 %v3402, 0.03125
        %v3571 = vmul.f32 %v3404, 0.03125
        %v3572 = vmul.f32 %v3406, 0.03125
        %v3573 = vmul.f32 %v3408, 0.03125
        %v3574 = vmul.f32 %v3410, 0.03125
        %v3575 = vmul.f32 %v3412, 0.03125
        %v3576 = vmul.f32 %v3414, 0.03125
        %v3577 = vmul.f32 %v3416, 0.03125
        %v3578 = vmul.f32 %v3418, 0.03125
        %v3579 = vmul.f32 %v3420, 0.03125
        %v3580 = vmul.f32 %v3422, 0.03125
        %v3581 = vmul.f32 %v3424, 0.03125
        %v3582 = vmul.f32 %v3426, 0.03125
        %v3583 = vmul.f32 %v3428, 0.03125
        %v3584 = vmul.f32 %v3430, 0.03125
        %v3585 = vmul.f32 %v3432, 0.03125
        %v3586 = vmul.f32 %v3434, 0.03125
        %v3587 = vmul.f32 %v3436, 0.03125
        %v3588 = vmul.f32 %v3438, 0.03125
        %v3589 = vmul.f32 %v3440, 0.03125
        %v3590 = vmul.f32 %v3442, 0.03125
        %v3591 = vmul.f32 %v3444, 0.03125
        %v3592 = vmul.f32 %v3446, 0.03125
        %v3593 = vmul.f32 %v3448, 0.03125
        %v3594 = vmul.f32 %v3450, 0.03125
        %v3595 = vmul.f32 %v3452, 0.03125
        %v3596 = vmul.f32 %v3454, 0.03125
        %v3597 = vmul.f32 %v3456, 0.03125
        %v3598 = vmul.f32 %v3458, 0.03125
        %v3599 = vmul.f32 %v3460, 0.03125
        %v3600 = vmul.f32 %v3462, 0.03125
        %v3601 = vmul.f32 %v3464, 0.03125
        %v3602 = vmul.f32 %v3466, 0.03125
        %v3603 = vmul.f32 %v3468, 0.03125
        %v3604 = vmul.f32 %v3470, 0.03125
        %v3605 = vmul.f32 %v3472, 0.03125
        %v3606 = vmul.f32 %v3474, 0.03125
        %v3607 = vmul.f32 %v3476, 0.03125
        %v3608 = vmul.f32 %v3478, 0.03125
        %v3609 = vmul.f32 %v3480, 0.03125
        %v3610 = vmul.f32 %v3482, 0.03125
        %v3611 = vmul.f32 %v3484, 0.03125
        %v3612 = vmul.f32 %v3486, 0.03125
        %v3613 = vmul.f32 %v3488, 0.03125
        %v3614 = vmul.f32 %v3490, 0.03125
        %v3615 = vmul.f32 %v3492, 0.03125
        %v3616 = vmul.f32 %v3494, 0.03125
        %v3617 = vmul.f32 %v3496, 0.03125
        %v3618 = vmul.f32 %v3498, 0.03125
        %v3619 = vmul.f32 %v3500, 0.03125
        %v3620 = vmul.f32 %v3502, 0.03125
        %v3621 = vmul.f32 %v3504, 0.03125
        %v3622 = vmul.f32 %v3506, 0.03125
        %v3623 = vmul.f32 %v3508, 0.03125
        %v3624 = vmul.f32 %v3510, 0.03125
        %v3625 = vmul.f32 %v3512, 0.03125
        %v3626 = vmul.f32 %v3514, 0.03125
        %v3627 = vmul.f32 %v3516, 0.03125
        %v3628 = vmul.f32 %v3518, 0.03125
        %v3629 = vmul.f32 %v3520, 0.03125
        %v3630 = vmul.f32 %v3522, 0.03125
        %v3631 = vmul.f32 %v3524, 0.03125
        %v3632 = vmul.f32 %v3526, 0.03125
        %v3633 = vmul.f32 %v3528, 0.03125
        %v3634 = vmul.f32 %v3530, 0.03125
        %v3635 = vmul.f32 %v3532, 0.03125
        %v3636 = vmul.f32 %v3534, 0.03125
        %v3637 = vmul.f32 %v3536, 0.03125
        %v3638 = vmul.f32 %v3538, 0.03125
        %v3639 = vmul.f32 %v3239, %v3239
        %v3640 = vmul.f32 %v3240, %v3240
        %v3641 = vmul.f32 %v3241, %v3241
        %v3642 = vmul.f32 %v3242, %v3242
        %v3643 = vmul.f32 %v3243, %v3243
        %v3644 = vmul.f32 %v3244, %v3244
        %v3645 = vmul.f32 %v3245, %v3245
        %v3646 = vmul.f32 %v3246, %v3246
        %v3647 = vmul.f32 %v3247, %v3247
        %v3648 = vmul.f32 %v3248, %v3248
        %v3649 = vmul.f32 %v3249, %v3249
        %v3650 = vmul.f32 %v3250, %v3250
        %v3651 = vmul.f32 %v3251, %v3251
        %v3652 = vmul.f32 %v3252, %v3252
        %v3653 = vmul.f32 %v3253, %v3253
        %v3654 = vmul.f32 %v3254, %v3254
        %v3655 = vmul.f32 %v3255, %v3255
        %v3656 = vmul.f32 %v3256, %v3256
        %v3657 = vmul.f32 %v3257, %v3257
        %v3658 = vmul.f32 %v3258, %v3258
        %v3659 = vmul.f32 %v3259, %v3259
        %v3660 = vmul.f32 %v3260, %v3260
        %v3661 = vmul.f32 %v3261, %v3261
        %v3662 = vmul.f32 %v3262, %v3262
        %v3663 = vmul.f32 %v3263, %v3263
        %v3664 = vmul.f32 %v3264, %v3264
        %v3665 = vmul.f32 %v3265, %v3265
        %v3666 = vmul.f32 %v3266, %v3266
        %v3667 = vmul.f32 %v3267, %v3267
        %v3668 = vmul.f32 %v3268, %v3268
        %v3669 = vmul.f32 %v3269, %v3269
        %v3670 = vmul.f32 %v3270, %v3270
        %v3671 = vmul.f32 %v3271, %v3271
        %v3672 = vmul.f32 %v3272, %v3272
        %v3673 = vmul.f32 %v3273, %v3273
        %v3674 = vmul.f32 %v3274, %v3274
        %v3675 = vmul.f32 %v3275, %v3275
        %v3676 = vmul.f32 %v3276, %v3276
        %v3677 = vmul.f32 %v3277, %v3277
        %v3678 = vmul.f32 %v3278, %v3278
        %v3679 = vmul.f32 %v3279, %v3279
        %v3680 = vmul.f32 %v3280, %v3280
        %v3681 = vmul.f32 %v3281, %v3281
        %v3682 = vmul.f32 %v3282, %v3282
        %v3683 = vmul.f32 %v3283, %v3283
        %v3684 = vmul.f32 %v3284, %v3284
        %v3685 = vmul.f32 %v3285, %v3285
        %v3686 = vmul.f32 %v3286, %v3286
        %v3687 = vmul.f32 %v3287, %v3287
        %v3688 = vmul.f32 %v3288, %v3288
        %v3689 = vmul.f32 %v3289, %v3289
        %v3690 = vmul.f32 %v3290, %v3290
        %v3691 = vmul.f32 %v3291, %v3291
        %v3692 = vmul.f32 %v3292, %v3292
        %v3693 = vmul.f32 %v3293, %v3293
        %v3694 = vmul.f32 %v3294, %v3294
        %v3695 = vmul.f32 %v3295, %v3295
        %v3696 = vmul.f32 %v3296, %v3296
        %v3697 = vmul.f32 %v3297, %v3297
        %v3698 = vmul.f32 %v3298, %v3298
        %v3699 = vmul.f32 %v3299, %v3299
        %v3700 = vmul.f32 %v3300, %v3300
        %v3701 = vmul.f32 %v3301, %v3301
        %v3702 = vmul.f32 %v3302, %v3302
        %v3703 = vmul.f32 %v3303, %v3303
        %v3704 = vmul.f32 %v3304, %v3304
        %v3705 = vmul.f32 %v3305, %v3305
        %v3706 = vmul.f32 %v3306, %v3306
        %v3707 = vmul.f32 %v3307, %v3307
        %v3708 = vmul.f32 %v3308, %v3308
        %v3709 = vmul.f32 %v3309, %v3309
        %v3710 = vmul.f32 %v3310, %v3310
        %v3711 = vmul.f32 %v3311, %v3311
        %v3712 = vmul.f32 %v3312, %v3312
        %v3713 = vmul.f32 %v3313, %v3313
        %v3714 = vmul.f32 %v3314, %v3314
        %v3715 = vmul.f32 %v3315, %v3315
        %v3716 = vmul.f32 %v3316, %v3316
        %v3717 = vmul.f32 %v3317, %v3317
        %v3718 = vmul.f32 %v3318, %v3318
        %v3719 = vmul.f32 %v3319, %v3319
        %v3720 = vmul.f32 %v3320, %v3320
        %v3721 = vmul.f32 %v3321, %v3321
        %v3722 = vmul.f32 %v3322, %v3322
        %v3723 = vmul.f32 %v3323, %v3323
        %v3724 = vmul.f32 %v3324, %v3324
        %v3725 = vmul.f32 %v3325, %v3325
        %v3726 = vmul.f32 %v3326, %v3326
        %v3727 = vmul.f32 %v3327, %v3327
        %v3728 = vmul.f32 %v3328, %v3328
        %v3729 = vmul.f32 %v3329, %v3329
        %v3730 = vmul.f32 %v3330, %v3330
        %v3731 = vmul.f32 %v3331, %v3331
        %v3732 = vmul.f32 %v3332, %v3332
        %v3733 = vmul.f32 %v3333, %v3333
        %v3734 = vmul.f32 %v3334, %v3334
        %v3735 = vmul.f32 %v3335, %v3335
        %v3736 = vmul.f32 %v3336, %v3336
        %v3737 = vmul.f32 %v3337, %v3337
        %v3738 = vmul.f32 %v3338, %v3338
        %3739 = vadd.xlane.f32.xlu0 %v3639
        %v3740 = vpop.xlane.xlu0 %3739
        %3741 = vadd.xlane.f32.xlu0 %v3640
        %v3742 = vpop.xlane.xlu0 %3741
        %3743 = vadd.xlane.f32.xlu0 %v3641
        %v3744 = vpop.xlane.xlu0 %3743
        %3745 = vadd.xlane.f32.xlu0 %v3642
        %v3746 = vpop.xlane.xlu0 %3745
        %3747 = vadd.xlane.f32.xlu0 %v3643
        %v3748 = vpop.xlane.xlu0 %3747
        %3749 = vadd.xlane.f32.xlu0 %v3644
        %v3750 = vpop.xlane.xlu0 %3749
        %3751 = vadd.xlane.f32.xlu0 %v3645
        %v3752 = vpop.xlane.xlu0 %3751
        %3753 = vadd.xlane.f32.xlu0 %v3646
        %v3754 = vpop.xlane.xlu0 %3753
        %3755 = vadd.xlane.f32.xlu0 %v3647
        %v3756 = vpop.xlane.xlu0 %3755
        %3757 = vadd.xlane.f32.xlu0 %v3648
        %v3758 = vpop.xlane.xlu0 %3757
        %3759 = vadd.xlane.f32.xlu0 %v3649
        %v3760 = vpop.xlane.xlu0 %3759
        %3761 = vadd.xlane.f32.xlu0 %v3650
        %v3762 = vpop.xlane.xlu0 %3761
        %3763 = vadd.xlane.f32.xlu0 %v3651
        %v3764 = vpop.xlane.xlu0 %3763
        %3765 = vadd.xlane.f32.xlu0 %v3652
        %v3766 = vpop.xlane.xlu0 %3765
        %3767 = vadd.xlane.f32.xlu0 %v3653
        %v3768 = vpop.xlane.xlu0 %3767
        %3769 = vadd.xlane.f32.xlu0 %v3654
        %v3770 = vpop.xlane.xlu0 %3769
        %3771 = vadd.xlane.f32.xlu0 %v3655
        %v3772 = vpop.xlane.xlu0 %3771
        %3773 = vadd.xlane.f32.xlu0 %v3656
        %v3774 = vpop.xlane.xlu0 %3773
        %3775 = vadd.xlane.f32.xlu0 %v3657
        %v3776 = vpop.xlane.xlu0 %3775
        %3777 = vadd.xlane.f32.xlu0 %v3658
        %v3778 = vpop.xlane.xlu0 %3777
        %3779 = vadd.xlane.f32.xlu0 %v3659
        %v3780 = vpop.xlane.xlu0 %3779
        %3781 = vadd.xlane.f32.xlu0 %v3660
        %v3782 = vpop.xlane.xlu0 %3781
        %3783 = vadd.xlane.f32.xlu0 %v3661
        %v3784 = vpop.xlane.xlu0 %3783
        %3785 = vadd.xlane.f32.xlu0 %v3662
        %v3786 = vpop.xlane.xlu0 %3785
        %3787 = vadd.xlane.f32.xlu0 %v3663
        %v3788 = vpop.xlane.xlu0 %3787
        %3789 = vadd.xlane.f32.xlu0 %v3664
        %v3790 = vpop.xlane.xlu0 %3789
        %3791 = vadd.xlane.f32.xlu0 %v3665
        %v3792 = vpop.xlane.xlu0 %3791
        %3793 = vadd.xlane.f32.xlu0 %v3666
        %v3794 = vpop.xlane.xlu0 %3793
        %3795 = vadd.xlane.f32.xlu0 %v3667
        %v3796 = vpop.xlane.xlu0 %3795
        %3797 = vadd.xlane.f32.xlu0 %v3668
        %v3798 = vpop.xlane.xlu0 %3797
        %3799 = vadd.xlane.f32.xlu0 %v3669
        %v3800 = vpop.xlane.xlu0 %3799
        %3801 = vadd.xlane.f32.xlu0 %v3670
        %v3802 = vpop.xlane.xlu0 %3801
        %3803 = vadd.xlane.f32.xlu0 %v3671
        %v3804 = vpop.xlane.xlu0 %3803
        %3805 = vadd.xlane.f32.xlu0 %v3672
        %v3806 = vpop.xlane.xlu0 %3805
        %3807 = vadd.xlane.f32.xlu0 %v3673
        %v3808 = vpop.xlane.xlu0 %3807
        %3809 = vadd.xlane.f32.xlu0 %v3674
        %v3810 = vpop.xlane.xlu0 %3809
        %3811 = vadd.xlane.f32.xlu0 %v3675
        %v3812 = vpop.xlane.xlu0 %3811
        %3813 = vadd.xlane.f32.xlu0 %v3676
        %v3814 = vpop.xlane.xlu0 %3813
        %3815 = vadd.xlane.f32.xlu0 %v3677
        %v3816 = vpop.xlane.xlu0 %3815
        %3817 = vadd.xlane.f32.xlu0 %v3678
        %v3818 = vpop.xlane.xlu0 %3817
        %3819 = vadd.xlane.f32.xlu0 %v3679
        %v3820 = vpop.xlane.xlu0 %3819
        %3821 = vadd.xlane.f32.xlu0 %v3680
        %v3822 = vpop.xlane.xlu0 %3821
        %3823 = vadd.xlane.f32.xlu0 %v3681
        %v3824 = vpop.xlane.xlu0 %3823
        %3825 = vadd.xlane.f32.xlu0 %v3682
        %v3826 = vpop.xlane.xlu0 %3825
        %3827 = vadd.xlane.f32.xlu0 %v3683
        %v3828 = vpop.xlane.xlu0 %3827
        %3829 = vadd.xlane.f32.xlu0 %v3684
        %v3830 = vpop.xlane.xlu0 %3829
        %3831 = vadd.xlane.f32.xlu0 %v3685
        %v3832 = vpop.xlane.xlu0 %3831
        %3833 = vadd.xlane.f32.xlu0 %v3686
        %v3834 = vpop.xlane.xlu0 %3833
        %3835 = vadd.xlane.f32.xlu0 %v3687
        %v3836 = vpop.xlane.xlu0 %3835
        %3837 = vadd.xlane.f32.xlu0 %v3688
        %v3838 = vpop.xlane.xlu0 %3837
        %3839 = vadd.xlane.f32.xlu0 %v3689
        %v3840 = vpop.xlane.xlu0 %3839
        %3841 = vadd.xlane.f32.xlu0 %v3690
        %v3842 = vpop.xlane.xlu0 %3841
        %3843 = vadd.xlane.f32.xlu0 %v3691
        %v3844 = vpop.xlane.xlu0 %3843
        %3845 = vadd.xlane.f32.xlu0 %v3692
        %v3846 = vpop.xlane.xlu0 %3845
        %3847 = vadd.xlane.f32.xlu0 %v3693
        %v3848 = vpop.xlane.xlu0 %3847
        %3849 = vadd.xlane.f32.xlu0 %v3694
        %v3850 = vpop.xlane.xlu0 %3849
        %3851 = vadd.xlane.f32.xlu0 %v3695
        %v3852 = vpop.xlane.xlu0 %3851
        %3853 = vadd.xlane.f32.xlu0 %v3696
        %v3854 = vpop.xlane.xlu0 %3853
        %3855 = vadd.xlane.f32.xlu0 %v3697
        %v3856 = vpop.xlane.xlu0 %3855
        %3857 = vadd.xlane.f32.xlu0 %v3698
        %v3858 = vpop.xlane.xlu0 %3857
        %3859 = vadd.xlane.f32.xlu0 %v3699
        %v3860 = vpop.xlane.xlu0 %3859
        %3861 = vadd.xlane.f32.xlu0 %v3700
        %v3862 = vpop.xlane.xlu0 %3861
        %3863 = vadd.xlane.f32.xlu0 %v3701
        %v3864 = vpop.xlane.xlu0 %3863
        %3865 = vadd.xlane.f32.xlu0 %v3702
        %v3866 = vpop.xlane.xlu0 %3865
        %3867 = vadd.xlane.f32.xlu0 %v3703
        %v3868 = vpop.xlane.xlu0 %3867
        %3869 = vadd.xlane.f32.xlu0 %v3704
        %v3870 = vpop.xlane.xlu0 %3869
        %3871 = vadd.xlane.f32.xlu0 %v3705
        %v3872 = vpop.xlane.xlu0 %3871
        %3873 = vadd.xlane.f32.xlu0 %v3706
        %v3874 = vpop.xlane.xlu0 %3873
        %3875 = vadd.xlane.f32.xlu0 %v3707
        %v3876 = vpop.xlane.xlu0 %3875
        %3877 = vadd.xlane.f32.xlu0 %v3708
        %v3878 = vpop.xlane.xlu0 %3877
        %3879 = vadd.xlane.f32.xlu0 %v3709
        %v3880 = vpop.xlane.xlu0 %3879
        %3881 = vadd.xlane.f32.xlu0 %v3710
        %v3882 = vpop.xlane.xlu0 %3881
        %3883 = vadd.xlane.f32.xlu0 %v3711
        %v3884 = vpop.xlane.xlu0 %3883
        %3885 = vadd.xlane.f32.xlu0 %v3712
        %v3886 = vpop.xlane.xlu0 %3885
        %3887 = vadd.xlane.f32.xlu0 %v3713
        %v3888 = vpop.xlane.xlu0 %3887
        %3889 = vadd.xlane.f32.xlu0 %v3714
        %v3890 = vpop.xlane.xlu0 %3889
        %3891 = vadd.xlane.f32.xlu0 %v3715
        %v3892 = vpop.xlane.xlu0 %3891
        %3893 = vadd.xlane.f32.xlu0 %v3716
        %v3894 = vpop.xlane.xlu0 %3893
        %3895 = vadd.xlane.f32.xlu0 %v3717
        %v3896 = vpop.xlane.xlu0 %3895
        %3897 = vadd.xlane.f32.xlu0 %v3718
        %v3898 = vpop.xlane.xlu0 %3897
        %3899 = vadd.xlane.f32.xlu0 %v3719
        %v3900 = vpop.xlane.xlu0 %3899
        %3901 = vadd.xlane.f32.xlu0 %v3720
        %v3902 = vpop.xlane.xlu0 %3901
        %3903 = vadd.xlane.f32.xlu0 %v3721
        %v3904 = vpop.xlane.xlu0 %3903
        %3905 = vadd.xlane.f32.xlu0 %v3722
        %v3906 = vpop.xlane.xlu0 %3905
        %3907 = vadd.xlane.f32.xlu0 %v3723
        %v3908 = vpop.xlane.xlu0 %3907
        %3909 = vadd.xlane.f32.xlu0 %v3724
        %v3910 = vpop.xlane.xlu0 %3909
        %3911 = vadd.xlane.f32.xlu0 %v3725
        %v3912 = vpop.xlane.xlu0 %3911
        %3913 = vadd.xlane.f32.xlu0 %v3726
        %v3914 = vpop.xlane.xlu0 %3913
        %3915 = vadd.xlane.f32.xlu0 %v3727
        %v3916 = vpop.xlane.xlu0 %3915
        %3917 = vadd.xlane.f32.xlu0 %v3728
        %v3918 = vpop.xlane.xlu0 %3917
        %3919 = vadd.xlane.f32.xlu0 %v3729
        %v3920 = vpop.xlane.xlu0 %3919
        %3921 = vadd.xlane.f32.xlu0 %v3730
        %v3922 = vpop.xlane.xlu0 %3921
        %3923 = vadd.xlane.f32.xlu0 %v3731
        %v3924 = vpop.xlane.xlu0 %3923
        %3925 = vadd.xlane.f32.xlu0 %v3732
        %v3926 = vpop.xlane.xlu0 %3925
        %3927 = vadd.xlane.f32.xlu0 %v3733
        %v3928 = vpop.xlane.xlu0 %3927
        %3929 = vadd.xlane.f32.xlu0 %v3734
        %v3930 = vpop.xlane.xlu0 %3929
        %3931 = vadd.xlane.f32.xlu0 %v3735
        %v3932 = vpop.xlane.xlu0 %3931
        %3933 = vadd.xlane.f32.xlu0 %v3736
        %v3934 = vpop.xlane.xlu0 %3933
        %3935 = vadd.xlane.f32.xlu0 %v3737
        %v3936 = vpop.xlane.xlu0 %3935
        %3937 = vadd.xlane.f32.xlu0 %v3738
        %v3938 = vpop.xlane.xlu0 %3937
        %v3939 = vmul.f32 %v3740, 0.03125
        %v3940 = vmul.f32 %v3742, 0.03125
        %v3941 = vmul.f32 %v3744, 0.03125
        %v3942 = vmul.f32 %v3746, 0.03125
        %v3943 = vmul.f32 %v3748, 0.03125
        %v3944 = vmul.f32 %v3750, 0.03125
        %v3945 = vmul.f32 %v3752, 0.03125
        %v3946 = vmul.f32 %v3754, 0.03125
        %v3947 = vmul.f32 %v3756, 0.03125
        %v3948 = vmul.f32 %v3758, 0.03125
        %v3949 = vmul.f32 %v3760, 0.03125
        %v3950 = vmul.f32 %v3762, 0.03125
        %v3951 = vmul.f32 %v3764, 0.03125
        %v3952 = vmul.f32 %v3766, 0.03125
        %v3953 = vmul.f32 %v3768, 0.03125
        %v3954 = vmul.f32 %v3770, 0.03125
        %v3955 = vmul.f32 %v3772, 0.03125
        %v3956 = vmul.f32 %v3774, 0.03125
        %v3957 = vmul.f32 %v3776, 0.03125
        %v3958 = vmul.f32 %v3778, 0.03125
        %v3959 = vmul.f32 %v3780, 0.03125
        %v3960 = vmul.f32 %v3782, 0.03125
        %v3961 = vmul.f32 %v3784, 0.03125
        %v3962 = vmul.f32 %v3786, 0.03125
        %v3963 = vmul.f32 %v3788, 0.03125
        %v3964 = vmul.f32 %v3790, 0.03125
        %v3965 = vmul.f32 %v3792, 0.03125
        %v3966 = vmul.f32 %v3794, 0.03125
        %v3967 = vmul.f32 %v3796, 0.03125
        %v3968 = vmul.f32 %v3798, 0.03125
        %v3969 = vmul.f32 %v3800, 0.03125
        %v3970 = vmul.f32 %v3802, 0.03125
        %v3971 = vmul.f32 %v3804, 0.03125
        %v3972 = vmul.f32 %v3806, 0.03125
        %v3973 = vmul.f32 %v3808, 0.03125
        %v3974 = vmul.f32 %v3810, 0.03125
        %v3975 = vmul.f32 %v3812, 0.03125
        %v3976 = vmul.f32 %v3814, 0.03125
        %v3977 = vmul.f32 %v3816, 0.03125
        %v3978 = vmul.f32 %v3818, 0.03125
        %v3979 = vmul.f32 %v3820, 0.03125
        %v3980 = vmul.f32 %v3822, 0.03125
        %v3981 = vmul.f32 %v3824, 0.03125
        %v3982 = vmul.f32 %v3826, 0.03125
        %v3983 = vmul.f32 %v3828, 0.03125
        %v3984 = vmul.f32 %v3830, 0.03125
        %v3985 = vmul.f32 %v3832, 0.03125
        %v3986 = vmul.f32 %v3834, 0.03125
        %v3987 = vmul.f32 %v3836, 0.03125
        %v3988 = vmul.f32 %v3838, 0.03125
        %v3989 = vmul.f32 %v3840, 0.03125
        %v3990 = vmul.f32 %v3842, 0.03125
        %v3991 = vmul.f32 %v3844, 0.03125
        %v3992 = vmul.f32 %v3846, 0.03125
        %v3993 = vmul.f32 %v3848, 0.03125
        %v3994 = vmul.f32 %v3850, 0.03125
        %v3995 = vmul.f32 %v3852, 0.03125
        %v3996 = vmul.f32 %v3854, 0.03125
        %v3997 = vmul.f32 %v3856, 0.03125
        %v3998 = vmul.f32 %v3858, 0.03125
        %v3999 = vmul.f32 %v3860, 0.03125
        %v4000 = vmul.f32 %v3862, 0.03125
        %v4001 = vmul.f32 %v3864, 0.03125
        %v4002 = vmul.f32 %v3866, 0.03125
        %v4003 = vmul.f32 %v3868, 0.03125
        %v4004 = vmul.f32 %v3870, 0.03125
        %v4005 = vmul.f32 %v3872, 0.03125
        %v4006 = vmul.f32 %v3874, 0.03125
        %v4007 = vmul.f32 %v3876, 0.03125
        %v4008 = vmul.f32 %v3878, 0.03125
        %v4009 = vmul.f32 %v3880, 0.03125
        %v4010 = vmul.f32 %v3882, 0.03125
        %v4011 = vmul.f32 %v3884, 0.03125
        %v4012 = vmul.f32 %v3886, 0.03125
        %v4013 = vmul.f32 %v3888, 0.03125
        %v4014 = vmul.f32 %v3890, 0.03125
        %v4015 = vmul.f32 %v3892, 0.03125
        %v4016 = vmul.f32 %v3894, 0.03125
        %v4017 = vmul.f32 %v3896, 0.03125
        %v4018 = vmul.f32 %v3898, 0.03125
        %v4019 = vmul.f32 %v3900, 0.03125
        %v4020 = vmul.f32 %v3902, 0.03125
        %v4021 = vmul.f32 %v3904, 0.03125
        %v4022 = vmul.f32 %v3906, 0.03125
        %v4023 = vmul.f32 %v3908, 0.03125
        %v4024 = vmul.f32 %v3910, 0.03125
        %v4025 = vmul.f32 %v3912, 0.03125
        %v4026 = vmul.f32 %v3914, 0.03125
        %v4027 = vmul.f32 %v3916, 0.03125
        %v4028 = vmul.f32 %v3918, 0.03125
        %v4029 = vmul.f32 %v3920, 0.03125
        %v4030 = vmul.f32 %v3922, 0.03125
        %v4031 = vmul.f32 %v3924, 0.03125
        %v4032 = vmul.f32 %v3926, 0.03125
        %v4033 = vmul.f32 %v3928, 0.03125
        %v4034 = vmul.f32 %v3930, 0.03125
        %v4035 = vmul.f32 %v3932, 0.03125
        %v4036 = vmul.f32 %v3934, 0.03125
        %v4037 = vmul.f32 %v3936, 0.03125
        %v4038 = vmul.f32 %v3938, 0.03125
        %v4039 = vsub.f32 %v3239, %v3539
        %v4040 = vsub.f32 %v3240, %v3540
        %v4041 = vsub.f32 %v3241, %v3541
        %v4042 = vsub.f32 %v3242, %v3542
        %v4043 = vsub.f32 %v3243, %v3543
        %v4044 = vsub.f32 %v3244, %v3544
        %v4045 = vsub.f32 %v3245, %v3545
        %v4046 = vsub.f32 %v3246, %v3546
        %v4047 = vsub.f32 %v3247, %v3547
        %v4048 = vsub.f32 %v3248, %v3548
        %v4049 = vsub.f32 %v3249, %v3549
        %v4050 = vsub.f32 %v3250, %v3550
        %v4051 = vsub.f32 %v3251, %v3551
        %v4052 = vsub.f32 %v3252, %v3552
        %v4053 = vsub.f32 %v3253, %v3553
        %v4054 = vsub.f32 %v3254, %v3554
        %v4055 = vsub.f32 %v3255, %v3555
        %v4056 = vsub.f32 %v3256, %v3556
        %v4057 = vsub.f32 %v3257, %v3557
        %v4058 = vsub.f32 %v3258, %v3558
        %v4059 = vsub.f32 %v3259, %v3559
        %v4060 = vsub.f32 %v3260, %v3560
        %v4061 = vsub.f32 %v3261, %v3561
        %v4062 = vsub.f32 %v3262, %v3562
        %v4063 = vsub.f32 %v3263, %v3563
        %v4064 = vsub.f32 %v3264, %v3564
        %v4065 = vsub.f32 %v3265, %v3565
        %v4066 = vsub.f32 %v3266, %v3566
        %v4067 = vsub.f32 %v3267, %v3567
        %v4068 = vsub.f32 %v3268, %v3568
        %v4069 = vsub.f32 %v3269, %v3569
        %v4070 = vsub.f32 %v3270, %v3570
        %v4071 = vsub.f32 %v3271, %v3571
        %v4072 = vsub.f32 %v3272, %v3572
        %v4073 = vsub.f32 %v3273, %v3573
        %v4074 = vsub.f32 %v3274, %v3574
        %v4075 = vsub.f32 %v3275, %v3575
        %v4076 = vsub.f32 %v3276, %v3576
        %v4077 = vsub.f32 %v3277, %v3577
        %v4078 = vsub.f32 %v3278, %v3578
        %v4079 = vsub.f32 %v3279, %v3579
        %v4080 = vsub.f32 %v3280, %v3580
        %v4081 = vsub.f32 %v3281, %v3581
        %v4082 = vsub.f32 %v3282, %v3582
        %v4083 = vsub.f32 %v3283, %v3583
        %v4084 = vsub.f32 %v3284, %v3584
        %v4085 = vsub.f32 %v3285, %v3585
        %v4086 = vsub.f32 %v3286, %v3586
        %v4087 = vsub.f32 %v3287, %v3587
        %v4088 = vsub.f32 %v3288, %v3588
        %v4089 = vsub.f32 %v3289, %v3589
        %v4090 = vsub.f32 %v3290, %v3590
        %v4091 = vsub.f32 %v3291, %v3591
        %v4092 = vsub.f32 %v3292, %v3592
        %v4093 = vsub.f32 %v3293, %v3593
        %v4094 = vsub.f32 %v3294, %v3594
        %v4095 = vsub.f32 %v3295, %v3595
        %v4096 = vsub.f32 %v3296, %v3596
        %v4097 = vsub.f32 %v3297, %v3597
        %v4098 = vsub.f32 %v3298, %v3598
        %v4099 = vsub.f32 %v3299, %v3599
        %v4100 = vsub.f32 %v3300, %v3600
        %v4101 = vsub.f32 %v3301, %v3601
        %v4102 = vsub.f32 %v3302, %v3602
        %v4103 = vsub.f32 %v3303, %v3603
        %v4104 = vsub.f32 %v3304, %v3604
        %v4105 = vsub.f32 %v3305, %v3605
        %v4106 = vsub.f32 %v3306, %v3606
        %v4107 = vsub.f32 %v3307, %v3607
        %v4108 = vsub.f32 %v3308, %v3608
        %v4109 = vsub.f32 %v3309, %v3609
        %v4110 = vsub.f32 %v3310, %v3610
        %v4111 = vsub.f32 %v3311, %v3611
        %v4112 = vsub.f32 %v3312, %v3612
        %v4113 = vsub.f32 %v3313, %v3613
        %v4114 = vsub.f32 %v3314, %v3614
        %v4115 = vsub.f32 %v3315, %v3615
        %v4116 = vsub.f32 %v3316, %v3616
        %v4117 = vsub.f32 %v3317, %v3617
        %v4118 = vsub.f32 %v3318, %v3618
        %v4119 = vsub.f32 %v3319, %v3619
        %v4120 = vsub.f32 %v3320, %v3620
        %v4121 = vsub.f32 %v3321, %v3621
        %v4122 = vsub.f32 %v3322, %v3622
        %v4123 = vsub.f32 %v3323, %v3623
        %v4124 = vsub.f32 %v3324, %v3624
        %v4125 = vsub.f32 %v3325, %v3625
        %v4126 = vsub.f32 %v3326, %v3626
        %v4127 = vsub.f32 %v3327, %v3627
        %v4128 = vsub.f32 %v3328, %v3628
        %v4129 = vsub.f32 %v3329, %v3629
        %v4130 = vsub.f32 %v3330, %v3630
        %v4131 = vsub.f32 %v3331, %v3631
        %v4132 = vsub.f32 %v3332, %v3632
        %v4133 = vsub.f32 %v3333, %v3633
        %v4134 = vsub.f32 %v3334, %v3634
        %v4135 = vsub.f32 %v3335, %v3635
        %v4136 = vsub.f32 %v3336, %v3636
        %v4137 = vsub.f32 %v3337, %v3637
        %v4138 = vsub.f32 %v3338, %v3638
        %v4139 = vmul.f32 %v3539, %v3539
        %v4140 = vmul.f32 %v3540, %v3540
        %v4141 = vmul.f32 %v3541, %v3541
        %v4142 = vmul.f32 %v3542, %v3542
        %v4143 = vmul.f32 %v3543, %v3543
        %v4144 = vmul.f32 %v3544, %v3544
        %v4145 = vmul.f32 %v3545, %v3545
        %v4146 = vmul.f32 %v3546, %v3546
        %v4147 = vmul.f32 %v3547, %v3547
        %v4148 = vmul.f32 %v3548, %v3548
        %v4149 = vmul.f32 %v3549, %v3549
        %v4150 = vmul.f32 %v3550, %v3550
        %v4151 = vmul.f32 %v3551, %v3551
        %v4152 = vmul.f32 %v3552, %v3552
        %v4153 = vmul.f32 %v3553, %v3553
        %v4154 = vmul.f32 %v3554, %v3554
        %v4155 = vmul.f32 %v3555, %v3555
        %v4156 = vmul.f32 %v3556, %v3556
        %v4157 = vmul.f32 %v3557, %v3557
        %v4158 = vmul.f32 %v3558, %v3558
        %v4159 = vmul.f32 %v3559, %v3559
        %v4160 = vmul.f32 %v3560, %v3560
        %v4161 = vmul.f32 %v3561, %v3561
        %v4162 = vmul.f32 %v3562, %v3562
        %v4163 = vmul.f32 %v3563, %v3563
        %v4164 = vmul.f32 %v3564, %v3564
        %v4165 = vmul.f32 %v3565, %v3565
        %v4166 = vmul.f32 %v3566, %v3566
        %v4167 = vmul.f32 %v3567, %v3567
        %v4168 = vmul.f32 %v3568, %v3568
        %v4169 = vmul.f32 %v3569, %v3569
        %v4170 = vmul.f32 %v3570, %v3570
        %v4171 = vmul.f32 %v3571, %v3571
        %v4172 = vmul.f32 %v3572, %v3572
        %v4173 = vmul.f32 %v3573, %v3573
        %v4174 = vmul.f32 %v3574, %v3574
        %v4175 = vmul.f32 %v3575, %v3575
        %v4176 = vmul.f32 %v3576, %v3576
        %v4177 = vmul.f32 %v3577, %v3577
        %v4178 = vmul.f32 %v3578, %v3578
        %v4179 = vmul.f32 %v3579, %v3579
        %v4180 = vmul.f32 %v3580, %v3580
        %v4181 = vmul.f32 %v3581, %v3581
        %v4182 = vmul.f32 %v3582, %v3582
        %v4183 = vmul.f32 %v3583, %v3583
        %v4184 = vmul.f32 %v3584, %v3584
        %v4185 = vmul.f32 %v3585, %v3585
        %v4186 = vmul.f32 %v3586, %v3586
        %v4187 = vmul.f32 %v3587, %v3587
        %v4188 = vmul.f32 %v3588, %v3588
        %v4189 = vmul.f32 %v3589, %v3589
        %v4190 = vmul.f32 %v3590, %v3590
        %v4191 = vmul.f32 %v3591, %v3591
        %v4192 = vmul.f32 %v3592, %v3592
        %v4193 = vmul.f32 %v3593, %v3593
        %v4194 = vmul.f32 %v3594, %v3594
        %v4195 = vmul.f32 %v3595, %v3595
        %v4196 = vmul.f32 %v3596, %v3596
        %v4197 = vmul.f32 %v3597, %v3597
        %v4198 = vmul.f32 %v3598, %v3598
        %v4199 = vmul.f32 %v3599, %v3599
        %v4200 = vmul.f32 %v3600, %v3600
        %v4201 = vmul.f32 %v3601, %v3601
        %v4202 = vmul.f32 %v3602, %v3602
        %v4203 = vmul.f32 %v3603, %v3603
        %v4204 = vmul.f32 %v3604, %v3604
        %v4205 = vmul.f32 %v3605, %v3605
        %v4206 = vmul.f32 %v3606, %v3606
        %v4207 = vmul.f32 %v3607, %v3607
        %v4208 = vmul.f32 %v3608, %v3608
        %v4209 = vmul.f32 %v3609, %v3609
        %v4210 = vmul.f32 %v3610, %v3610
        %v4211 = vmul.f32 %v3611, %v3611
        %v4212 = vmul.f32 %v3612, %v3612
        %v4213 = vmul.f32 %v3613, %v3613
        %v4214 = vmul.f32 %v3614, %v3614
        %v4215 = vmul.f32 %v3615, %v3615
        %v4216 = vmul.f32 %v3616, %v3616
        %v4217 = vmul.f32 %v3617, %v3617
        %v4218 = vmul.f32 %v3618, %v3618
        %v4219 = vmul.f32 %v3619, %v3619
        %v4220 = vmul.f32 %v3620, %v3620
        %v4221 = vmul.f32 %v3621, %v3621
        %v4222 = vmul.f32 %v3622, %v3622
        %v4223 = vmul.f32 %v3623, %v3623
        %v4224 = vmul.f32 %v3624, %v3624
        %v4225 = vmul.f32 %v3625, %v3625
        %v4226 = vmul.f32 %v3626, %v3626
        %v4227 = vmul.f32 %v3627, %v3627
        %v4228 = vmul.f32 %v3628, %v3628
        %v4229 = vmul.f32 %v3629, %v3629
        %v4230 = vmul.f32 %v3630, %v3630
        %v4231 = vmul.f32 %v3631, %v3631
        %v4232 = vmul.f32 %v3632, %v3632
        %v4233 = vmul.f32 %v3633, %v3633
        %v4234 = vmul.f32 %v3634, %v3634
        %v4235 = vmul.f32 %v3635, %v3635
        %v4236 = vmul.f32 %v3636, %v3636
        %v4237 = vmul.f32 %v3637, %v3637
        %v4238 = vmul.f32 %v3638, %v3638
        %v4239 = vsub.f32 %v3939, %v4139
        %v4240 = vsub.f32 %v3940, %v4140
        %v4241 = vsub.f32 %v3941, %v4141
        %v4242 = vsub.f32 %v3942, %v4142
        %v4243 = vsub.f32 %v3943, %v4143
        %v4244 = vsub.f32 %v3944, %v4144
        %v4245 = vsub.f32 %v3945, %v4145
        %v4246 = vsub.f32 %v3946, %v4146
        %v4247 = vsub.f32 %v3947, %v4147
        %v4248 = vsub.f32 %v3948, %v4148
        %v4249 = vsub.f32 %v3949, %v4149
        %v4250 = vsub.f32 %v3950, %v4150
        %v4251 = vsub.f32 %v3951, %v4151
        %v4252 = vsub.f32 %v3952, %v4152
        %v4253 = vsub.f32 %v3953, %v4153
        %v4254 = vsub.f32 %v3954, %v4154
        %v4255 = vsub.f32 %v3955, %v4155
        %v4256 = vsub.f32 %v3956, %v4156
        %v4257 = vsub.f32 %v3957, %v4157
        %v4258 = vsub.f32 %v3958, %v4158
        %v4259 = vsub.f32 %v3959, %v4159
        %v4260 = vsub.f32 %v3960, %v4160
        %v4261 = vsub.f32 %v3961, %v4161
        %v4262 = vsub.f32 %v3962, %v4162
        %v4263 = vsub.f32 %v3963, %v4163
        %v4264 = vsub.f32 %v3964, %v4164
        %v4265 = vsub.f32 %v3965, %v4165
        %v4266 = vsub.f32 %v3966, %v4166
        %v4267 = vsub.f32 %v3967, %v4167
        %v4268 = vsub.f32 %v3968, %v4168
        %v4269 = vsub.f32 %v3969, %v4169
        %v4270 = vsub.f32 %v3970, %v4170
        %v4271 = vsub.f32 %v3971, %v4171
        %v4272 = vsub.f32 %v3972, %v4172
        %v4273 = vsub.f32 %v3973, %v4173
        %v4274 = vsub.f32 %v3974, %v4174
        %v4275 = vsub.f32 %v3975, %v4175
        %v4276 = vsub.f32 %v3976, %v4176
        %v4277 = vsub.f32 %v3977, %v4177
        %v4278 = vsub.f32 %v3978, %v4178
        %v4279 = vsub.f32 %v3979, %v4179
        %v4280 = vsub.f32 %v3980, %v4180
        %v4281 = vsub.f32 %v3981, %v4181
        %v4282 = vsub.f32 %v3982, %v4182
        %v4283 = vsub.f32 %v3983, %v4183
        %v4284 = vsub.f32 %v3984, %v4184
        %v4285 = vsub.f32 %v3985, %v4185
        %v4286 = vsub.f32 %v3986, %v4186
        %v4287 = vsub.f32 %v3987, %v4187
        %v4288 = vsub.f32 %v3988, %v4188
        %v4289 = vsub.f32 %v3989, %v4189
        %v4290 = vsub.f32 %v3990, %v4190
        %v4291 = vsub.f32 %v3991, %v4191
        %v4292 = vsub.f32 %v3992, %v4192
        %v4293 = vsub.f32 %v3993, %v4193
        %v4294 = vsub.f32 %v3994, %v4194
        %v4295 = vsub.f32 %v3995, %v4195
        %v4296 = vsub.f32 %v3996, %v4196
        %v4297 = vsub.f32 %v3997, %v4197
        %v4298 = vsub.f32 %v3998, %v4198
        %v4299 = vsub.f32 %v3999, %v4199
        %v4300 = vsub.f32 %v4000, %v4200
        %v4301 = vsub.f32 %v4001, %v4201
        %v4302 = vsub.f32 %v4002, %v4202
        %v4303 = vsub.f32 %v4003, %v4203
        %v4304 = vsub.f32 %v4004, %v4204
        %v4305 = vsub.f32 %v4005, %v4205
        %v4306 = vsub.f32 %v4006, %v4206
        %v4307 = vsub.f32 %v4007, %v4207
        %v4308 = vsub.f32 %v4008, %v4208
        %v4309 = vsub.f32 %v4009, %v4209
        %v4310 = vsub.f32 %v4010, %v4210
        %v4311 = vsub.f32 %v4011, %v4211
        %v4312 = vsub.f32 %v4012, %v4212
        %v4313 = vsub.f32 %v4013, %v4213
        %v4314 = vsub.f32 %v4014, %v4214
        %v4315 = vsub.f32 %v4015, %v4215
        %v4316 = vsub.f32 %v4016, %v4216
        %v4317 = vsub.f32 %v4017, %v4217
        %v4318 = vsub.f32 %v4018, %v4218
        %v4319 = vsub.f32 %v4019, %v4219
        %v4320 = vsub.f32 %v4020, %v4220
        %v4321 = vsub.f32 %v4021, %v4221
        %v4322 = vsub.f32 %v4022, %v4222
        %v4323 = vsub.f32 %v4023, %v4223
        %v4324 = vsub.f32 %v4024, %v4224
        %v4325 = vsub.f32 %v4025, %v4225
        %v4326 = vsub.f32 %v4026, %v4226
        %v4327 = vsub.f32 %v4027, %v4227
        %v4328 = vsub.f32 %v4028, %v4228
        %v4329 = vsub.f32 %v4029, %v4229
        %v4330 = vsub.f32 %v4030, %v4230
        %v4331 = vsub.f32 %v4031, %v4231
        %v4332 = vsub.f32 %v4032, %v4232
        %v4333 = vsub.f32 %v4033, %v4233
        %v4334 = vsub.f32 %v4034, %v4234
        %v4335 = vsub.f32 %v4035, %v4235
        %v4336 = vsub.f32 %v4036, %v4236
        %v4337 = vsub.f32 %v4037, %v4237
        %v4338 = vsub.f32 %v4038, %v4238
        %v4339 = vadd.f32 %v4239, 1e-05
        %v4340 = vadd.f32 %v4240, 1e-05
        %v4341 = vadd.f32 %v4241, 1e-05
        %v4342 = vadd.f32 %v4242, 1e-05
        %v4343 = vadd.f32 %v4243, 1e-05
        %v4344 = vadd.f32 %v4244, 1e-05
        %v4345 = vadd.f32 %v4245, 1e-05
        %v4346 = vadd.f32 %v4246, 1e-05
        %v4347 = vadd.f32 %v4247, 1e-05
        %v4348 = vadd.f32 %v4248, 1e-05
        %v4349 = vadd.f32 %v4249, 1e-05
        %v4350 = vadd.f32 %v4250, 1e-05
        %v4351 = vadd.f32 %v4251, 1e-05
        %v4352 = vadd.f32 %v4252, 1e-05
        %v4353 = vadd.f32 %v4253, 1e-05
        %v4354 = vadd.f32 %v4254, 1e-05
        %v4355 = vadd.f32 %v4255, 1e-05
        %v4356 = vadd.f32 %v4256, 1e-05
        %v4357 = vadd.f32 %v4257, 1e-05
        %v4358 = vadd.f32 %v4258, 1e-05
        %v4359 = vadd.f32 %v4259, 1e-05
        %v4360 = vadd.f32 %v4260, 1e-05
        %v4361 = vadd.f32 %v4261, 1e-05
        %v4362 = vadd.f32 %v4262, 1e-05
        %v4363 = vadd.f32 %v4263, 1e-05
        %v4364 = vadd.f32 %v4264, 1e-05
        %v4365 = vadd.f32 %v4265, 1e-05
        %v4366 = vadd.f32 %v4266, 1e-05
        %v4367 = vadd.f32 %v4267, 1e-05
        %v4368 = vadd.f32 %v4268, 1e-05
        %v4369 = vadd.f32 %v4269, 1e-05
        %v4370 = vadd.f32 %v4270, 1e-05
        %v4371 = vadd.f32 %v4271, 1e-05
        %v4372 = vadd.f32 %v4272, 1e-05
        %v4373 = vadd.f32 %v4273, 1e-05
        %v4374 = vadd.f32 %v4274, 1e-05
        %v4375 = vadd.f32 %v4275, 1e-05
        %v4376 = vadd.f32 %v4276, 1e-05
        %v4377 = vadd.f32 %v4277, 1e-05
        %v4378 = vadd.f32 %v4278, 1e-05
        %v4379 = vadd.f32 %v4279, 1e-05
        %v4380 = vadd.f32 %v4280, 1e-05
        %v4381 = vadd.f32 %v4281, 1e-05
        %v4382 = vadd.f32 %v4282, 1e-05
        %v4383 = vadd.f32 %v4283, 1e-05
        %v4384 = vadd.f32 %v4284, 1e-05
        %v4385 = vadd.f32 %v4285, 1e-05
        %v4386 = vadd.f32 %v4286, 1e-05
        %v4387 = vadd.f32 %v4287, 1e-05
        %v4388 = vadd.f32 %v4288, 1e-05
        %v4389 = vadd.f32 %v4289, 1e-05
        %v4390 = vadd.f32 %v4290, 1e-05
        %v4391 = vadd.f32 %v4291, 1e-05
        %v4392 = vadd.f32 %v4292, 1e-05
        %v4393 = vadd.f32 %v4293, 1e-05
        %v4394 = vadd.f32 %v4294, 1e-05
        %v4395 = vadd.f32 %v4295, 1e-05
        %v4396 = vadd.f32 %v4296, 1e-05
        %v4397 = vadd.f32 %v4297, 1e-05
        %v4398 = vadd.f32 %v4298, 1e-05
        %v4399 = vadd.f32 %v4299, 1e-05
        %v4400 = vadd.f32 %v4300, 1e-05
        %v4401 = vadd.f32 %v4301, 1e-05
        %v4402 = vadd.f32 %v4302, 1e-05
        %v4403 = vadd.f32 %v4303, 1e-05
        %v4404 = vadd.f32 %v4304, 1e-05
        %v4405 = vadd.f32 %v4305, 1e-05
        %v4406 = vadd.f32 %v4306, 1e-05
        %v4407 = vadd.f32 %v4307, 1e-05
        %v4408 = vadd.f32 %v4308, 1e-05
        %v4409 = vadd.f32 %v4309, 1e-05
        %v4410 = vadd.f32 %v4310, 1e-05
        %v4411 = vadd.f32 %v4311, 1e-05
        %v4412 = vadd.f32 %v4312, 1e-05
        %v4413 = vadd.f32 %v4313, 1e-05
        %v4414 = vadd.f32 %v4314, 1e-05
        %v4415 = vadd.f32 %v4315, 1e-05
        %v4416 = vadd.f32 %v4316, 1e-05
        %v4417 = vadd.f32 %v4317, 1e-05
        %v4418 = vadd.f32 %v4318, 1e-05
        %v4419 = vadd.f32 %v4319, 1e-05
        %v4420 = vadd.f32 %v4320, 1e-05
        %v4421 = vadd.f32 %v4321, 1e-05
        %v4422 = vadd.f32 %v4322, 1e-05
        %v4423 = vadd.f32 %v4323, 1e-05
        %v4424 = vadd.f32 %v4324, 1e-05
        %v4425 = vadd.f32 %v4325, 1e-05
        %v4426 = vadd.f32 %v4326, 1e-05
        %v4427 = vadd.f32 %v4327, 1e-05
        %v4428 = vadd.f32 %v4328, 1e-05
        %v4429 = vadd.f32 %v4329, 1e-05
        %v4430 = vadd.f32 %v4330, 1e-05
        %v4431 = vadd.f32 %v4331, 1e-05
        %v4432 = vadd.f32 %v4332, 1e-05
        %v4433 = vadd.f32 %v4333, 1e-05
        %v4434 = vadd.f32 %v4334, 1e-05
        %v4435 = vadd.f32 %v4335, 1e-05
        %v4436 = vadd.f32 %v4336, 1e-05
        %v4437 = vadd.f32 %v4337, 1e-05
        %v4438 = vadd.f32 %v4338, 1e-05
        %v4439 = vrsqrt.pop %v4339
        %v4440 = vrsqrt.pop %v4340
        %v4441 = vrsqrt.pop %v4341
        %v4442 = vrsqrt.pop %v4342
        %v4443 = vrsqrt.pop %v4343
        %v4444 = vrsqrt.pop %v4344
        %v4445 = vrsqrt.pop %v4345
        %v4446 = vrsqrt.pop %v4346
        %v4447 = vrsqrt.pop %v4347
        %v4448 = vrsqrt.pop %v4348
        %v4449 = vrsqrt.pop %v4349
        %v4450 = vrsqrt.pop %v4350
        %v4451 = vrsqrt.pop %v4351
        %v4452 = vrsqrt.pop %v4352
        %v4453 = vrsqrt.pop %v4353
        %v4454 = vrsqrt.pop %v4354
        %v4455 = vrsqrt.pop %v4355
        %v4456 = vrsqrt.pop %v4356
        %v4457 = vrsqrt.pop %v4357
        %v4458 = vrsqrt.pop %v4358
        %v4459 = vrsqrt.pop %v4359
        %v4460 = vrsqrt.pop %v4360
        %v4461 = vrsqrt.pop %v4361
        %v4462 = vrsqrt.pop %v4362
        %v4463 = vrsqrt.pop %v4363
        %v4464 = vrsqrt.pop %v4364
        %v4465 = vrsqrt.pop %v4365
        %v4466 = vrsqrt.pop %v4366
        %v4467 = vrsqrt.pop %v4367
        %v4468 = vrsqrt.pop %v4368
        %v4469 = vrsqrt.pop %v4369
        %v4470 = vrsqrt.pop %v4370
        %v4471 = vrsqrt.pop %v4371
        %v4472 = vrsqrt.pop %v4372
        %v4473 = vrsqrt.pop %v4373
        %v4474 = vrsqrt.pop %v4374
        %v4475 = vrsqrt.pop %v4375
        %v4476 = vrsqrt.pop %v4376
        %v4477 = vrsqrt.pop %v4377
        %v4478 = vrsqrt.pop %v4378
        %v4479 = vrsqrt.pop %v4379
        %v4480 = vrsqrt.pop %v4380
        %v4481 = vrsqrt.pop %v4381
        %v4482 = vrsqrt.pop %v4382
        %v4483 = vrsqrt.pop %v4383
        %v4484 = vrsqrt.pop %v4384
        %v4485 = vrsqrt.pop %v4385
        %v4486 = vrsqrt.pop %v4386
        %v4487 = vrsqrt.pop %v4387
        %v4488 = vrsqrt.pop %v4388
        %v4489 = vrsqrt.pop %v4389
        %v4490 = vrsqrt.pop %v4390
        %v4491 = vrsqrt.pop %v4391
        %v4492 = vrsqrt.pop %v4392
        %v4493 = vrsqrt.pop %v4393
        %v4494 = vrsqrt.pop %v4394
        %v4495 = vrsqrt.pop %v4395
        %v4496 = vrsqrt.pop %v4396
        %v4497 = vrsqrt.pop %v4397
        %v4498 = vrsqrt.pop %v4398
        %v4499 = vrsqrt.pop %v4399
        %v4500 = vrsqrt.pop %v4400
        %v4501 = vrsqrt.pop %v4401
        %v4502 = vrsqrt.pop %v4402
        %v4503 = vrsqrt.pop %v4403
        %v4504 = vrsqrt.pop %v4404
        %v4505 = vrsqrt.pop %v4405
        %v4506 = vrsqrt.pop %v4406
        %v4507 = vrsqrt.pop %v4407
        %v4508 = vrsqrt.pop %v4408
        %v4509 = vrsqrt.pop %v4409
        %v4510 = vrsqrt.pop %v4410
        %v4511 = vrsqrt.pop %v4411
        %v4512 = vrsqrt.pop %v4412
        %v4513 = vrsqrt.pop %v4413
        %v4514 = vrsqrt.pop %v4414
        %v4515 = vrsqrt.pop %v4415
        %v4516 = vrsqrt.pop %v4416
        %v4517 = vrsqrt.pop %v4417
        %v4518 = vrsqrt.pop %v4418
        %v4519 = vrsqrt.pop %v4419
        %v4520 = vrsqrt.pop %v4420
        %v4521 = vrsqrt.pop %v4421
        %v4522 = vrsqrt.pop %v4422
        %v4523 = vrsqrt.pop %v4423
        %v4524 = vrsqrt.pop %v4424
        %v4525 = vrsqrt.pop %v4425
        %v4526 = vrsqrt.pop %v4426
        %v4527 = vrsqrt.pop %v4427
        %v4528 = vrsqrt.pop %v4428
        %v4529 = vrsqrt.pop %v4429
        %v4530 = vrsqrt.pop %v4430
        %v4531 = vrsqrt.pop %v4431
        %v4532 = vrsqrt.pop %v4432
        %v4533 = vrsqrt.pop %v4433
        %v4534 = vrsqrt.pop %v4434
        %v4535 = vrsqrt.pop %v4435
        %v4536 = vrsqrt.pop %v4436
        %v4537 = vrsqrt.pop %v4437
        %v4538 = vrsqrt.pop %v4438
        %v4539 = vmul.f32 %v4039, %v4439
        %v4540 = vmul.f32 %v4040, %v4440
        %v4541 = vmul.f32 %v4041, %v4441
        %v4542 = vmul.f32 %v4042, %v4442
        %v4543 = vmul.f32 %v4043, %v4443
        %v4544 = vmul.f32 %v4044, %v4444
        %v4545 = vmul.f32 %v4045, %v4445
        %v4546 = vmul.f32 %v4046, %v4446
        %v4547 = vmul.f32 %v4047, %v4447
        %v4548 = vmul.f32 %v4048, %v4448
        %v4549 = vmul.f32 %v4049, %v4449
        %v4550 = vmul.f32 %v4050, %v4450
        %v4551 = vmul.f32 %v4051, %v4451
        %v4552 = vmul.f32 %v4052, %v4452
        %v4553 = vmul.f32 %v4053, %v4453
        %v4554 = vmul.f32 %v4054, %v4454
        %v4555 = vmul.f32 %v4055, %v4455
        %v4556 = vmul.f32 %v4056, %v4456
        %v4557 = vmul.f32 %v4057, %v4457
        %v4558 = vmul.f32 %v4058, %v4458
        %v4559 = vmul.f32 %v4059, %v4459
        %v4560 = vmul.f32 %v4060, %v4460
        %v4561 = vmul.f32 %v4061, %v4461
        %v4562 = vmul.f32 %v4062, %v4462
        %v4563 = vmul.f32 %v4063, %v4463
        %v4564 = vmul.f32 %v4064, %v4464
        %v4565 = vmul.f32 %v4065, %v4465
        %v4566 = vmul.f32 %v4066, %v4466
        %v4567 = vmul.f32 %v4067, %v4467
        %v4568 = vmul.f32 %v4068, %v4468
        %v4569 = vmul.f32 %v4069, %v4469
        %v4570 = vmul.f32 %v4070, %v4470
        %v4571 = vmul.f32 %v4071, %v4471
        %v4572 = vmul.f32 %v4072, %v4472
        %v4573 = vmul.f32 %v4073, %v4473
        %v4574 = vmul.f32 %v4074, %v4474
        %v4575 = vmul.f32 %v4075, %v4475
        %v4576 = vmul.f32 %v4076, %v4476
        %v4577 = vmul.f32 %v4077, %v4477
        %v4578 = vmul.f32 %v4078, %v4478
        %v4579 = vmul.f32 %v4079, %v4479
        %v4580 = vmul.f32 %v4080, %v4480
        %v4581 = vmul.f32 %v4081, %v4481
        %v4582 = vmul.f32 %v4082, %v4482
        %v4583 = vmul.f32 %v4083, %v4483
        %v4584 = vmul.f32 %v4084, %v4484
        %v4585 = vmul.f32 %v4085, %v4485
        %v4586 = vmul.f32 %v4086, %v4486
        %v4587 = vmul.f32 %v4087, %v4487
        %v4588 = vmul.f32 %v4088, %v4488
        %v4589 = vmul.f32 %v4089, %v4489
        %v4590 = vmul.f32 %v4090, %v4490
        %v4591 = vmul.f32 %v4091, %v4491
        %v4592 = vmul.f32 %v4092, %v4492
        %v4593 = vmul.f32 %v4093, %v4493
        %v4594 = vmul.f32 %v4094, %v4494
        %v4595 = vmul.f32 %v4095, %v4495
        %v4596 = vmul.f32 %v4096, %v4496
        %v4597 = vmul.f32 %v4097, %v4497
        %v4598 = vmul.f32 %v4098, %v4498
        %v4599 = vmul.f32 %v4099, %v4499
        %v4600 = vmul.f32 %v4100, %v4500
        %v4601 = vmul.f32 %v4101, %v4501
        %v4602 = vmul.f32 %v4102, %v4502
        %v4603 = vmul.f32 %v4103, %v4503
        %v4604 = vmul.f32 %v4104, %v4504
        %v4605 = vmul.f32 %v4105, %v4505
        %v4606 = vmul.f32 %v4106, %v4506
        %v4607 = vmul.f32 %v4107, %v4507
        %v4608 = vmul.f32 %v4108, %v4508
        %v4609 = vmul.f32 %v4109, %v4509
        %v4610 = vmul.f32 %v4110, %v4510
        %v4611 = vmul.f32 %v4111, %v4511
        %v4612 = vmul.f32 %v4112, %v4512
        %v4613 = vmul.f32 %v4113, %v4513
        %v4614 = vmul.f32 %v4114, %v4514
        %v4615 = vmul.f32 %v4115, %v4515
        %v4616 = vmul.f32 %v4116, %v4516
        %v4617 = vmul.f32 %v4117, %v4517
        %v4618 = vmul.f32 %v4118, %v4518
        %v4619 = vmul.f32 %v4119, %v4519
        %v4620 = vmul.f32 %v4120, %v4520
        %v4621 = vmul.f32 %v4121, %v4521
        %v4622 = vmul.f32 %v4122, %v4522
        %v4623 = vmul.f32 %v4123, %v4523
        %v4624 = vmul.f32 %v4124, %v4524
        %v4625 = vmul.f32 %v4125, %v4525
        %v4626 = vmul.f32 %v4126, %v4526
        %v4627 = vmul.f32 %v4127, %v4527
        %v4628 = vmul.f32 %v4128, %v4528
        %v4629 = vmul.f32 %v4129, %v4529
        %v4630 = vmul.f32 %v4130, %v4530
        %v4631 = vmul.f32 %v4131, %v4531
        %v4632 = vmul.f32 %v4132, %v4532
        %v4633 = vmul.f32 %v4133, %v4533
        %v4634 = vmul.f32 %v4134, %v4534
        %v4635 = vmul.f32 %v4135, %v4535
        %v4636 = vmul.f32 %v4136, %v4536
        %v4637 = vmul.f32 %v4137, %v4537
        %v4638 = vmul.f32 %v4138, %v4538
        %v4639 = vld [vmem:[#allocation11] sm:$0x1]
        %v4641 = vlaneseq
        %v4642 = vshrl.u32 %v4641, 7
        %v4643 = vsub.s32 0, %v4642
        %v4644 = vrot.slane %v4639, %v4643
        %v4646 = vmul.f32 %v4539, %v4644
        %v4647 = vmul.f32 %v4540, %v4644
        %v4648 = vmul.f32 %v4541, %v4644
        %v4649 = vmul.f32 %v4542, %v4644
        %v4650 = vmul.f32 %v4543, %v4644
        %v4651 = vmul.f32 %v4544, %v4644
        %v4652 = vmul.f32 %v4545, %v4644
        %v4653 = vmul.f32 %v4546, %v4644
        %v4654 = vmul.f32 %v4547, %v4644
        %v4655 = vmul.f32 %v4548, %v4644
        %v4656 = vmul.f32 %v4549, %v4644
        %v4657 = vmul.f32 %v4550, %v4644
        %v4658 = vmul.f32 %v4551, %v4644
        %v4659 = vmul.f32 %v4552, %v4644
        %v4660 = vmul.f32 %v4553, %v4644
        %v4661 = vmul.f32 %v4554, %v4644
        %v4662 = vmul.f32 %v4555, %v4644
        %v4663 = vmul.f32 %v4556, %v4644
        %v4664 = vmul.f32 %v4557, %v4644
        %v4665 = vmul.f32 %v4558, %v4644
        %v4666 = vmul.f32 %v4559, %v4644
        %v4667 = vmul.f32 %v4560, %v4644
        %v4668 = vmul.f32 %v4561, %v4644
        %v4669 = vmul.f32 %v4562, %v4644
        %v4670 = vmul.f32 %v4563, %v4644
        %v4671 = vmul.f32 %v4564, %v4644
        %v4672 = vmul.f32 %v4565, %v4644
        %v4673 = vmul.f32 %v4566, %v4644
        %v4674 = vmul.f32 %v4567, %v4644
        %v4675 = vmul.f32 %v4568, %v4644
        %v4676 = vmul.f32 %v4569, %v4644
        %v4677 = vmul.f32 %v4570, %v4644
        %v4678 = vmul.f32 %v4571, %v4644
        %v4679 = vmul.f32 %v4572, %v4644
        %v4680 = vmul.f32 %v4573, %v4644
        %v4681 = vmul.f32 %v4574, %v4644
        %v4682 = vmul.f32 %v4575, %v4644
        %v4683 = vmul.f32 %v4576, %v4644
        %v4684 = vmul.f32 %v4577, %v4644
        %v4685 = vmul.f32 %v4578, %v4644
        %v4686 = vmul.f32 %v4579, %v4644
        %v4687 = vmul.f32 %v4580, %v4644
        %v4688 = vmul.f32 %v4581, %v4644
        %v4689 = vmul.f32 %v4582, %v4644
        %v4690 = vmul.f32 %v4583, %v4644
        %v4691 = vmul.f32 %v4584, %v4644
        %v4692 = vmul.f32 %v4585, %v4644
        %v4693 = vmul.f32 %v4586, %v4644
        %v4694 = vmul.f32 %v4587, %v4644
        %v4695 = vmul.f32 %v4588, %v4644
        %v4696 = vmul.f32 %v4589, %v4644
        %v4697 = vmul.f32 %v4590, %v4644
        %v4698 = vmul.f32 %v4591, %v4644
        %v4699 = vmul.f32 %v4592, %v4644
        %v4700 = vmul.f32 %v4593, %v4644
        %v4701 = vmul.f32 %v4594, %v4644
        %v4702 = vmul.f32 %v4595, %v4644
        %v4703 = vmul.f32 %v4596, %v4644
        %v4704 = vmul.f32 %v4597, %v4644
        %v4705 = vmul.f32 %v4598, %v4644
        %v4706 = vmul.f32 %v4599, %v4644
        %v4707 = vmul.f32 %v4600, %v4644
        %v4708 = vmul.f32 %v4601, %v4644
        %v4709 = vmul.f32 %v4602, %v4644
        %v4710 = vmul.f32 %v4603, %v4644
        %v4711 = vmul.f32 %v4604, %v4644
        %v4712 = vmul.f32 %v4605, %v4644
        %v4713 = vmul.f32 %v4606, %v4644
        %v4714 = vmul.f32 %v4607, %v4644
        %v4715 = vmul.f32 %v4608, %v4644
        %v4716 = vmul.f32 %v4609, %v4644
        %v4717 = vmul.f32 %v4610, %v4644
        %v4718 = vmul.f32 %v4611, %v4644
        %v4719 = vmul.f32 %v4612, %v4644
        %v4720 = vmul.f32 %v4613, %v4644
        %v4721 = vmul.f32 %v4614, %v4644
        %v4722 = vmul.f32 %v4615, %v4644
        %v4723 = vmul.f32 %v4616, %v4644
        %v4724 = vmul.f32 %v4617, %v4644
        %v4725 = vmul.f32 %v4618, %v4644
        %v4726 = vmul.f32 %v4619, %v4644
        %v4727 = vmul.f32 %v4620, %v4644
        %v4728 = vmul.f32 %v4621, %v4644
        %v4729 = vmul.f32 %v4622, %v4644
        %v4730 = vmul.f32 %v4623, %v4644
        %v4731 = vmul.f32 %v4624, %v4644
        %v4732 = vmul.f32 %v4625, %v4644
        %v4733 = vmul.f32 %v4626, %v4644
        %v4734 = vmul.f32 %v4627, %v4644
        %v4735 = vmul.f32 %v4628, %v4644
        %v4736 = vmul.f32 %v4629, %v4644
        %v4737 = vmul.f32 %v4630, %v4644
        %v4738 = vmul.f32 %v4631, %v4644
        %v4739 = vmul.f32 %v4632, %v4644
        %v4740 = vmul.f32 %v4633, %v4644
        %v4741 = vmul.f32 %v4634, %v4644
        %v4742 = vmul.f32 %v4635, %v4644
        %v4743 = vmul.f32 %v4636, %v4644
        %v4744 = vmul.f32 %v4637, %v4644
        %v4745 = vmul.f32 %v4638, %v4644
        %v4746 = vld [vmem:[#allocation12] sm:$0x1]
        %v4748 = vlaneseq
        %v4749 = vshrl.u32 %v4748, 7
        %v4750 = vsub.s32 0, %v4749
        %v4751 = vrot.slane %v4746, %v4750
        %v4753 = vadd.f32 %v4646, %v4751
        %v4754 = vadd.f32 %v4647, %v4751
        %v4755 = vadd.f32 %v4648, %v4751
        %v4756 = vadd.f32 %v4649, %v4751
        %v4757 = vadd.f32 %v4650, %v4751
        %v4758 = vadd.f32 %v4651, %v4751
        %v4759 = vadd.f32 %v4652, %v4751
        %v4760 = vadd.f32 %v4653, %v4751
        %v4761 = vadd.f32 %v4654, %v4751
        %v4762 = vadd.f32 %v4655, %v4751
        %v4763 = vadd.f32 %v4656, %v4751
        %v4764 = vadd.f32 %v4657, %v4751
        %v4765 = vadd.f32 %v4658, %v4751
        %v4766 = vadd.f32 %v4659, %v4751
        %v4767 = vadd.f32 %v4660, %v4751
        %v4768 = vadd.f32 %v4661, %v4751
        %v4769 = vadd.f32 %v4662, %v4751
        %v4770 = vadd.f32 %v4663, %v4751
        %v4771 = vadd.f32 %v4664, %v4751
        %v4772 = vadd.f32 %v4665, %v4751
        %v4773 = vadd.f32 %v4666, %v4751
        %v4774 = vadd.f32 %v4667, %v4751
        %v4775 = vadd.f32 %v4668, %v4751
        %v4776 = vadd.f32 %v4669, %v4751
        %v4777 = vadd.f32 %v4670, %v4751
        %v4778 = vadd.f32 %v4671, %v4751
        %v4779 = vadd.f32 %v4672, %v4751
        %v4780 = vadd.f32 %v4673, %v4751
        %v4781 = vadd.f32 %v4674, %v4751
        %v4782 = vadd.f32 %v4675, %v4751
        %v4783 = vadd.f32 %v4676, %v4751
        %v4784 = vadd.f32 %v4677, %v4751
        %v4785 = vadd.f32 %v4678, %v4751
        %v4786 = vadd.f32 %v4679, %v4751
        %v4787 = vadd.f32 %v4680, %v4751
        %v4788 = vadd.f32 %v4681, %v4751
        %v4789 = vadd.f32 %v4682, %v4751
        %v4790 = vadd.f32 %v4683, %v4751
        %v4791 = vadd.f32 %v4684, %v4751
        %v4792 = vadd.f32 %v4685, %v4751
        %v4793 = vadd.f32 %v4686, %v4751
        %v4794 = vadd.f32 %v4687, %v4751
        %v4795 = vadd.f32 %v4688, %v4751
        %v4796 = vadd.f32 %v4689, %v4751
        %v4797 = vadd.f32 %v4690, %v4751
        %v4798 = vadd.f32 %v4691, %v4751
        %v4799 = vadd.f32 %v4692, %v4751
        %v4800 = vadd.f32 %v4693, %v4751
        %v4801 = vadd.f32 %v4694, %v4751
        %v4802 = vadd.f32 %v4695, %v4751
        %v4803 = vadd.f32 %v4696, %v4751
        %v4804 = vadd.f32 %v4697, %v4751
        %v4805 = vadd.f32 %v4698, %v4751
        %v4806 = vadd.f32 %v4699, %v4751
        %v4807 = vadd.f32 %v4700, %v4751
        %v4808 = vadd.f32 %v4701, %v4751
        %v4809 = vadd.f32 %v4702, %v4751
        %v4810 = vadd.f32 %v4703, %v4751
        %v4811 = vadd.f32 %v4704, %v4751
        %v4812 = vadd.f32 %v4705, %v4751
        %v4813 = vadd.f32 %v4706, %v4751
        %v4814 = vadd.f32 %v4707, %v4751
        %v4815 = vadd.f32 %v4708, %v4751
        %v4816 = vadd.f32 %v4709, %v4751
        %v4817 = vadd.f32 %v4710, %v4751
        %v4818 = vadd.f32 %v4711, %v4751
        %v4819 = vadd.f32 %v4712, %v4751
        %v4820 = vadd.f32 %v4713, %v4751
        %v4821 = vadd.f32 %v4714, %v4751
        %v4822 = vadd.f32 %v4715, %v4751
        %v4823 = vadd.f32 %v4716, %v4751
        %v4824 = vadd.f32 %v4717, %v4751
        %v4825 = vadd.f32 %v4718, %v4751
        %v4826 = vadd.f32 %v4719, %v4751
        %v4827 = vadd.f32 %v4720, %v4751
        %v4828 = vadd.f32 %v4721, %v4751
        %v4829 = vadd.f32 %v4722, %v4751
        %v4830 = vadd.f32 %v4723, %v4751
        %v4831 = vadd.f32 %v4724, %v4751
        %v4832 = vadd.f32 %v4725, %v4751
        %v4833 = vadd.f32 %v4726, %v4751
        %v4834 = vadd.f32 %v4727, %v4751
        %v4835 = vadd.f32 %v4728, %v4751
        %v4836 = vadd.f32 %v4729, %v4751
        %v4837 = vadd.f32 %v4730, %v4751
        %v4838 = vadd.f32 %v4731, %v4751
        %v4839 = vadd.f32 %v4732, %v4751
        %v4840 = vadd.f32 %v4733, %v4751
        %v4841 = vadd.f32 %v4734, %v4751
        %v4842 = vadd.f32 %v4735, %v4751
        %v4843 = vadd.f32 %v4736, %v4751
        %v4844 = vadd.f32 %v4737, %v4751
        %v4845 = vadd.f32 %v4738, %v4751
        %v4846 = vadd.f32 %v4739, %v4751
        %v4847 = vadd.f32 %v4740, %v4751
        %v4848 = vadd.f32 %v4741, %v4751
        %v4849 = vadd.f32 %v4742, %v4751
        %v4850 = vadd.f32 %v4743, %v4751
        %v4851 = vadd.f32 %v4744, %v4751
        %v4852 = vadd.f32 %v4745, %v4751
        %4853 = vst [vmem:[%s373] sm:$0xff] %v4753
        %4854 = vst [vmem:[%s373 + $0x8] sm:$0xff] %v4754
        %4855 = vst [vmem:[%s373 + $0x10] sm:$0xff] %v4755
        %4856 = vst [vmem:[%s373 + $0x18] sm:$0xff] %v4756
        %4857 = vst [vmem:[%s373 + $0x20] sm:$0xff] %v4757
        %4858 = vst [vmem:[%s373 + $0x28] sm:$0xff] %v4758
        %4859 = vst [vmem:[%s373 + $0x30] sm:$0xff] %v4759
        %4860 = vst [vmem:[%s373 + $0x38] sm:$0xff] %v4760
        %4861 = vst [vmem:[%s373 + $0x40] sm:$0xff] %v4761
        %4862 = vst [vmem:[%s373 + $0x48] sm:$0xff] %v4762
        %4863 = vst [vmem:[%s373 + $0x50] sm:$0xff] %v4763
        %4864 = vst [vmem:[%s373 + $0x58] sm:$0xff] %v4764
        %4865 = vst [vmem:[%s373 + $0x60] sm:$0xff] %v4765
        %4866 = vst [vmem:[%s373 + $0x68] sm:$0xff] %v4766
        %4867 = vst [vmem:[%s373 + $0x70] sm:$0xff] %v4767
        %4868 = vst [vmem:[%s373 + $0x78] sm:$0xff] %v4768
        %4869 = vst [vmem:[%s373 + $0x80] sm:$0xff] %v4769
        %4870 = vst [vmem:[%s373 + $0x88] sm:$0xff] %v4770
        %4871 = vst [vmem:[%s373 + $0x90] sm:$0xff] %v4771
        %4872 = vst [vmem:[%s373 + $0x98] sm:$0xff] %v4772
        %4873 = vst [vmem:[%s373 + $0xa0] sm:$0xff] %v4773
        %4874 = vst [vmem:[%s373 + $0xa8] sm:$0xff] %v4774
        %4875 = vst [vmem:[%s373 + $0xb0] sm:$0xff] %v4775
        %4876 = vst [vmem:[%s373 + $0xb8] sm:$0xff] %v4776
        %4877 = vst [vmem:[%s373 + $0xc0] sm:$0xff] %v4777
        %4878 = vst [vmem:[%s373 + $0xc8] sm:$0xff] %v4778
        %4879 = vst [vmem:[%s373 + $0xd0] sm:$0xff] %v4779
        %4880 = vst [vmem:[%s373 + $0xd8] sm:$0xff] %v4780
        %4881 = vst [vmem:[%s373 + $0xe0] sm:$0xff] %v4781
        %4882 = vst [vmem:[%s373 + $0xe8] sm:$0xff] %v4782
        %4883 = vst [vmem:[%s373 + $0xf0] sm:$0xff] %v4783
        %4884 = vst [vmem:[%s373 + $0xf8] sm:$0xff] %v4784
        %4885 = vst [vmem:[%s373 + $0x100] sm:$0xff] %v4785
        %4886 = vst [vmem:[%s373 + $0x108] sm:$0xff] %v4786
        %4887 = vst [vmem:[%s373 + $0x110] sm:$0xff] %v4787
        %4888 = vst [vmem:[%s373 + $0x118] sm:$0xff] %v4788
        %4889 = vst [vmem:[%s373 + $0x120] sm:$0xff] %v4789
        %4890 = vst [vmem:[%s373 + $0x128] sm:$0xff] %v4790
        %4891 = vst [vmem:[%s373 + $0x130] sm:$0xff] %v4791
        %4892 = vst [vmem:[%s373 + $0x138] sm:$0xff] %v4792
        %4893 = vst [vmem:[%s373 + $0x140] sm:$0xff] %v4793
        %4894 = vst [vmem:[%s373 + $0x148] sm:$0xff] %v4794
        %4895 = vst [vmem:[%s373 + $0x150] sm:$0xff] %v4795
        %4896 = vst [vmem:[%s373 + $0x158] sm:$0xff] %v4796
        %4897 = vst [vmem:[%s373 + $0x160] sm:$0xff] %v4797
        %4898 = vst [vmem:[%s373 + $0x168] sm:$0xff] %v4798
        %4899 = vst [vmem:[%s373 + $0x170] sm:$0xff] %v4799
        %4900 = vst [vmem:[%s373 + $0x178] sm:$0xff] %v4800
        %4901 = vst [vmem:[%s373 + $0x180] sm:$0xff] %v4801
        %4902 = vst [vmem:[%s373 + $0x188] sm:$0xff] %v4802
        %4903 = vst [vmem:[%s373 + $0x190] sm:$0xff] %v4803
        %4904 = vst [vmem:[%s373 + $0x198] sm:$0xff] %v4804
        %4905 = vst [vmem:[%s373 + $0x1a0] sm:$0xff] %v4805
        %4906 = vst [vmem:[%s373 + $0x1a8] sm:$0xff] %v4806
        %4907 = vst [vmem:[%s373 + $0x1b0] sm:$0xff] %v4807
        %4908 = vst [vmem:[%s373 + $0x1b8] sm:$0xff] %v4808
        %4909 = vst [vmem:[%s373 + $0x1c0] sm:$0xff] %v4809
        %4910 = vst [vmem:[%s373 + $0x1c8] sm:$0xff] %v4810
        %4911 = vst [vmem:[%s373 + $0x1d0] sm:$0xff] %v4811
        %4912 = vst [vmem:[%s373 + $0x1d8] sm:$0xff] %v4812
        %4913 = vst [vmem:[%s373 + $0x1e0] sm:$0xff] %v4813
        %4914 = vst [vmem:[%s373 + $0x1e8] sm:$0xff] %v4814
        %4915 = vst [vmem:[%s373 + $0x1f0] sm:$0xff] %v4815
        %4916 = vst [vmem:[%s373 + $0x1f8] sm:$0xff] %v4816
        %4917 = vst [vmem:[%s373 + $0x200] sm:$0xff] %v4817
        %4918 = vst [vmem:[%s373 + $0x208] sm:$0xff] %v4818
        %4919 = vst [vmem:[%s373 + $0x210] sm:$0xff] %v4819
        %4920 = vst [vmem:[%s373 + $0x218] sm:$0xff] %v4820
        %4921 = vst [vmem:[%s373 + $0x220] sm:$0xff] %v4821
        %4922 = vst [vmem:[%s373 + $0x228] sm:$0xff] %v4822
        %4923 = vst [vmem:[%s373 + $0x230] sm:$0xff] %v4823
        %4924 = vst [vmem:[%s373 + $0x238] sm:$0xff] %v4824
        %4925 = vst [vmem:[%s373 + $0x240] sm:$0xff] %v4825
        %4926 = vst [vmem:[%s373 + $0x248] sm:$0xff] %v4826
        %4927 = vst [vmem:[%s373 + $0x250] sm:$0xff] %v4827
        %4928 = vst [vmem:[%s373 + $0x258] sm:$0xff] %v4828
        %4929 = vst [vmem:[%s373 + $0x260] sm:$0xff] %v4829
        %4930 = vst [vmem:[%s373 + $0x268] sm:$0xff] %v4830
        %4931 = vst [vmem:[%s373 + $0x270] sm:$0xff] %v4831
        %4932 = vst [vmem:[%s373 + $0x278] sm:$0xff] %v4832
        %4933 = vst [vmem:[%s373 + $0x280] sm:$0xff] %v4833
        %4934 = vst [vmem:[%s373 + $0x288] sm:$0xff] %v4834
        %4935 = vst [vmem:[%s373 + $0x290] sm:$0xff] %v4835
        %4936 = vst [vmem:[%s373 + $0x298] sm:$0xff] %v4836
        %4937 = vst [vmem:[%s373 + $0x2a0] sm:$0xff] %v4837
        %4938 = vst [vmem:[%s373 + $0x2a8] sm:$0xff] %v4838
        %4939 = vst [vmem:[%s373 + $0x2b0] sm:$0xff] %v4839
        %4940 = vst [vmem:[%s373 + $0x2b8] sm:$0xff] %v4840
        %4941 = vst [vmem:[%s373 + $0x2c0] sm:$0xff] %v4841
        %4942 = vst [vmem:[%s373 + $0x2c8] sm:$0xff] %v4842
        %4943 = vst [vmem:[%s373 + $0x2d0] sm:$0xff] %v4843
        %4944 = vst [vmem:[%s373 + $0x2d8] sm:$0xff] %v4844
        %4945 = vst [vmem:[%s373 + $0x2e0] sm:$0xff] %v4845
        %4946 = vst [vmem:[%s373 + $0x2e8] sm:$0xff] %v4846
        %4947 = vst [vmem:[%s373 + $0x2f0] sm:$0xff] %v4847
        %4948 = vst [vmem:[%s373 + $0x2f8] sm:$0xff] %v4848
        %4949 = vst [vmem:[%s373 + $0x300] sm:$0xff] %v4849
        %4950 = vst [vmem:[%s373 + $0x308] sm:$0xff] %v4850
        %4951 = vst [vmem:[%s373 + $0x310] sm:$0xff] %v4851
        %4952 = vst [vmem:[%s373 + $0x318] sm:$0xff] %v4852
        %s4953 = sand.u32 %s176, 1
        %s4954 = scalar_lea.sflag [#allocation5], %s4953
        %s4955 = sand.u32 %s176, 1
        %s4956 = smul.addr %s4955, 800
        %s4957 = scalar_lea.vmem [#allocation14], %s4956
        // Predicated region
        $region69: #{tpu_custom_call.1} parent=43 // pred_check
          %p4958 = pneg %p186
        $region70: #{tpu_custom_call.1} parent=43 // pred_check_branch
          %4960 = sbr.rel (%p4958) target = $region72
        $region71: #{tpu_custom_call.1} parent=43 // pred_region
          %s4961 = smul.u32 100, %s28
          %s4963 = ssub.s32 12800, 12800
          %4964 = vsyncadd %s4954, %s4963
          %s4965 = smul.addr %s4961, 128
          %s4966 = scalar_lea.hbm %s6, %s4965
          %s4967 = sshll.u32 %s4957, 4
          %s4968 = int_to_ptr.vmem [resolvable:$true] %s4967
          %4973 = dma.vmem_to_hbm [thread:$0]  %s4968, 12800, %s4966, %s4954, 128, 128, 8
        $region72: #{tpu_custom_call.1} parent=43 // pred_fallthru
          _
      $region44: #{tpu_custom_call.1} parent=5 // pred_fallthru
        _
      %p4974 = scmp.le.s32.totalorder 2, %s23
      // Predicated region
      $region73: #{tpu_custom_call.1} parent=5 // pred_check
        %p4975 = pneg %p4974
      $region74: #{tpu_custom_call.1} parent=5 // pred_check_branch
        %4977 = sbr.rel (%p4975) target = $region76
      $region75: #{tpu_custom_call.1} parent=5 // pred_region
        %s4978 = ssub.s32 %s23, 2
        // Predicated region
        $region77: #{tpu_custom_call.1} parent=75 // pred_check
          %p4979 = pneg %p192
        $region78: #{tpu_custom_call.1} parent=75 // pred_check_branch
          %4981 = sbr.rel (%p4979) target = $region80
        $region79: #{tpu_custom_call.1} parent=75 // pred_region
          %s4982 = sand.u32 %s177, 1
          %s4983 = scalar_lea.sflag [#allocation5], %s4982
          %s4984 = sand.u32 %s177, 1
          %s4985 = smul.addr %s4984, 800
          %s4986 = scalar_lea.vmem [#allocation14], %s4985
          %4987 = dma.done %s4983, 12800
        $region80: #{tpu_custom_call.1} parent=75 // pred_fallthru
          _
      $region76: #{tpu_custom_call.1} parent=5 // pred_fallthru
        _
    $region6: #{tpu_custom_call.1} parent=1 // loop_footer
      %s27 = sadd.s32 1, %s23
    $region7: #{tpu_custom_call.1} parent=1 // loop_footer_branch
      %22 = sbr.rel target = $region3
    $region8: #{tpu_custom_call.1} parent=1 // loop_exit
      _
    %4988 = vsyncpa [#allocation4], 1
    %s4989 = scalar_lea.sflag [#allocation4], 1
    %4990 = vsyncpa %s4989, 1
    %4991 = vsyncpa [#allocation7], 1
    %s4992 = scalar_lea.sflag [#allocation7], 1
    %4993 = vsyncpa %s4992, 1
    %4994 = vsyncpa [#allocation10], 1
    %4995 = vsyncpa [#allocation13], 1
    %4996 = vsyncpa [#allocation5], 1
    %s4997 = scalar_lea.sflag [#allocation5], 1
    %4998 = vsyncpa %s4997, 1

</llo_original>
